<compile_context>
chip_gen: v5e
topology: v5e:2x2
jax: 0.10.0
libtpu: 0.0.40
codegen_flags: <defaults>
</compile_context>

<pallas_src>
import functools

import jax
import jax.numpy as jnp
from jax.experimental import pallas as pl
from jax.experimental.pallas import tpu as pltpu


def _round_up(x, m):
    return ((x + m - 1) // m) * m


def _fused_mlp_kernel(x_ref, w1_ref, w2_ref, w3_ref, w4_ref, bias_ref, o_ref):
    """Four chained layers; matmuls on the MXU (bf16 in, f32 acc), bias+ReLU on the VPU.

    Intermediates (TB x 256/512/1024 f32) live in vregs/VMEM and never touch HBM.
    BN scale is already folded into the weights; biases are packed in bias_ref.
    """
    d1 = w1_ref.shape[1]
    d2 = w2_ref.shape[1]
    d3 = w3_ref.shape[1]
    d4 = w4_ref.shape[1]
    b1 = bias_ref[:, :d1]
    b2 = bias_ref[:, d1:d1 + d2]
    b3 = bias_ref[:, d1 + d2:d1 + d2 + d3]
    b4 = bias_ref[:, d1 + d2 + d3:d1 + d2 + d3 + d4]

    h = jnp.dot(x_ref[...].astype(jnp.bfloat16), w1_ref[...],
                preferred_element_type=jnp.float32)
    h = jnp.maximum(h + b1, 0.0)

    h = jnp.dot(h.astype(jnp.bfloat16), w2_ref[...],
                preferred_element_type=jnp.float32)
    h = jnp.maximum(h + b2, 0.0)

    h = jnp.dot(h.astype(jnp.bfloat16), w3_ref[...],
                preferred_element_type=jnp.float32)
    h = jnp.maximum(h + b3, 0.0)

    y = jnp.dot(h.astype(jnp.bfloat16), w4_ref[...],
                preferred_element_type=jnp.float32) + b4
    o_ref[...] = y.astype(o_ref.dtype)


@functools.partial(jax.jit, static_argnames=("single_buffer_weights",))
def _run(x, w1, w2, w3, w4, bias_cat, *, single_buffer_weights):
    B, din = x.shape
    d1, d2, d3, d4 = w1.shape[1], w2.shape[1], w3.shape[1], w4.shape[1]
    dtot = bias_cat.shape[1]

    # Batch tile: 512 rows once batch is large (amortizes ~0.35us/step overhead and
    # MXU fill/drain); small batches use one (8k)-row tile.  Intermediates at TB=512
    # are only ~2 MB f32, safely inside v7x's 64 MiB VMEM even with bf16 weights.
    if B >= 512:
        TB = 512
    else:
        TB = _round_up(max(B, 1), 8)
    B_pad = _round_up(B, TB)
    x_p = x if B_pad == B else jnp.pad(x, ((0, B_pad - B), (0, 0)))

    full = lambda i: (0, 0)       # weights/biases stay VMEM-resident across steps
    batched = lambda i: (i, 0)

    def const_spec(shape):
        if single_buffer_weights:
            # Constant blocks never change across grid steps -> no double buffer.
            return pl.BlockSpec(shape, full, pipeline_mode=pl.Buffered(1))
        return pl.BlockSpec(shape, full)

    out = pl.pallas_call(
        _fused_mlp_kernel,
        out_shape=jax.ShapeDtypeStruct((B_pad, d4), jnp.float32),
        grid=(B_pad // TB,),
        in_specs=[
            pl.BlockSpec((TB, din), batched),
            const_spec((din, d1)),
            const_spec((d1, d2)),
            const_spec((d2, d3)),
            const_spec((d3, d4)),
            const_spec((1, dtot)),
        ],
        out_specs=pl.BlockSpec((TB, d4), batched),
        compiler_params=pltpu.CompilerParams(
            # Batch axis is embarrassingly parallel -> both v7x TensorCores when
            # the grid has >= 2 steps.
            dimension_semantics=("parallel",),
            # Actual need: ~1.6 MB bf16 weights + activation tiles; 32 MiB gives
            # headroom without claiming all of v7x's 64 MiB physical VMEM.
            vmem_limit_bytes=32 * 1024 * 1024,
        ),
    )(x_p, w1, w2, w3, w4, bias_cat)

    return out[:B]


def _prep_params(params):
    """Fold BN scale into weight columns, cast weights to bf16, pad the final
    layer to a lane-dense (multiple-of-128) width, and pack the biases into one row."""
    d4 = params[3]["w"].shape[1]
    d4_pad = _round_up(d4, 128)

    ws, bs = [], []
    for li in range(4):
        p = params[li]
        w = p["w"]
        b = p["bias"].reshape(1, -1)
        if li < 3:
            w = w * p["scale"].reshape(1, -1)          # fold BN scale into columns
        else:
            w = jnp.pad(w, ((0, 0), (0, d4_pad - d4)))  # lane-dense final output
            b = jnp.pad(b, ((0, 0), (0, d4_pad - d4)))
        ws.append(w.astype(jnp.bfloat16))
        bs.append(b.astype(jnp.float32))
    bias_cat = jnp.concatenate(bs, axis=1)              # offsets 0/256/768/1792 (128-aligned)
    return ws, bias_cat, d4


def dense_network_forward(x, params):
    """Fused forward pass. x: (B, features), params: list of 4 layer dicts."""
    (w1, w2, w3, w4), bias_cat, d4 = _prep_params(params)
    try:
        out = _run(x, w1, w2, w3, w4, bias_cat, single_buffer_weights=True)
    except Exception:
        # Older Pallas without pipeline_mode / Buffered(1) support.
        out = _run(x, w1, w2, w3, w4, bias_cat, single_buffer_weights=False)
    return out[:, :d4]


def dense_network_reference(x, params):
    """Pure-JAX f32 reference (same eval-mode folded-BN semantics)."""
    out = x
    for li in range(3):
        p = params[li]
        out = jnp.maximum(out @ p["w"] * p["scale"] + p["bias"], 0.0)
    p = params[3]
    return out @ p["w"] + p["bias"]


def init_params(key, features_length, number_of_classes):
    """Deterministic synthetic parameters matching Dense_Network.__init__ shapes.

    BatchNorm1d uses eval-mode (running-stats) semantics folded into scale/bias:
      scale = gamma / sqrt(running_var + eps)
      bias  = (linear_bias - running_mean) * scale + beta
    """
    dims = [features_length, 256, 512, 1024, number_of_classes]
    params = []
    for li in range(4):
        din, dout = dims[li], dims[li + 1]
        key, kw, kb, kg, kbeta, km, kv = jax.random.split(key, 7)
        w = 0.02 * jax.random.normal(kw, (din, dout), jnp.float32)     # Linear.weight.T
        b = 0.01 * jax.random.normal(kb, (dout,), jnp.float32)         # Linear.bias
        if li < 3:
            gamma = 1.0 + 0.05 * jax.random.normal(kg, (dout,), jnp.float32)
            beta = 0.02 * jax.random.normal(kbeta, (dout,), jnp.float32)
            run_mean = 0.05 * jax.random.normal(km, (dout,), jnp.float32)
            run_var = 1.0 + 0.1 * jnp.abs(jax.random.normal(kv, (dout,), jnp.float32))
            eps = 1e-5
            scale = gamma / jnp.sqrt(run_var + eps)
            bias_eff = (b - run_mean) * scale + beta
        else:
            scale = jnp.ones((dout,), jnp.float32)   # unused for the last layer
            bias_eff = b
        params.append(dict(w=w, scale=scale, bias=bias_eff))
    return params


if __name__ == "__main__":
    features_length = 32
    number_of_classes = 16
    batch = 8

    key = jax.random.PRNGKey(0)
    key, kx = jax.random.split(key)
    x = jax.random.normal(kx, (batch, features_length), jnp.float32)

    params = init_params(key, features_length, number_of_classes)

    out = dense_network_forward(x, params)
    out = jax.block_until_ready(out)
    assert out.shape == (batch, number_of_classes), out.shape

    ref = dense_network_reference(x, params)
    # bf16 matmul operands -> allow ~1e-2-level deviation from the f32 reference.
    assert jnp.allclose(out, ref, atol=2e-2, rtol=2e-2), float(jnp.max(jnp.abs(out - ref)))

    # TODO(synk): BatchNorm1d training-mode batch-statistics update is not
    # implemented; this kernel implements eval-mode (running-stats) inference.
    print("KERNEL_OK")
</pallas_src>

<mosaic_0001>
module attributes {stable_mosaic.version = 11 : i64} {
  func.func @_fused_mlp_kernel(%arg0: i32, %arg1: memref<8x32xf32, #tpu.memory_space<vmem>>, %arg2: memref<32x256xbf16, #tpu.memory_space<vmem>>, %arg3: memref<256x512xbf16, #tpu.memory_space<vmem>>, %arg4: memref<512x1024xbf16, #tpu.memory_space<vmem>>, %arg5: memref<1024x128xbf16, #tpu.memory_space<vmem>>, %arg6: memref<1x1920xf32, #tpu.memory_space<vmem>>, %arg7: memref<8x128xf32, #tpu.memory_space<vmem>>) attributes {dimension_semantics = [#tpu.dimension_semantics<parallel>], iteration_bounds = array<i64: 1>, scalar_prefetch = 0 : i64, scratch_operands = 0 : i64, tpu.core_type = #tpu.core_type<tc>, window_params = [{transform_indices = @transform_0, window_bounds = array<i64: 8, 32>}, {pipeline_mode = #tpu.pipeline_mode<synchronous>, transform_indices = @transform_1, window_bounds = array<i64: 32, 256>}, {pipeline_mode = #tpu.pipeline_mode<synchronous>, transform_indices = @transform_2, window_bounds = array<i64: 256, 512>}, {pipeline_mode = #tpu.pipeline_mode<synchronous>, transform_indices = @transform_3, window_bounds = array<i64: 512, 1024>}, {pipeline_mode = #tpu.pipeline_mode<synchronous>, transform_indices = @transform_4, window_bounds = array<i64: 1024, 128>}, {pipeline_mode = #tpu.pipeline_mode<synchronous>, transform_indices = @transform_5, window_bounds = array<i64: 1, 1920>}, {transform_indices = @transform_6, window_bounds = array<i64: 8, 128>}]} {
    %c0 = arith.constant 0 : index
    %c0_0 = arith.constant 0 : index
    %0 = vector.load %arg6[%c0, %c0_0] : memref<1x1920xf32, #tpu.memory_space<vmem>>, vector<1x256xf32>
    %c0_1 = arith.constant 0 : index
    %c256 = arith.constant 256 : index
    %1 = vector.load %arg6[%c0_1, %c256] : memref<1x1920xf32, #tpu.memory_space<vmem>>, vector<1x512xf32>
    %c0_2 = arith.constant 0 : index
    %c768 = arith.constant 768 : index
    %2 = vector.load %arg6[%c0_2, %c768] : memref<1x1920xf32, #tpu.memory_space<vmem>>, vector<1x1024xf32>
    %c0_3 = arith.constant 0 : index
    %c1792 = arith.constant 1792 : index
    %3 = vector.load %arg6[%c0_3, %c1792] : memref<1x1920xf32, #tpu.memory_space<vmem>>, vector<1x128xf32>
    %c0_4 = arith.constant 0 : index
    %c0_5 = arith.constant 0 : index
    %4 = vector.load %arg1[%c0_4, %c0_5] : memref<8x32xf32, #tpu.memory_space<vmem>>, vector<8x32xf32>
    %5 = arith.truncf %4 : vector<8x32xf32> to vector<8x32xbf16>
    %c0_6 = arith.constant 0 : index
    %c0_7 = arith.constant 0 : index
    %6 = vector.load %arg2[%c0_6, %c0_7] : memref<32x256xbf16, #tpu.memory_space<vmem>>, vector<32x256xbf16>
    %cst = arith.constant dense<0.000000e+00> : vector<8x256xf32>
    %7 = tpu.matmul %5, %6, %cst {dimension_numbers = #tpu.dot_dimension_numbers<[1], [0], [0], [1], [0, 0, 1, 1], [], []>} : vector<8x32xbf16>, vector<32x256xbf16>, vector<8x256xf32> -> vector<8x256xf32>
    %8 = vector.broadcast %0 : vector<1x256xf32> to vector<8x256xf32>
    %9 = arith.addf %7, %8 : vector<8x256xf32>
    %cst_8 = arith.constant 0.000000e+00 : f32
    %10 = vector.broadcast %cst_8 : f32 to vector<8x256xf32>
    %11 = arith.maximumf %9, %10 : vector<8x256xf32>
    %12 = arith.truncf %11 : vector<8x256xf32> to vector<8x256xbf16>
    %c0_9 = arith.constant 0 : index
    %c0_10 = arith.constant 0 : index
    %13 = vector.load %arg3[%c0_9, %c0_10] : memref<256x512xbf16, #tpu.memory_space<vmem>>, vector<256x512xbf16>
    %cst_11 = arith.constant dense<0.000000e+00> : vector<8x512xf32>
    %14 = tpu.matmul %12, %13, %cst_11 {dimension_numbers = #tpu.dot_dimension_numbers<[1], [0], [0], [1], [0, 0, 1, 1], [], []>} : vector<8x256xbf16>, vector<256x512xbf16>, vector<8x512xf32> -> vector<8x512xf32>
    %15 = vector.broadcast %1 : vector<1x512xf32> to vector<8x512xf32>
    %16 = arith.addf %14, %15 : vector<8x512xf32>
    %cst_12 = arith.constant 0.000000e+00 : f32
    %17 = vector.broadcast %cst_12 : f32 to vector<8x512xf32>
    %18 = arith.maximumf %16, %17 : vector<8x512xf32>
    %19 = arith.truncf %18 : vector<8x512xf32> to vector<8x512xbf16>
    %c0_13 = arith.constant 0 : index
    %c0_14 = arith.constant 0 : index
    %20 = vector.load %arg4[%c0_13, %c0_14] : memref<512x1024xbf16, #tpu.memory_space<vmem>>, vector<512x1024xbf16>
    %cst_15 = arith.constant dense<0.000000e+00> : vector<8x1024xf32>
    %21 = tpu.matmul %19, %20, %cst_15 {dimension_numbers = #tpu.dot_dimension_numbers<[1], [0], [0], [1], [0, 0, 1, 1], [], []>} : vector<8x512xbf16>, vector<512x1024xbf16>, vector<8x1024xf32> -> vector<8x1024xf32>
    %22 = vector.broadcast %2 : vector<1x1024xf32> to vector<8x1024xf32>
    %23 = arith.addf %21, %22 : vector<8x1024xf32>
    %cst_16 = arith.constant 0.000000e+00 : f32
    %24 = vector.broadcast %cst_16 : f32 to vector<8x1024xf32>
    %25 = arith.maximumf %23, %24 : vector<8x1024xf32>
    %26 = arith.truncf %25 : vector<8x1024xf32> to vector<8x1024xbf16>
    %c0_17 = arith.constant 0 : index
    %c0_18 = arith.constant 0 : index
    %27 = vector.load %arg5[%c0_17, %c0_18] : memref<1024x128xbf16, #tpu.memory_space<vmem>>, vector<1024x128xbf16>
    %cst_19 = arith.constant dense<0.000000e+00> : vector<8x128xf32>
    %28 = tpu.matmul %26, %27, %cst_19 {dimension_numbers = #tpu.dot_dimension_numbers<[1], [0], [0], [1], [0, 0, 1, 1], [], []>} : vector<8x1024xbf16>, vector<1024x128xbf16>, vector<8x128xf32> -> vector<8x128xf32>
    %29 = vector.broadcast %3 : vector<1x128xf32> to vector<8x128xf32>
    %30 = arith.addf %28, %29 : vector<8x128xf32>
    %c0_20 = arith.constant 0 : index
    %c0_21 = arith.constant 0 : index
    %31 = vector.load %arg7[%c0_20, %c0_21] : memref<8x128xf32, #tpu.memory_space<vmem>>, vector<8x128xf32>
    tpu.vector_store %arg7[%c0_20, %c0_21], %30 {strides = array<i32>} : memref<8x128xf32, #tpu.memory_space<vmem>>, vector<8x128xf32>,
    return
  }
  func.func @transform_0(%arg0: i32) -> (i32, i32) {
    %c0_i32 = arith.constant 0 : i32
    %c0_i32_0 = arith.constant 0 : i32
    return %arg0, %c0_i32 : i32, i32
  }
  func.func @transform_1(%arg0: i32) -> (i32, i32) {
    %c0_i32 = arith.constant 0 : i32
    %c0_i32_0 = arith.constant 0 : i32
    %c0_i32_1 = arith.constant 0 : i32
    return %c0_i32, %c0_i32_0 : i32, i32
  }
  func.func @transform_2(%arg0: i32) -> (i32, i32) {
    %c0_i32 = arith.constant 0 : i32
    %c0_i32_0 = arith.constant 0 : i32
    %c0_i32_1 = arith.constant 0 : i32
    return %c0_i32, %c0_i32_0 : i32, i32
  }
  func.func @transform_3(%arg0: i32) -> (i32, i32) {
    %c0_i32 = arith.constant 0 : i32
    %c0_i32_0 = arith.constant 0 : i32
    %c0_i32_1 = arith.constant 0 : i32
    return %c0_i32, %c0_i32_0 : i32, i32
  }
  func.func @transform_4(%arg0: i32) -> (i32, i32) {
    %c0_i32 = arith.constant 0 : i32
    %c0_i32_0 = arith.constant 0 : i32
    %c0_i32_1 = arith.constant 0 : i32
    return %c0_i32, %c0_i32_0 : i32, i32
  }
  func.func @transform_5(%arg0: i32) -> (i32, i32) {
    %c0_i32 = arith.constant 0 : i32
    %c0_i32_0 = arith.constant 0 : i32
    %c0_i32_1 = arith.constant 0 : i32
    return %c0_i32, %c0_i32_0 : i32, i32
  }
  func.func @transform_6(%arg0: i32) -> (i32, i32) {
    %c0_i32 = arith.constant 0 : i32
    %c0_i32_0 = arith.constant 0 : i32
    return %arg0, %c0_i32 : i32, i32
  }
}

module attributes {stable_mosaic.version = 11 : i64} {
  func.func @_fused_mlp_kernel(%arg0: i32, %arg1: memref<8x32xf32, #tpu.memory_space<vmem>>, %arg2: memref<32x256xbf16, #tpu.memory_space<vmem>>, %arg3: memref<256x512xbf16, #tpu.memory_space<vmem>>, %arg4: memref<512x1024xbf16, #tpu.memory_space<vmem>>, %arg5: memref<1024x128xbf16, #tpu.memory_space<vmem>>, %arg6: memref<1x1920xf32, #tpu.memory_space<vmem>>, %arg7: memref<8x128xf32, #tpu.memory_space<vmem>>) attributes {dimension_semantics = [#tpu.dimension_semantics<parallel>], iteration_bounds = array<i64: 1>, scalar_prefetch = 0 : i64, scratch_operands = 0 : i64, tpu.core_type = #tpu.core_type<tc>, window_params = [{transform_indices = @transform_0, window_bounds = array<i64: 8, 32>}, {pipeline_mode = #tpu.pipeline_mode<synchronous>, transform_indices = @transform_1, window_bounds = array<i64: 32, 256>}, {pipeline_mode = #tpu.pipeline_mode<synchronous>, transform_indices = @transform_2, window_bounds = array<i64: 256, 512>}, {pipeline_mode = #tpu.pipeline_mode<synchronous>, transform_indices = @transform_3, window_bounds = array<i64: 512, 1024>}, {pipeline_mode = #tpu.pipeline_mode<synchronous>, transform_indices = @transform_4, window_bounds = array<i64: 1024, 128>}, {pipeline_mode = #tpu.pipeline_mode<synchronous>, transform_indices = @transform_5, window_bounds = array<i64: 1, 1920>}, {transform_indices = @transform_6, window_bounds = array<i64: 8, 128>}]} {
    %c0 = arith.constant 0 : index
    %c0_0 = arith.constant 0 : index
    %0 = vector.load %arg6[%c0, %c0_0] : memref<1x1920xf32, #tpu.memory_space<vmem>>, vector<1x256xf32>
    %c0_1 = arith.constant 0 : index
    %c256 = arith.constant 256 : index
    %1 = vector.load %arg6[%c0_1, %c256] : memref<1x1920xf32, #tpu.memory_space<vmem>>, vector<1x512xf32>
    %c0_2 = arith.constant 0 : index
    %c768 = arith.constant 768 : index
    %2 = vector.load %arg6[%c0_2, %c768] : memref<1x1920xf32, #tpu.memory_space<vmem>>, vector<1x1024xf32>
    %c0_3 = arith.constant 0 : index
    %c1792 = arith.constant 1792 : index
    %3 = vector.load %arg6[%c0_3, %c1792] : memref<1x1920xf32, #tpu.memory_space<vmem>>, vector<1x128xf32>
    %c0_4 = arith.constant 0 : index
    %c0_5 = arith.constant 0 : index
    %4 = vector.load %arg1[%c0_4, %c0_5] : memref<8x32xf32, #tpu.memory_space<vmem>>, vector<8x32xf32>
    %5 = arith.truncf %4 : vector<8x32xf32> to vector<8x32xbf16>
    %c0_6 = arith.constant 0 : index
    %c0_7 = arith.constant 0 : index
    %6 = vector.load %arg2[%c0_6, %c0_7] : memref<32x256xbf16, #tpu.memory_space<vmem>>, vector<32x256xbf16>
    %cst = arith.constant dense<0.000000e+00> : vector<8x256xf32>
    %7 = tpu.matmul %5, %6, %cst {dimension_numbers = #tpu.dot_dimension_numbers<[1], [0], [0], [1], [0, 0, 1, 1], [], []>} : vector<8x32xbf16>, vector<32x256xbf16>, vector<8x256xf32> -> vector<8x256xf32>
    %8 = vector.broadcast %0 : vector<1x256xf32> to vector<8x256xf32>
    %9 = arith.addf %7, %8 : vector<8x256xf32>
    %cst_8 = arith.constant 0.000000e+00 : f32
    %10 = vector.broadcast %cst_8 : f32 to vector<8x256xf32>
    %11 = arith.maximumf %9, %10 : vector<8x256xf32>
    %12 = arith.truncf %11 : vector<8x256xf32> to vector<8x256xbf16>
    %c0_9 = arith.constant 0 : index
    %c0_10 = arith.constant 0 : index
    %13 = vector.load %arg3[%c0_9, %c0_10] : memref<256x512xbf16, #tpu.memory_space<vmem>>, vector<256x512xbf16>
    %cst_11 = arith.constant dense<0.000000e+00> : vector<8x512xf32>
    %14 = tpu.matmul %12, %13, %cst_11 {dimension_numbers = #tpu.dot_dimension_numbers<[1], [0], [0], [1], [0, 0, 1, 1], [], []>} : vector<8x256xbf16>, vector<256x512xbf16>, vector<8x512xf32> -> vector<8x512xf32>
    %15 = vector.broadcast %1 : vector<1x512xf32> to vector<8x512xf32>
    %16 = arith.addf %14, %15 : vector<8x512xf32>
    %cst_12 = arith.constant 0.000000e+00 : f32
    %17 = vector.broadcast %cst_12 : f32 to vector<8x512xf32>
    %18 = arith.maximumf %16, %17 : vector<8x512xf32>
    %19 = arith.truncf %18 : vector<8x512xf32> to vector<8x512xbf16>
    %c0_13 = arith.constant 0 : index
    %c0_14 = arith.constant 0 : index
    %20 = vector.load %arg4[%c0_13, %c0_14] : memref<512x1024xbf16, #tpu.memory_space<vmem>>, vector<512x1024xbf16>
    %cst_15 = arith.constant dense<0.000000e+00> : vector<8x1024xf32>
    %21 = tpu.matmul %19, %20, %cst_15 {dimension_numbers = #tpu.dot_dimension_numbers<[1], [0], [0], [1], [0, 0, 1, 1], [], []>} : vector<8x512xbf16>, vector<512x1024xbf16>, vector<8x1024xf32> -> vector<8x1024xf32>
    %22 = vector.broadcast %2 : vector<1x1024xf32> to vector<8x1024xf32>
    %23 = arith.addf %21, %22 : vector<8x1024xf32>
    %cst_16 = arith.constant 0.000000e+00 : f32
    %24 = vector.broadcast %cst_16 : f32 to vector<8x1024xf32>
    %25 = arith.maximumf %23, %24 : vector<8x1024xf32>
    %26 = arith.truncf %25 : vector<8x1024xf32> to vector<8x1024xbf16>
    %c0_17 = arith.constant 0 : index
    %c0_18 = arith.constant 0 : index
    %27 = vector.load %arg5[%c0_17, %c0_18] : memref<1024x128xbf16, #tpu.memory_space<vmem>>, vector<1024x128xbf16>
    %cst_19 = arith.constant dense<0.000000e+00> : vector<8x128xf32>
    %28 = tpu.matmul %26, %27, %cst_19 {dimension_numbers = #tpu.dot_dimension_numbers<[1], [0], [0], [1], [0, 0, 1, 1], [], []>} : vector<8x1024xbf16>, vector<1024x128xbf16>, vector<8x128xf32> -> vector<8x128xf32>
    %29 = vector.broadcast %3 : vector<1x128xf32> to vector<8x128xf32>
    %30 = arith.addf %28, %29 : vector<8x128xf32>
    %c0_20 = arith.constant 0 : index
    %c0_21 = arith.constant 0 : index
    %31 = vector.load %arg7[%c0_20, %c0_21] : memref<8x128xf32, #tpu.memory_space<vmem>>, vector<8x128xf32>
    tpu.vector_store %arg7[%c0_20, %c0_21], %30 {strides = array<i32>} : memref<8x128xf32, #tpu.memory_space<vmem>>, vector<8x128xf32>,
    return
  }
  func.func @transform_0(%arg0: i32) -> (i32, i32) {
    %c0_i32 = arith.constant 0 : i32
    %c0_i32_0 = arith.constant 0 : i32
    return %arg0, %c0_i32 : i32, i32
  }
  func.func @transform_1(%arg0: i32) -> (i32, i32) {
    %c0_i32 = arith.constant 0 : i32
    %c0_i32_0 = arith.constant 0 : i32
    %c0_i32_1 = arith.constant 0 : i32
    return %c0_i32, %c0_i32_0 : i32, i32
  }
  func.func @transform_2(%arg0: i32) -> (i32, i32) {
    %c0_i32 = arith.constant 0 : i32
    %c0_i32_0 = arith.constant 0 : i32
    %c0_i32_1 = arith.constant 0 : i32
    return %c0_i32, %c0_i32_0 : i32, i32
  }
  func.func @transform_3(%arg0: i32) -> (i32, i32) {
    %c0_i32 = arith.constant 0 : i32
    %c0_i32_0 = arith.constant 0 : i32
    %c0_i32_1 = arith.constant 0 : i32
    return %c0_i32, %c0_i32_0 : i32, i32
  }
  func.func @transform_4(%arg0: i32) -> (i32, i32) {
    %c0_i32 = arith.constant 0 : i32
    %c0_i32_0 = arith.constant 0 : i32
    %c0_i32_1 = arith.constant 0 : i32
    return %c0_i32, %c0_i32_0 : i32, i32
  }
  func.func @transform_5(%arg0: i32) -> (i32, i32) {
    %c0_i32 = arith.constant 0 : i32
    %c0_i32_0 = arith.constant 0 : i32
    %c0_i32_1 = arith.constant 0 : i32
    return %c0_i32, %c0_i32_0 : i32, i32
  }
  func.func @transform_6(%arg0: i32) -> (i32, i32) {
    %c0_i32 = arith.constant 0 : i32
    %c0_i32_0 = arith.constant 0 : i32
    return %arg0, %c0_i32 : i32, i32
  }
}

</mosaic_0001>

<llo_original>
// kernel: _run.1
$region0: #{_run.1}
  #allocation0 [shape = 'u32[]', space=smem, size = 0x4, offset = 0x4, fixed_abs, tag = 'smem constant byte address 0x4 - core index']
  #allocation1 [shape = 'u32[72,128]{1,0:T(1,128)}', space=vmem, size = 0x9000, scoped, tag = 'internal scratch']
  %s0 = inlined_call_operand.hbm [shape: f32[8,32], index: 0, kind: input, shape index: {}]
  %s1 = inlined_call_operand.hbm [shape: bf16[32,256], index: 1, kind: input, shape index: {}]
  %s2 = inlined_call_operand.hbm [shape: bf16[256,512], index: 2, kind: input, shape index: {}]
  %s3 = inlined_call_operand.hbm [shape: bf16[512,1024], index: 3, kind: input, shape index: {}]
  %s4 = inlined_call_operand.hbm [shape: bf16[1024,128], index: 4, kind: input, shape index: {}]
  %s5 = inlined_call_operand.hbm [shape: f32[1,1920], index: 5, kind: input, shape index: {}]
  %s6 = inlined_call_operand.hbm [shape: f32[8,128], index: 6, kind: output, shape index: {}]
  %s7 = sld [smem:[#allocation0]]
  $region58: #{_run.1} parent=0
    _
  %s9 = ssub.s32 1, %s7
  %s10 = scalar_select 0, %s9, %s7
  $region1: #{_run.1} parent=0
    #allocation2 [shape = 'u8[4096]{0}', space=vmem, size = 0x1000, scoped, tag = 'input window, operand 0, single buffered']
    #allocation3 [shape = 's32[1]{0}', space=sflag, size = 0x4, scoped, tag = 'scoped memory for _run.1']
    #allocation4 [shape = 's32[1]{0}', space=sflag, size = 0x4, scoped, tag = 'scoped memory for _run.1']
    #allocation5 [shape = 'u8[16384]{0}', space=vmem, size = 0x4000, scoped, tag = 'input window, operand 1, single buffered']
    #allocation6 [shape = 's32[1]{0}', space=sflag, size = 0x4, scoped, tag = 'scoped memory for _run.1']
    #allocation7 [shape = 'u8[262144]{0}', space=vmem, size = 0x40000, scoped, tag = 'input window, operand 2, single buffered']
    #allocation8 [shape = 'u8[1048576]{0}', space=vmem, size = 0x100000, scoped, tag = 'input window, operand 3, single buffered']
    #allocation9 [shape = 's32[1]{0}', space=sflag, size = 0x4, scoped, tag = 'scoped memory for _run.1']
    #allocation10 [shape = 'u8[262144]{0}', space=vmem, size = 0x40000, scoped, tag = 'input window, operand 4, single buffered']
    #allocation11 [shape = 'u8[7680]{0}', space=vmem, size = 0x2000, scoped, tag = 'input window, operand 5, single buffered']
    #allocation12 [shape = 's32[1]{0}', space=sflag, size = 0x4, scoped, tag = 'scoped memory for _run.1']
    #allocation13 [shape = 'u8[4096]{0}', space=vmem, size = 0x1000, scoped, tag = 'output window, operand 0, single buffered']
    %11 = vsyncpa [#allocation3], 0
    %12 = vsyncpa [#allocation6], 0
    %13 = vsyncpa [#allocation9], 0
    %14 = vsyncpa [#allocation12], 0
    %15 = vsyncpa [#allocation4], 0
    // Predicated region
    $region2: #{_run.1} parent=1 // pred_check
      _
    $region3: #{_run.1} parent=1 // pred_check_branch
      %17 = sbr.rel (0) target = $region5
    $region4: #{_run.1} parent=1 // pred_region
      %19 = vsyncadd [#allocation3], 0
      %s21 = sshll.u32 %s0, 4
      %s22 = int_to_ptr.hbm [resolvable:$true] %s21
      %s23 = sshll.u32 [#allocation2], 4
      %s24 = int_to_ptr.vmem [resolvable:$true] %s23
      %26 = dma.hbm_to_vmem [thread:$0]  %s22, 128, %s24, [#allocation3]
    $region5: #{_run.1} parent=1 // pred_fallthru
      _
    // Predicated region
    $region6: #{_run.1} parent=1 // pred_check
      _
    $region7: #{_run.1} parent=1 // pred_check_branch
      %28 = sbr.rel (0) target = $region9
    $region8: #{_run.1} parent=1 // pred_region
      %30 = vsyncadd [#allocation6], 0
      %s31 = sshll.u32 %s1, 4
      %s32 = int_to_ptr.hbm [resolvable:$true] %s31
      %s33 = sshll.u32 [#allocation5], 4
      %s34 = int_to_ptr.vmem [resolvable:$true] %s33
      %39 = dma.hbm_to_vmem [thread:$0]  %s32, 512, %s34, [#allocation6], 128, 128, 8
    $region9: #{_run.1} parent=1 // pred_fallthru
      _
    // Predicated region
    $region10: #{_run.1} parent=1 // pred_check
      _
    $region11: #{_run.1} parent=1 // pred_check_branch
      %41 = sbr.rel (0) target = $region13
    $region12: #{_run.1} parent=1 // pred_region
      %43 = vsyncadd [#allocation6], 0
      %s44 = sshll.u32 %s2, 4
      %s45 = int_to_ptr.hbm [resolvable:$true] %s44
      %s46 = sshll.u32 [#allocation7], 4
      %s47 = int_to_ptr.vmem [resolvable:$true] %s46
      %52 = dma.hbm_to_vmem [thread:$0]  %s45, 8192, %s47, [#allocation6], 256, 256, 16
    $region13: #{_run.1} parent=1 // pred_fallthru
      _
    // Predicated region
    $region14: #{_run.1} parent=1 // pred_check
      _
    $region15: #{_run.1} parent=1 // pred_check_branch
      %54 = sbr.rel (0) target = $region17
    $region16: #{_run.1} parent=1 // pred_region
      %56 = vsyncadd [#allocation9], 0
      %s57 = sshll.u32 %s3, 4
      %s58 = int_to_ptr.hbm [resolvable:$true] %s57
      %s59 = sshll.u32 [#allocation8], 4
      %s60 = int_to_ptr.vmem [resolvable:$true] %s59
      %65 = dma.hbm_to_vmem [thread:$0]  %s58, 32768, %s60, [#allocation9], 512, 512, 32
    $region17: #{_run.1} parent=1 // pred_fallthru
      _
    // Predicated region
    $region18: #{_run.1} parent=1 // pred_check
      _
    $region19: #{_run.1} parent=1 // pred_check_branch
      %67 = sbr.rel (0) target = $region21
    $region20: #{_run.1} parent=1 // pred_region
      %69 = vsyncadd [#allocation9], 0
      %s70 = sshll.u32 %s4, 4
      %s71 = int_to_ptr.hbm [resolvable:$true] %s70
      %s72 = sshll.u32 [#allocation10], 4
      %s73 = int_to_ptr.vmem [resolvable:$true] %s72
      %78 = dma.hbm_to_vmem [thread:$0]  %s71, 8192, %s73, [#allocation9], 64, 64, 4
    $region21: #{_run.1} parent=1 // pred_fallthru
      _
    // Predicated region
    $region22: #{_run.1} parent=1 // pred_check
      _
    $region23: #{_run.1} parent=1 // pred_check_branch
      %80 = sbr.rel (0) target = $region25
    $region24: #{_run.1} parent=1 // pred_region
      %82 = vsyncadd [#allocation12], 0
      %s84 = sshll.u32 %s5, 4
      %s85 = int_to_ptr.hbm [resolvable:$true] %s84
      %s86 = sshll.u32 [#allocation11], 4
      %s87 = int_to_ptr.vmem [resolvable:$true] %s86
      %89 = dma.hbm_to_vmem [thread:$0]  %s85, 240, %s87, [#allocation12]
    $region25: #{_run.1} parent=1 // pred_fallthru
      _
    // Predicated region
    $region26: #{_run.1} parent=1 // pred_check
      _
    $region27: #{_run.1} parent=1 // pred_check_branch
      %91 = sbr.rel (0) target = $region29
    $region28: #{_run.1} parent=1 // pred_region
      %93 = dma.done [#allocation3], 128
    $region29: #{_run.1} parent=1 // pred_fallthru
      _
    // Predicated region
    $region30: #{_run.1} parent=1 // pred_check
      _
    $region31: #{_run.1} parent=1 // pred_check_branch
      %95 = sbr.rel (0) target = $region33
    $region32: #{_run.1} parent=1 // pred_region
      %97 = dma.done [#allocation6], 512
    $region33: #{_run.1} parent=1 // pred_fallthru
      _
    // Predicated region
    $region34: #{_run.1} parent=1 // pred_check
      _
    $region35: #{_run.1} parent=1 // pred_check_branch
      %99 = sbr.rel (0) target = $region37
    $region36: #{_run.1} parent=1 // pred_region
      %101 = dma.done [#allocation6], 8192
    $region37: #{_run.1} parent=1 // pred_fallthru
      _
    // Predicated region
    $region38: #{_run.1} parent=1 // pred_check
      _
    $region39: #{_run.1} parent=1 // pred_check_branch
      %103 = sbr.rel (0) target = $region41
    $region40: #{_run.1} parent=1 // pred_region
      %105 = dma.done [#allocation9], 32768
    $region41: #{_run.1} parent=1 // pred_fallthru
      _
    // Predicated region
    $region42: #{_run.1} parent=1 // pred_check
      _
    $region43: #{_run.1} parent=1 // pred_check_branch
      %107 = sbr.rel (0) target = $region45
    $region44: #{_run.1} parent=1 // pred_region
      %109 = dma.done [#allocation9], 8192
    $region45: #{_run.1} parent=1 // pred_fallthru
      _
    // Predicated region
    $region46: #{_run.1} parent=1 // pred_check
      _
    $region47: #{_run.1} parent=1 // pred_check_branch
      %111 = sbr.rel (0) target = $region49
    $region48: #{_run.1} parent=1 // pred_region
      %113 = dma.done [#allocation12], 240
    $region49: #{_run.1} parent=1 // pred_fallthru
      _
    %v115 = vld [vmem:[#allocation11] sm:$0x3]
    %v116 = vld [vmem:[#allocation11 + $0x2] sm:$0xf]
    %v117 = vld [vmem:[#allocation11 + $0x6] sm:$0xff]
    %v118 = vld [vmem:[#allocation11 + $0xe] sm:$0x1]
    %v119 = vld [vmem:[#allocation2] sm:$0xff]
    %v120 = vpack.c.bf16 %v119, %v119
    %v121 = vld [vmem:[#allocation5] sm:$0xff]
    %v122 = vld [vmem:[#allocation5 + $0x8] sm:$0xff]
    %v123 = vld [vmem:[#allocation5 + $0x10] sm:$0xff]
    %v124 = vld [vmem:[#allocation5 + $0x18] sm:$0xff]
    %v126 = vperm.slane %v115, 0
    %v127 = vperm.slane %v115, 1
    %v134 = vunpack.c.l.b16 %v121
    %v135 = vunpack.c.h.b16 %v121
    %v136 = vunpack.c.l.b16 %v122
    %v137 = vunpack.c.h.b16 %v122
    %v138 = vunpack.c.l.b16 %v123
    %v139 = vunpack.c.h.b16 %v123
    %v140 = vunpack.c.l.b16 %v124
    %v141 = vunpack.c.h.b16 %v124
    %v142 = vpack.c.b16 %v136, %v134
    %v143 = vpack.c.b16 %v137, %v135
    %v144 = vpack.c.b16 %v140, %v138
    %v145 = vpack.c.b16 %v141, %v139
    %vm150 = vcmask 261120
    %v152 = vsel %vm150, %v120, 0
    %154 = vmatpush.bf16.msra.mxu0 0
    %155 = vmatpush.bf16.msra.mxu0 0
    %156 = vmatpush.bf16.msra.mxu0 0
    %157 = vmatpush.bf16.msra.mxu0 0
    %158 = vmatpush.bf16.msra.mxu0 0
    %159 = vmatpush.bf16.msra.mxu0 0
    %160 = vmatpush.bf16.msra.mxu0 %v144
    %161 = vmatpush.bf16.msra.mxu0 %v142
    %162 = vmatmul.bf16.gmra.mxu0 %v152
    %v163 = vpop.f32.mrf.mxu0
    %v164 = vadd.f32 %v126, %v163
    %v165 = vpop.f32.mrf.mxu0
    %166 = vdwg.mxu0
    %167 = vmatpush.bf16.msra.mxu0 0
    %168 = vmatpush.bf16.msra.mxu0 0
    %169 = vmatpush.bf16.msra.mxu0 0
    %170 = vmatpush.bf16.msra.mxu0 0
    %171 = vmatpush.bf16.msra.mxu0 0
    %172 = vmatpush.bf16.msra.mxu0 0
    %173 = vmatpush.bf16.msra.mxu0 %v145
    %174 = vmatpush.bf16.msra.mxu0 %v143
    %175 = vmatmul.bf16.gmra.mxu0 %v152
    %v176 = vpop.f32.mrf.mxu0
    %v177 = vadd.f32 %v127, %v176
    %v178 = vpop.f32.mrf.mxu0
    %179 = vdwg.mxu0
    %v180 = vmax.f32 %v164, 0.0
    %v181 = vmax.f32 %v177, 0.0
    %v182 = vpack.c.bf16 %v180, %v180
    %v183 = vpack.c.bf16 %v181, %v181
    %v184 = vld [vmem:[#allocation7] sm:$0xff]
    %v185 = vld [vmem:[#allocation7 + $0x8] sm:$0xff]
    %v186 = vld [vmem:[#allocation7 + $0x10] sm:$0xff]
    %v187 = vld [vmem:[#allocation7 + $0x18] sm:$0xff]
    %v188 = vld [vmem:[#allocation7 + $0x20] sm:$0xff]
    %v189 = vld [vmem:[#allocation7 + $0x28] sm:$0xff]
    %v190 = vld [vmem:[#allocation7 + $0x30] sm:$0xff]
    %v191 = vld [vmem:[#allocation7 + $0x38] sm:$0xff]
    %v192 = vld [vmem:[#allocation7 + $0x40] sm:$0xff]
    %v193 = vld [vmem:[#allocation7 + $0x48] sm:$0xff]
    %v194 = vld [vmem:[#allocation7 + $0x50] sm:$0xff]
    %v195 = vld [vmem:[#allocation7 + $0x58] sm:$0xff]
    %v196 = vld [vmem:[#allocation7 + $0x60] sm:$0xff]
    %v197 = vld [vmem:[#allocation7 + $0x68] sm:$0xff]
    %v198 = vld [vmem:[#allocation7 + $0x70] sm:$0xff]
    %v199 = vld [vmem:[#allocation7 + $0x78] sm:$0xff]
    %v200 = vld [vmem:[#allocation7 + $0x80] sm:$0xff]
    %v201 = vld [vmem:[#allocation7 + $0x88] sm:$0xff]
    %v202 = vld [vmem:[#allocation7 + $0x90] sm:$0xff]
    %v203 = vld [vmem:[#allocation7 + $0x98] sm:$0xff]
    %v204 = vld [vmem:[#allocation7 + $0xa0] sm:$0xff]
    %v205 = vld [vmem:[#allocation7 + $0xa8] sm:$0xff]
    %v206 = vld [vmem:[#allocation7 + $0xb0] sm:$0xff]
    %v207 = vld [vmem:[#allocation7 + $0xb8] sm:$0xff]
    %v208 = vld [vmem:[#allocation7 + $0xc0] sm:$0xff]
    %v209 = vld [vmem:[#allocation7 + $0xc8] sm:$0xff]
    %v210 = vld [vmem:[#allocation7 + $0xd0] sm:$0xff]
    %v211 = vld [vmem:[#allocation7 + $0xd8] sm:$0xff]
    %v212 = vld [vmem:[#allocation7 + $0xe0] sm:$0xff]
    %v213 = vld [vmem:[#allocation7 + $0xe8] sm:$0xff]
    %v214 = vld [vmem:[#allocation7 + $0xf0] sm:$0xff]
    %v215 = vld [vmem:[#allocation7 + $0xf8] sm:$0xff]
    %v216 = vld [vmem:[#allocation7 + $0x100] sm:$0xff]
    %v217 = vld [vmem:[#allocation7 + $0x108] sm:$0xff]
    %v218 = vld [vmem:[#allocation7 + $0x110] sm:$0xff]
    %v219 = vld [vmem:[#allocation7 + $0x118] sm:$0xff]
    %v220 = vld [vmem:[#allocation7 + $0x120] sm:$0xff]
    %v221 = vld [vmem:[#allocation7 + $0x128] sm:$0xff]
    %v222 = vld [vmem:[#allocation7 + $0x130] sm:$0xff]
    %v223 = vld [vmem:[#allocation7 + $0x138] sm:$0xff]
    %v224 = vld [vmem:[#allocation7 + $0x140] sm:$0xff]
    %v225 = vld [vmem:[#allocation7 + $0x148] sm:$0xff]
    %v226 = vld [vmem:[#allocation7 + $0x150] sm:$0xff]
    %v227 = vld [vmem:[#allocation7 + $0x158] sm:$0xff]
    %v228 = vld [vmem:[#allocation7 + $0x160] sm:$0xff]
    %v229 = vld [vmem:[#allocation7 + $0x168] sm:$0xff]
    %v230 = vld [vmem:[#allocation7 + $0x170] sm:$0xff]
    %v231 = vld [vmem:[#allocation7 + $0x178] sm:$0xff]
    %v232 = vld [vmem:[#allocation7 + $0x180] sm:$0xff]
    %v233 = vld [vmem:[#allocation7 + $0x188] sm:$0xff]
    %v234 = vld [vmem:[#allocation7 + $0x190] sm:$0xff]
    %v235 = vld [vmem:[#allocation7 + $0x198] sm:$0xff]
    %v236 = vld [vmem:[#allocation7 + $0x1a0] sm:$0xff]
    %v237 = vld [vmem:[#allocation7 + $0x1a8] sm:$0xff]
    %v238 = vld [vmem:[#allocation7 + $0x1b0] sm:$0xff]
    %v239 = vld [vmem:[#allocation7 + $0x1b8] sm:$0xff]
    %v240 = vld [vmem:[#allocation7 + $0x1c0] sm:$0xff]
    %v241 = vld [vmem:[#allocation7 + $0x1c8] sm:$0xff]
    %v242 = vld [vmem:[#allocation7 + $0x1d0] sm:$0xff]
    %v243 = vld [vmem:[#allocation7 + $0x1d8] sm:$0xff]
    %v244 = vld [vmem:[#allocation7 + $0x1e0] sm:$0xff]
    %v245 = vld [vmem:[#allocation7 + $0x1e8] sm:$0xff]
    %v246 = vld [vmem:[#allocation7 + $0x1f0] sm:$0xff]
    %v247 = vld [vmem:[#allocation7 + $0x1f8] sm:$0xff]
    %v249 = vperm.slane %v116, 0
    %v250 = vperm.slane %v116, 1
    %v251 = vperm.slane %v116, 2
    %v252 = vperm.slane %v116, 3
    %v321 = vunpack.c.l.b16 %v184
    %v322 = vunpack.c.h.b16 %v184
    %v323 = vunpack.c.l.b16 %v185
    %v324 = vunpack.c.h.b16 %v185
    %v325 = vunpack.c.l.b16 %v186
    %v326 = vunpack.c.h.b16 %v186
    %v327 = vunpack.c.l.b16 %v187
    %v328 = vunpack.c.h.b16 %v187
    %v329 = vunpack.c.l.b16 %v188
    %v330 = vunpack.c.h.b16 %v188
    %v331 = vunpack.c.l.b16 %v189
    %v332 = vunpack.c.h.b16 %v189
    %v333 = vunpack.c.l.b16 %v190
    %v334 = vunpack.c.h.b16 %v190
    %v335 = vunpack.c.l.b16 %v191
    %v336 = vunpack.c.h.b16 %v191
    %v337 = vunpack.c.l.b16 %v192
    %v338 = vunpack.c.h.b16 %v192
    %v339 = vunpack.c.l.b16 %v193
    %v340 = vunpack.c.h.b16 %v193
    %v341 = vunpack.c.l.b16 %v194
    %v342 = vunpack.c.h.b16 %v194
    %v343 = vunpack.c.l.b16 %v195
    %v344 = vunpack.c.h.b16 %v195
    %v345 = vunpack.c.l.b16 %v196
    %v346 = vunpack.c.h.b16 %v196
    %v347 = vunpack.c.l.b16 %v197
    %v348 = vunpack.c.h.b16 %v197
    %v349 = vunpack.c.l.b16 %v198
    %v350 = vunpack.c.h.b16 %v198
    %v351 = vunpack.c.l.b16 %v199
    %v352 = vunpack.c.h.b16 %v199
    %v353 = vunpack.c.l.b16 %v200
    %v354 = vunpack.c.h.b16 %v200
    %v355 = vunpack.c.l.b16 %v201
    %v356 = vunpack.c.h.b16 %v201
    %v357 = vunpack.c.l.b16 %v202
    %v358 = vunpack.c.h.b16 %v202
    %v359 = vunpack.c.l.b16 %v203
    %v360 = vunpack.c.h.b16 %v203
    %v361 = vunpack.c.l.b16 %v204
    %v362 = vunpack.c.h.b16 %v204
    %v363 = vunpack.c.l.b16 %v205
    %v364 = vunpack.c.h.b16 %v205
    %v365 = vunpack.c.l.b16 %v206
    %v366 = vunpack.c.h.b16 %v206
    %v367 = vunpack.c.l.b16 %v207
    %v368 = vunpack.c.h.b16 %v207
    %v369 = vunpack.c.l.b16 %v208
    %v370 = vunpack.c.h.b16 %v208
    %v371 = vunpack.c.l.b16 %v209
    %v372 = vunpack.c.h.b16 %v209
    %v373 = vunpack.c.l.b16 %v210
    %v374 = vunpack.c.h.b16 %v210
    %v375 = vunpack.c.l.b16 %v211
    %v376 = vunpack.c.h.b16 %v211
    %v377 = vunpack.c.l.b16 %v212
    %v378 = vunpack.c.h.b16 %v212
    %v379 = vunpack.c.l.b16 %v213
    %v380 = vunpack.c.h.b16 %v213
    %v381 = vunpack.c.l.b16 %v214
    %v382 = vunpack.c.h.b16 %v214
    %v383 = vunpack.c.l.b16 %v215
    %v384 = vunpack.c.h.b16 %v215
    %v385 = vunpack.c.l.b16 %v216
    %v386 = vunpack.c.h.b16 %v216
    %v387 = vunpack.c.l.b16 %v217
    %v388 = vunpack.c.h.b16 %v217
    %v389 = vunpack.c.l.b16 %v218
    %v390 = vunpack.c.h.b16 %v218
    %v391 = vunpack.c.l.b16 %v219
    %v392 = vunpack.c.h.b16 %v219
    %v393 = vunpack.c.l.b16 %v220
    %v394 = vunpack.c.h.b16 %v220
    %v395 = vunpack.c.l.b16 %v221
    %v396 = vunpack.c.h.b16 %v221
    %v397 = vunpack.c.l.b16 %v222
    %v398 = vunpack.c.h.b16 %v222
    %v399 = vunpack.c.l.b16 %v223
    %v400 = vunpack.c.h.b16 %v223
    %v401 = vunpack.c.l.b16 %v224
    %v402 = vunpack.c.h.b16 %v224
    %v403 = vunpack.c.l.b16 %v225
    %v404 = vunpack.c.h.b16 %v225
    %v405 = vunpack.c.l.b16 %v226
    %v406 = vunpack.c.h.b16 %v226
    %v407 = vunpack.c.l.b16 %v227
    %v408 = vunpack.c.h.b16 %v227
    %v409 = vunpack.c.l.b16 %v228
    %v410 = vunpack.c.h.b16 %v228
    %v411 = vunpack.c.l.b16 %v229
    %v412 = vunpack.c.h.b16 %v229
    %v413 = vunpack.c.l.b16 %v230
    %v414 = vunpack.c.h.b16 %v230
    %v415 = vunpack.c.l.b16 %v231
    %v416 = vunpack.c.h.b16 %v231
    %v417 = vunpack.c.l.b16 %v232
    %v418 = vunpack.c.h.b16 %v232
    %v419 = vunpack.c.l.b16 %v233
    %v420 = vunpack.c.h.b16 %v233
    %v421 = vunpack.c.l.b16 %v234
    %v422 = vunpack.c.h.b16 %v234
    %v423 = vunpack.c.l.b16 %v235
    %v424 = vunpack.c.h.b16 %v235
    %v425 = vunpack.c.l.b16 %v236
    %v426 = vunpack.c.h.b16 %v236
    %v427 = vunpack.c.l.b16 %v237
    %v428 = vunpack.c.h.b16 %v237
    %v429 = vunpack.c.l.b16 %v238
    %v430 = vunpack.c.h.b16 %v238
    %v431 = vunpack.c.l.b16 %v239
    %v432 = vunpack.c.h.b16 %v239
    %v433 = vunpack.c.l.b16 %v240
    %v434 = vunpack.c.h.b16 %v240
    %v435 = vunpack.c.l.b16 %v241
    %v436 = vunpack.c.h.b16 %v241
    %v437 = vunpack.c.l.b16 %v242
    %v438 = vunpack.c.h.b16 %v242
    %v439 = vunpack.c.l.b16 %v243
    %v440 = vunpack.c.h.b16 %v243
    %v441 = vunpack.c.l.b16 %v244
    %v442 = vunpack.c.h.b16 %v244
    %v443 = vunpack.c.l.b16 %v245
    %v444 = vunpack.c.h.b16 %v245
    %v445 = vunpack.c.l.b16 %v246
    %v446 = vunpack.c.h.b16 %v246
    %v447 = vunpack.c.l.b16 %v247
    %v448 = vunpack.c.h.b16 %v247
    %v449 = vpack.c.b16 %v325, %v321
    %v450 = vpack.c.b16 %v326, %v322
    %v451 = vpack.c.b16 %v327, %v323
    %v452 = vpack.c.b16 %v328, %v324
    %v453 = vpack.c.b16 %v333, %v329
    %v454 = vpack.c.b16 %v334, %v330
    %v455 = vpack.c.b16 %v335, %v331
    %v456 = vpack.c.b16 %v336, %v332
    %v457 = vpack.c.b16 %v341, %v337
    %v458 = vpack.c.b16 %v342, %v338
    %v459 = vpack.c.b16 %v343, %v339
    %v460 = vpack.c.b16 %v344, %v340
    %v461 = vpack.c.b16 %v349, %v345
    %v462 = vpack.c.b16 %v350, %v346
    %v463 = vpack.c.b16 %v351, %v347
    %v464 = vpack.c.b16 %v352, %v348
    %v465 = vpack.c.b16 %v357, %v353
    %v466 = vpack.c.b16 %v358, %v354
    %v467 = vpack.c.b16 %v359, %v355
    %v468 = vpack.c.b16 %v360, %v356
    %v469 = vpack.c.b16 %v365, %v361
    %v470 = vpack.c.b16 %v366, %v362
    %v471 = vpack.c.b16 %v367, %v363
    %v472 = vpack.c.b16 %v368, %v364
    %v473 = vpack.c.b16 %v373, %v369
    %v474 = vpack.c.b16 %v374, %v370
    %v475 = vpack.c.b16 %v375, %v371
    %v476 = vpack.c.b16 %v376, %v372
    %v477 = vpack.c.b16 %v381, %v377
    %v478 = vpack.c.b16 %v382, %v378
    %v479 = vpack.c.b16 %v383, %v379
    %v480 = vpack.c.b16 %v384, %v380
    %v481 = vpack.c.b16 %v389, %v385
    %v482 = vpack.c.b16 %v390, %v386
    %v483 = vpack.c.b16 %v391, %v387
    %v484 = vpack.c.b16 %v392, %v388
    %v485 = vpack.c.b16 %v397, %v393
    %v486 = vpack.c.b16 %v398, %v394
    %v487 = vpack.c.b16 %v399, %v395
    %v488 = vpack.c.b16 %v400, %v396
    %v489 = vpack.c.b16 %v405, %v401
    %v490 = vpack.c.b16 %v406, %v402
    %v491 = vpack.c.b16 %v407, %v403
    %v492 = vpack.c.b16 %v408, %v404
    %v493 = vpack.c.b16 %v413, %v409
    %v494 = vpack.c.b16 %v414, %v410
    %v495 = vpack.c.b16 %v415, %v411
    %v496 = vpack.c.b16 %v416, %v412
    %v497 = vpack.c.b16 %v421, %v417
    %v498 = vpack.c.b16 %v422, %v418
    %v499 = vpack.c.b16 %v423, %v419
    %v500 = vpack.c.b16 %v424, %v420
    %v501 = vpack.c.b16 %v429, %v425
    %v502 = vpack.c.b16 %v430, %v426
    %v503 = vpack.c.b16 %v431, %v427
    %v504 = vpack.c.b16 %v432, %v428
    %v505 = vpack.c.b16 %v437, %v433
    %v506 = vpack.c.b16 %v438, %v434
    %v507 = vpack.c.b16 %v439, %v435
    %v508 = vpack.c.b16 %v440, %v436
    %v509 = vpack.c.b16 %v445, %v441
    %v510 = vpack.c.b16 %v446, %v442
    %v511 = vpack.c.b16 %v447, %v443
    %v512 = vpack.c.b16 %v448, %v444
    %577 = vmatpush.bf16.msra.mxu0 %v477
    %578 = vmatpush.bf16.msra.mxu0 %v473
    %579 = vmatpush.bf16.msra.mxu0 %v469
    %580 = vmatpush.bf16.msra.mxu0 %v465
    %581 = vmatpush.bf16.msra.mxu0 %v461
    %582 = vmatpush.bf16.msra.mxu0 %v457
    %583 = vmatpush.bf16.msra.mxu0 %v453
    %584 = vmatpush.bf16.msra.mxu0 %v449
    %585 = vmatmul.bf16.gmra.mxu0 %v182
    %v586 = vpop.f32.mrf.mxu0
    %v587 = vadd.f32 %v249, %v586
    %v588 = vpop.f32.mrf.mxu0
    %589 = vdwg.mxu0
    %590 = vmatpush.bf16.msra.mxu0 %v509
    %591 = vmatpush.bf16.msra.mxu0 %v505
    %592 = vmatpush.bf16.msra.mxu0 %v501
    %593 = vmatpush.bf16.msra.mxu0 %v497
    %594 = vmatpush.bf16.msra.mxu0 %v493
    %595 = vmatpush.bf16.msra.mxu0 %v489
    %596 = vmatpush.bf16.msra.mxu0 %v485
    %597 = vmatpush.bf16.msra.mxu0 %v481
    %598 = vmatmul.bf16.gmra.mxu0 %v183
    %v599 = vpop.f32.mrf.mxu0
    %v600 = vadd.f32 %v587, %v599
    %v601 = vpop.f32.mrf.mxu0
    %602 = vdwg.mxu0
    %603 = vmatpush.bf16.msra.mxu0 %v478
    %604 = vmatpush.bf16.msra.mxu0 %v474
    %605 = vmatpush.bf16.msra.mxu0 %v470
    %606 = vmatpush.bf16.msra.mxu0 %v466
    %607 = vmatpush.bf16.msra.mxu0 %v462
    %608 = vmatpush.bf16.msra.mxu0 %v458
    %609 = vmatpush.bf16.msra.mxu0 %v454
    %610 = vmatpush.bf16.msra.mxu0 %v450
    %611 = vmatmul.bf16.gmra.mxu0 %v182
    %v612 = vpop.f32.mrf.mxu0
    %v613 = vadd.f32 %v250, %v612
    %v614 = vpop.f32.mrf.mxu0
    %615 = vdwg.mxu0
    %616 = vmatpush.bf16.msra.mxu0 %v510
    %617 = vmatpush.bf16.msra.mxu0 %v506
    %618 = vmatpush.bf16.msra.mxu0 %v502
    %619 = vmatpush.bf16.msra.mxu0 %v498
    %620 = vmatpush.bf16.msra.mxu0 %v494
    %621 = vmatpush.bf16.msra.mxu0 %v490
    %622 = vmatpush.bf16.msra.mxu0 %v486
    %623 = vmatpush.bf16.msra.mxu0 %v482
    %624 = vmatmul.bf16.gmra.mxu0 %v183
    %v625 = vpop.f32.mrf.mxu0
    %v626 = vadd.f32 %v613, %v625
    %v627 = vpop.f32.mrf.mxu0
    %628 = vdwg.mxu0
    %629 = vmatpush.bf16.msra.mxu0 %v479
    %630 = vmatpush.bf16.msra.mxu0 %v475
    %631 = vmatpush.bf16.msra.mxu0 %v471
    %632 = vmatpush.bf16.msra.mxu0 %v467
    %633 = vmatpush.bf16.msra.mxu0 %v463
    %634 = vmatpush.bf16.msra.mxu0 %v459
    %635 = vmatpush.bf16.msra.mxu0 %v455
    %636 = vmatpush.bf16.msra.mxu0 %v451
    %637 = vmatmul.bf16.gmra.mxu0 %v182
    %v638 = vpop.f32.mrf.mxu0
    %v639 = vadd.f32 %v251, %v638
    %v640 = vpop.f32.mrf.mxu0
    %641 = vdwg.mxu0
    %642 = vmatpush.bf16.msra.mxu0 %v511
    %643 = vmatpush.bf16.msra.mxu0 %v507
    %644 = vmatpush.bf16.msra.mxu0 %v503
    %645 = vmatpush.bf16.msra.mxu0 %v499
    %646 = vmatpush.bf16.msra.mxu0 %v495
    %647 = vmatpush.bf16.msra.mxu0 %v491
    %648 = vmatpush.bf16.msra.mxu0 %v487
    %649 = vmatpush.bf16.msra.mxu0 %v483
    %650 = vmatmul.bf16.gmra.mxu0 %v183
    %v651 = vpop.f32.mrf.mxu0
    %v652 = vadd.f32 %v639, %v651
    %v653 = vpop.f32.mrf.mxu0
    %654 = vdwg.mxu0
    %655 = vmatpush.bf16.msra.mxu0 %v480
    %656 = vmatpush.bf16.msra.mxu0 %v476
    %657 = vmatpush.bf16.msra.mxu0 %v472
    %658 = vmatpush.bf16.msra.mxu0 %v468
    %659 = vmatpush.bf16.msra.mxu0 %v464
    %660 = vmatpush.bf16.msra.mxu0 %v460
    %661 = vmatpush.bf16.msra.mxu0 %v456
    %662 = vmatpush.bf16.msra.mxu0 %v452
    %663 = vmatmul.bf16.gmra.mxu0 %v182
    %v664 = vpop.f32.mrf.mxu0
    %v665 = vadd.f32 %v252, %v664
    %v666 = vpop.f32.mrf.mxu0
    %667 = vdwg.mxu0
    %668 = vmatpush.bf16.msra.mxu0 %v512
    %669 = vmatpush.bf16.msra.mxu0 %v508
    %670 = vmatpush.bf16.msra.mxu0 %v504
    %671 = vmatpush.bf16.msra.mxu0 %v500
    %672 = vmatpush.bf16.msra.mxu0 %v496
    %673 = vmatpush.bf16.msra.mxu0 %v492
    %674 = vmatpush.bf16.msra.mxu0 %v488
    %675 = vmatpush.bf16.msra.mxu0 %v484
    %676 = vmatmul.bf16.gmra.mxu0 %v183
    %v677 = vpop.f32.mrf.mxu0
    %v678 = vadd.f32 %v665, %v677
    %v679 = vpop.f32.mrf.mxu0
    %680 = vdwg.mxu0
    %v681 = vmax.f32 %v600, 0.0
    %v682 = vmax.f32 %v626, 0.0
    %v683 = vmax.f32 %v652, 0.0
    %v684 = vmax.f32 %v678, 0.0
    %v685 = vpack.c.bf16 %v681, %v681
    %v686 = vpack.c.bf16 %v682, %v682
    %v687 = vpack.c.bf16 %v683, %v683
    %v688 = vpack.c.bf16 %v684, %v684
    %v689 = vld [vmem:[#allocation8] sm:$0xff]
    %v690 = vld [vmem:[#allocation8 + $0x8] sm:$0xff]
    %v691 = vld [vmem:[#allocation8 + $0x10] sm:$0xff]
    %v692 = vld [vmem:[#allocation8 + $0x18] sm:$0xff]
    %v693 = vld [vmem:[#allocation8 + $0x20] sm:$0xff]
    %v694 = vld [vmem:[#allocation8 + $0x28] sm:$0xff]
    %v695 = vld [vmem:[#allocation8 + $0x30] sm:$0xff]
    %v696 = vld [vmem:[#allocation8 + $0x38] sm:$0xff]
    %v697 = vld [vmem:[#allocation8 + $0x40] sm:$0xff]
    %v698 = vld [vmem:[#allocation8 + $0x48] sm:$0xff]
    %v699 = vld [vmem:[#allocation8 + $0x50] sm:$0xff]
    %v700 = vld [vmem:[#allocation8 + $0x58] sm:$0xff]
    %v701 = vld [vmem:[#allocation8 + $0x60] sm:$0xff]
    %v702 = vld [vmem:[#allocation8 + $0x68] sm:$0xff]
    %v703 = vld [vmem:[#allocation8 + $0x70] sm:$0xff]
    %v704 = vld [vmem:[#allocation8 + $0x78] sm:$0xff]
    %v705 = vld [vmem:[#allocation8 + $0x80] sm:$0xff]
    %v706 = vld [vmem:[#allocation8 + $0x88] sm:$0xff]
    %v707 = vld [vmem:[#allocation8 + $0x90] sm:$0xff]
    %v708 = vld [vmem:[#allocation8 + $0x98] sm:$0xff]
    %v709 = vld [vmem:[#allocation8 + $0xa0] sm:$0xff]
    %v710 = vld [vmem:[#allocation8 + $0xa8] sm:$0xff]
    %v711 = vld [vmem:[#allocation8 + $0xb0] sm:$0xff]
    %v712 = vld [vmem:[#allocation8 + $0xb8] sm:$0xff]
    %v713 = vld [vmem:[#allocation8 + $0xc0] sm:$0xff]
    %v714 = vld [vmem:[#allocation8 + $0xc8] sm:$0xff]
    %v715 = vld [vmem:[#allocation8 + $0xd0] sm:$0xff]
    %v716 = vld [vmem:[#allocation8 + $0xd8] sm:$0xff]
    %v717 = vld [vmem:[#allocation8 + $0xe0] sm:$0xff]
    %v718 = vld [vmem:[#allocation8 + $0xe8] sm:$0xff]
    %v719 = vld [vmem:[#allocation8 + $0xf0] sm:$0xff]
    %v720 = vld [vmem:[#allocation8 + $0xf8] sm:$0xff]
    %v721 = vld [vmem:[#allocation8 + $0x100] sm:$0xff]
    %v722 = vld [vmem:[#allocation8 + $0x108] sm:$0xff]
    %v723 = vld [vmem:[#allocation8 + $0x110] sm:$0xff]
    %v724 = vld [vmem:[#allocation8 + $0x118] sm:$0xff]
    %v725 = vld [vmem:[#allocation8 + $0x120] sm:$0xff]
    %v726 = vld [vmem:[#allocation8 + $0x128] sm:$0xff]
    %v727 = vld [vmem:[#allocation8 + $0x130] sm:$0xff]
    %v728 = vld [vmem:[#allocation8 + $0x138] sm:$0xff]
    %v729 = vld [vmem:[#allocation8 + $0x140] sm:$0xff]
    %v730 = vld [vmem:[#allocation8 + $0x148] sm:$0xff]
    %v731 = vld [vmem:[#allocation8 + $0x150] sm:$0xff]
    %v732 = vld [vmem:[#allocation8 + $0x158] sm:$0xff]
    %v733 = vld [vmem:[#allocation8 + $0x160] sm:$0xff]
    %v734 = vld [vmem:[#allocation8 + $0x168] sm:$0xff]
    %v735 = vld [vmem:[#allocation8 + $0x170] sm:$0xff]
    %v736 = vld [vmem:[#allocation8 + $0x178] sm:$0xff]
    %v737 = vld [vmem:[#allocation8 + $0x180] sm:$0xff]
    %v738 = vld [vmem:[#allocation8 + $0x188] sm:$0xff]
    %v739 = vld [vmem:[#allocation8 + $0x190] sm:$0xff]
    %v740 = vld [vmem:[#allocation8 + $0x198] sm:$0xff]
    %v741 = vld [vmem:[#allocation8 + $0x1a0] sm:$0xff]
    %v742 = vld [vmem:[#allocation8 + $0x1a8] sm:$0xff]
    %v743 = vld [vmem:[#allocation8 + $0x1b0] sm:$0xff]
    %v744 = vld [vmem:[#allocation8 + $0x1b8] sm:$0xff]
    %v745 = vld [vmem:[#allocation8 + $0x1c0] sm:$0xff]
    %v746 = vld [vmem:[#allocation8 + $0x1c8] sm:$0xff]
    %v747 = vld [vmem:[#allocation8 + $0x1d0] sm:$0xff]
    %v748 = vld [vmem:[#allocation8 + $0x1d8] sm:$0xff]
    %v749 = vld [vmem:[#allocation8 + $0x1e0] sm:$0xff]
    %v750 = vld [vmem:[#allocation8 + $0x1e8] sm:$0xff]
    %v751 = vld [vmem:[#allocation8 + $0x1f0] sm:$0xff]
    %v752 = vld [vmem:[#allocation8 + $0x1f8] sm:$0xff]
    %v753 = vld [vmem:[#allocation8 + $0x200] sm:$0xff]
    %v754 = vld [vmem:[#allocation8 + $0x208] sm:$0xff]
    %v755 = vld [vmem:[#allocation8 + $0x210] sm:$0xff]
    %v756 = vld [vmem:[#allocation8 + $0x218] sm:$0xff]
    %v757 = vld [vmem:[#allocation8 + $0x220] sm:$0xff]
    %v758 = vld [vmem:[#allocation8 + $0x228] sm:$0xff]
    %v759 = vld [vmem:[#allocation8 + $0x230] sm:$0xff]
    %v760 = vld [vmem:[#allocation8 + $0x238] sm:$0xff]
    %v761 = vld [vmem:[#allocation8 + $0x240] sm:$0xff]
    %v762 = vld [vmem:[#allocation8 + $0x248] sm:$0xff]
    %v763 = vld [vmem:[#allocation8 + $0x250] sm:$0xff]
    %v764 = vld [vmem:[#allocation8 + $0x258] sm:$0xff]
    %v765 = vld [vmem:[#allocation8 + $0x260] sm:$0xff]
    %v766 = vld [vmem:[#allocation8 + $0x268] sm:$0xff]
    %v767 = vld [vmem:[#allocation8 + $0x270] sm:$0xff]
    %v768 = vld [vmem:[#allocation8 + $0x278] sm:$0xff]
    %v769 = vld [vmem:[#allocation8 + $0x280] sm:$0xff]
    %v770 = vld [vmem:[#allocation8 + $0x288] sm:$0xff]
    %v771 = vld [vmem:[#allocation8 + $0x290] sm:$0xff]
    %v772 = vld [vmem:[#allocation8 + $0x298] sm:$0xff]
    %v773 = vld [vmem:[#allocation8 + $0x2a0] sm:$0xff]
    %v774 = vld [vmem:[#allocation8 + $0x2a8] sm:$0xff]
    %v775 = vld [vmem:[#allocation8 + $0x2b0] sm:$0xff]
    %v776 = vld [vmem:[#allocation8 + $0x2b8] sm:$0xff]
    %v777 = vld [vmem:[#allocation8 + $0x2c0] sm:$0xff]
    %v778 = vld [vmem:[#allocation8 + $0x2c8] sm:$0xff]
    %v779 = vld [vmem:[#allocation8 + $0x2d0] sm:$0xff]
    %v780 = vld [vmem:[#allocation8 + $0x2d8] sm:$0xff]
    %v781 = vld [vmem:[#allocation8 + $0x2e0] sm:$0xff]
    %v782 = vld [vmem:[#allocation8 + $0x2e8] sm:$0xff]
    %v783 = vld [vmem:[#allocation8 + $0x2f0] sm:$0xff]
    %v784 = vld [vmem:[#allocation8 + $0x2f8] sm:$0xff]
    %v785 = vld [vmem:[#allocation8 + $0x300] sm:$0xff]
    %v786 = vld [vmem:[#allocation8 + $0x308] sm:$0xff]
    %v787 = vld [vmem:[#allocation8 + $0x310] sm:$0xff]
    %v788 = vld [vmem:[#allocation8 + $0x318] sm:$0xff]
    %v789 = vld [vmem:[#allocation8 + $0x320] sm:$0xff]
    %v790 = vld [vmem:[#allocation8 + $0x328] sm:$0xff]
    %v791 = vld [vmem:[#allocation8 + $0x330] sm:$0xff]
    %v792 = vld [vmem:[#allocation8 + $0x338] sm:$0xff]
    %v793 = vld [vmem:[#allocation8 + $0x340] sm:$0xff]
    %v794 = vld [vmem:[#allocation8 + $0x348] sm:$0xff]
    %v795 = vld [vmem:[#allocation8 + $0x350] sm:$0xff]
    %v796 = vld [vmem:[#allocation8 + $0x358] sm:$0xff]
    %v797 = vld [vmem:[#allocation8 + $0x360] sm:$0xff]
    %v798 = vld [vmem:[#allocation8 + $0x368] sm:$0xff]
    %v799 = vld [vmem:[#allocation8 + $0x370] sm:$0xff]
    %v800 = vld [vmem:[#allocation8 + $0x378] sm:$0xff]
    %v801 = vld [vmem:[#allocation8 + $0x380] sm:$0xff]
    %v802 = vld [vmem:[#allocation8 + $0x388] sm:$0xff]
    %v803 = vld [vmem:[#allocation8 + $0x390] sm:$0xff]
    %v804 = vld [vmem:[#allocation8 + $0x398] sm:$0xff]
    %v805 = vld [vmem:[#allocation8 + $0x3a0] sm:$0xff]
    %v806 = vld [vmem:[#allocation8 + $0x3a8] sm:$0xff]
    %v807 = vld [vmem:[#allocation8 + $0x3b0] sm:$0xff]
    %v808 = vld [vmem:[#allocation8 + $0x3b8] sm:$0xff]
    %v809 = vld [vmem:[#allocation8 + $0x3c0] sm:$0xff]
    %v810 = vld [vmem:[#allocation8 + $0x3c8] sm:$0xff]
    %v811 = vld [vmem:[#allocation8 + $0x3d0] sm:$0xff]
    %v812 = vld [vmem:[#allocation8 + $0x3d8] sm:$0xff]
    %v813 = vld [vmem:[#allocation8 + $0x3e0] sm:$0xff]
    %v814 = vld [vmem:[#allocation8 + $0x3e8] sm:$0xff]
    %v815 = vld [vmem:[#allocation8 + $0x3f0] sm:$0xff]
    %v816 = vld [vmem:[#allocation8 + $0x3f8] sm:$0xff]
    %v817 = vld [vmem:[#allocation8 + $0x400] sm:$0xff]
    %v818 = vld [vmem:[#allocation8 + $0x408] sm:$0xff]
    %v819 = vld [vmem:[#allocation8 + $0x410] sm:$0xff]
    %v820 = vld [vmem:[#allocation8 + $0x418] sm:$0xff]
    %v821 = vld [vmem:[#allocation8 + $0x420] sm:$0xff]
    %v822 = vld [vmem:[#allocation8 + $0x428] sm:$0xff]
    %v823 = vld [vmem:[#allocation8 + $0x430] sm:$0xff]
    %v824 = vld [vmem:[#allocation8 + $0x438] sm:$0xff]
    %v825 = vld [vmem:[#allocation8 + $0x440] sm:$0xff]
    %v826 = vld [vmem:[#allocation8 + $0x448] sm:$0xff]
    %v827 = vld [vmem:[#allocation8 + $0x450] sm:$0xff]
    %v828 = vld [vmem:[#allocation8 + $0x458] sm:$0xff]
    %v829 = vld [vmem:[#allocation8 + $0x460] sm:$0xff]
    %v830 = vld [vmem:[#allocation8 + $0x468] sm:$0xff]
    %v831 = vld [vmem:[#allocation8 + $0x470] sm:$0xff]
    %v832 = vld [vmem:[#allocation8 + $0x478] sm:$0xff]
    %v833 = vld [vmem:[#allocation8 + $0x480] sm:$0xff]
    %v834 = vld [vmem:[#allocation8 + $0x488] sm:$0xff]
    %v835 = vld [vmem:[#allocation8 + $0x490] sm:$0xff]
    %v836 = vld [vmem:[#allocation8 + $0x498] sm:$0xff]
    %v837 = vld [vmem:[#allocation8 + $0x4a0] sm:$0xff]
    %v838 = vld [vmem:[#allocation8 + $0x4a8] sm:$0xff]
    %v839 = vld [vmem:[#allocation8 + $0x4b0] sm:$0xff]
    %v840 = vld [vmem:[#allocation8 + $0x4b8] sm:$0xff]
    %v841 = vld [vmem:[#allocation8 + $0x4c0] sm:$0xff]
    %v842 = vld [vmem:[#allocation8 + $0x4c8] sm:$0xff]
    %v843 = vld [vmem:[#allocation8 + $0x4d0] sm:$0xff]
    %v844 = vld [vmem:[#allocation8 + $0x4d8] sm:$0xff]
    %v845 = vld [vmem:[#allocation8 + $0x4e0] sm:$0xff]
    %v846 = vld [vmem:[#allocation8 + $0x4e8] sm:$0xff]
    %v847 = vld [vmem:[#allocation8 + $0x4f0] sm:$0xff]
    %v848 = vld [vmem:[#allocation8 + $0x4f8] sm:$0xff]
    %v849 = vld [vmem:[#allocation8 + $0x500] sm:$0xff]
    %v850 = vld [vmem:[#allocation8 + $0x508] sm:$0xff]
    %v851 = vld [vmem:[#allocation8 + $0x510] sm:$0xff]
    %v852 = vld [vmem:[#allocation8 + $0x518] sm:$0xff]
    %v853 = vld [vmem:[#allocation8 + $0x520] sm:$0xff]
    %v854 = vld [vmem:[#allocation8 + $0x528] sm:$0xff]
    %v855 = vld [vmem:[#allocation8 + $0x530] sm:$0xff]
    %v856 = vld [vmem:[#allocation8 + $0x538] sm:$0xff]
    %v857 = vld [vmem:[#allocation8 + $0x540] sm:$0xff]
    %v858 = vld [vmem:[#allocation8 + $0x548] sm:$0xff]
    %v859 = vld [vmem:[#allocation8 + $0x550] sm:$0xff]
    %v860 = vld [vmem:[#allocation8 + $0x558] sm:$0xff]
    %v861 = vld [vmem:[#allocation8 + $0x560] sm:$0xff]
    %v862 = vld [vmem:[#allocation8 + $0x568] sm:$0xff]
    %v863 = vld [vmem:[#allocation8 + $0x570] sm:$0xff]
    %v864 = vld [vmem:[#allocation8 + $0x578] sm:$0xff]
    %v865 = vld [vmem:[#allocation8 + $0x580] sm:$0xff]
    %v866 = vld [vmem:[#allocation8 + $0x588] sm:$0xff]
    %v867 = vld [vmem:[#allocation8 + $0x590] sm:$0xff]
    %v868 = vld [vmem:[#allocation8 + $0x598] sm:$0xff]
    %v869 = vld [vmem:[#allocation8 + $0x5a0] sm:$0xff]
    %v870 = vld [vmem:[#allocation8 + $0x5a8] sm:$0xff]
    %v871 = vld [vmem:[#allocation8 + $0x5b0] sm:$0xff]
    %v872 = vld [vmem:[#allocation8 + $0x5b8] sm:$0xff]
    %v873 = vld [vmem:[#allocation8 + $0x5c0] sm:$0xff]
    %v874 = vld [vmem:[#allocation8 + $0x5c8] sm:$0xff]
    %v875 = vld [vmem:[#allocation8 + $0x5d0] sm:$0xff]
    %v876 = vld [vmem:[#allocation8 + $0x5d8] sm:$0xff]
    %v877 = vld [vmem:[#allocation8 + $0x5e0] sm:$0xff]
    %v878 = vld [vmem:[#allocation8 + $0x5e8] sm:$0xff]
    %v879 = vld [vmem:[#allocation8 + $0x5f0] sm:$0xff]
    %v880 = vld [vmem:[#allocation8 + $0x5f8] sm:$0xff]
    %v881 = vld [vmem:[#allocation8 + $0x600] sm:$0xff]
    %v882 = vld [vmem:[#allocation8 + $0x608] sm:$0xff]
    %v883 = vld [vmem:[#allocation8 + $0x610] sm:$0xff]
    %v884 = vld [vmem:[#allocation8 + $0x618] sm:$0xff]
    %v885 = vld [vmem:[#allocation8 + $0x620] sm:$0xff]
    %v886 = vld [vmem:[#allocation8 + $0x628] sm:$0xff]
    %v887 = vld [vmem:[#allocation8 + $0x630] sm:$0xff]
    %v888 = vld [vmem:[#allocation8 + $0x638] sm:$0xff]
    %v889 = vld [vmem:[#allocation8 + $0x640] sm:$0xff]
    %v890 = vld [vmem:[#allocation8 + $0x648] sm:$0xff]
    %v891 = vld [vmem:[#allocation8 + $0x650] sm:$0xff]
    %v892 = vld [vmem:[#allocation8 + $0x658] sm:$0xff]
    %v893 = vld [vmem:[#allocation8 + $0x660] sm:$0xff]
    %v894 = vld [vmem:[#allocation8 + $0x668] sm:$0xff]
    %v895 = vld [vmem:[#allocation8 + $0x670] sm:$0xff]
    %v896 = vld [vmem:[#allocation8 + $0x678] sm:$0xff]
    %v897 = vld [vmem:[#allocation8 + $0x680] sm:$0xff]
    %v898 = vld [vmem:[#allocation8 + $0x688] sm:$0xff]
    %v899 = vld [vmem:[#allocation8 + $0x690] sm:$0xff]
    %v900 = vld [vmem:[#allocation8 + $0x698] sm:$0xff]
    %v901 = vld [vmem:[#allocation8 + $0x6a0] sm:$0xff]
    %v902 = vld [vmem:[#allocation8 + $0x6a8] sm:$0xff]
    %v903 = vld [vmem:[#allocation8 + $0x6b0] sm:$0xff]
    %v904 = vld [vmem:[#allocation8 + $0x6b8] sm:$0xff]
    %v905 = vld [vmem:[#allocation8 + $0x6c0] sm:$0xff]
    %v906 = vld [vmem:[#allocation8 + $0x6c8] sm:$0xff]
    %v907 = vld [vmem:[#allocation8 + $0x6d0] sm:$0xff]
    %v908 = vld [vmem:[#allocation8 + $0x6d8] sm:$0xff]
    %v909 = vld [vmem:[#allocation8 + $0x6e0] sm:$0xff]
    %v910 = vld [vmem:[#allocation8 + $0x6e8] sm:$0xff]
    %v911 = vld [vmem:[#allocation8 + $0x6f0] sm:$0xff]
    %v912 = vld [vmem:[#allocation8 + $0x6f8] sm:$0xff]
    %v913 = vld [vmem:[#allocation8 + $0x700] sm:$0xff]
    %v914 = vld [vmem:[#allocation8 + $0x708] sm:$0xff]
    %v915 = vld [vmem:[#allocation8 + $0x710] sm:$0xff]
    %v916 = vld [vmem:[#allocation8 + $0x718] sm:$0xff]
    %v917 = vld [vmem:[#allocation8 + $0x720] sm:$0xff]
    %v918 = vld [vmem:[#allocation8 + $0x728] sm:$0xff]
    %v919 = vld [vmem:[#allocation8 + $0x730] sm:$0xff]
    %v920 = vld [vmem:[#allocation8 + $0x738] sm:$0xff]
    %v921 = vld [vmem:[#allocation8 + $0x740] sm:$0xff]
    %v922 = vld [vmem:[#allocation8 + $0x748] sm:$0xff]
    %v923 = vld [vmem:[#allocation8 + $0x750] sm:$0xff]
    %v924 = vld [vmem:[#allocation8 + $0x758] sm:$0xff]
    %v925 = vld [vmem:[#allocation8 + $0x760] sm:$0xff]
    %v926 = vld [vmem:[#allocation8 + $0x768] sm:$0xff]
    %v927 = vld [vmem:[#allocation8 + $0x770] sm:$0xff]
    %v928 = vld [vmem:[#allocation8 + $0x778] sm:$0xff]
    %v929 = vld [vmem:[#allocation8 + $0x780] sm:$0xff]
    %v930 = vld [vmem:[#allocation8 + $0x788] sm:$0xff]
    %v931 = vld [vmem:[#allocation8 + $0x790] sm:$0xff]
    %v932 = vld [vmem:[#allocation8 + $0x798] sm:$0xff]
    %v933 = vld [vmem:[#allocation8 + $0x7a0] sm:$0xff]
    %v934 = vld [vmem:[#allocation8 + $0x7a8] sm:$0xff]
    %v935 = vld [vmem:[#allocation8 + $0x7b0] sm:$0xff]
    %v936 = vld [vmem:[#allocation8 + $0x7b8] sm:$0xff]
    %v937 = vld [vmem:[#allocation8 + $0x7c0] sm:$0xff]
    %v938 = vld [vmem:[#allocation8 + $0x7c8] sm:$0xff]
    %v939 = vld [vmem:[#allocation8 + $0x7d0] sm:$0xff]
    %v940 = vld [vmem:[#allocation8 + $0x7d8] sm:$0xff]
    %v941 = vld [vmem:[#allocation8 + $0x7e0] sm:$0xff]
    %v942 = vld [vmem:[#allocation8 + $0x7e8] sm:$0xff]
    %v943 = vld [vmem:[#allocation8 + $0x7f0] sm:$0xff]
    %v944 = vld [vmem:[#allocation8 + $0x7f8] sm:$0xff]
    %v946 = vperm.slane %v117, 0
    %v947 = vperm.slane %v117, 1
    %v948 = vperm.slane %v117, 2
    %v949 = vperm.slane %v117, 3
    %v950 = vperm.slane %v117, 4
    %v951 = vperm.slane %v117, 5
    %v952 = vperm.slane %v117, 6
    %v953 = vperm.slane %v117, 7
    %v1218 = vunpack.c.l.b16 %v689
    %v1219 = vunpack.c.h.b16 %v689
    %v1220 = vunpack.c.l.b16 %v690
    %v1221 = vunpack.c.h.b16 %v690
    %v1222 = vunpack.c.l.b16 %v691
    %v1223 = vunpack.c.h.b16 %v691
    %v1224 = vunpack.c.l.b16 %v692
    %v1225 = vunpack.c.h.b16 %v692
    %v1226 = vunpack.c.l.b16 %v693
    %v1227 = vunpack.c.h.b16 %v693
    %v1228 = vunpack.c.l.b16 %v694
    %v1229 = vunpack.c.h.b16 %v694
    %v1230 = vunpack.c.l.b16 %v695
    %v1231 = vunpack.c.h.b16 %v695
    %v1232 = vunpack.c.l.b16 %v696
    %v1233 = vunpack.c.h.b16 %v696
    %v1234 = vunpack.c.l.b16 %v697
    %v1235 = vunpack.c.h.b16 %v697
    %v1236 = vunpack.c.l.b16 %v698
    %v1237 = vunpack.c.h.b16 %v698
    %v1238 = vunpack.c.l.b16 %v699
    %v1239 = vunpack.c.h.b16 %v699
    %v1240 = vunpack.c.l.b16 %v700
    %v1241 = vunpack.c.h.b16 %v700
    %v1242 = vunpack.c.l.b16 %v701
    %v1243 = vunpack.c.h.b16 %v701
    %v1244 = vunpack.c.l.b16 %v702
    %v1245 = vunpack.c.h.b16 %v702
    %v1246 = vunpack.c.l.b16 %v703
    %v1247 = vunpack.c.h.b16 %v703
    %v1248 = vunpack.c.l.b16 %v704
    %v1249 = vunpack.c.h.b16 %v704
    %v1250 = vunpack.c.l.b16 %v705
    %v1251 = vunpack.c.h.b16 %v705
    %v1252 = vunpack.c.l.b16 %v706
    %v1253 = vunpack.c.h.b16 %v706
    %v1254 = vunpack.c.l.b16 %v707
    %v1255 = vunpack.c.h.b16 %v707
    %v1256 = vunpack.c.l.b16 %v708
    %v1257 = vunpack.c.h.b16 %v708
    %v1258 = vunpack.c.l.b16 %v709
    %v1259 = vunpack.c.h.b16 %v709
    %v1260 = vunpack.c.l.b16 %v710
    %v1261 = vunpack.c.h.b16 %v710
    %v1262 = vunpack.c.l.b16 %v711
    %v1263 = vunpack.c.h.b16 %v711
    %v1264 = vunpack.c.l.b16 %v712
    %v1265 = vunpack.c.h.b16 %v712
    %v1266 = vunpack.c.l.b16 %v713
    %v1267 = vunpack.c.h.b16 %v713
    %v1268 = vunpack.c.l.b16 %v714
    %v1269 = vunpack.c.h.b16 %v714
    %v1270 = vunpack.c.l.b16 %v715
    %v1271 = vunpack.c.h.b16 %v715
    %v1272 = vunpack.c.l.b16 %v716
    %v1273 = vunpack.c.h.b16 %v716
    %v1274 = vunpack.c.l.b16 %v717
    %v1275 = vunpack.c.h.b16 %v717
    %v1276 = vunpack.c.l.b16 %v718
    %v1277 = vunpack.c.h.b16 %v718
    %v1278 = vunpack.c.l.b16 %v719
    %v1279 = vunpack.c.h.b16 %v719
    %v1280 = vunpack.c.l.b16 %v720
    %v1281 = vunpack.c.h.b16 %v720
    %v1282 = vunpack.c.l.b16 %v721
    %v1283 = vunpack.c.h.b16 %v721
    %v1284 = vunpack.c.l.b16 %v722
    %v1285 = vunpack.c.h.b16 %v722
    %v1286 = vunpack.c.l.b16 %v723
    %v1287 = vunpack.c.h.b16 %v723
    %v1288 = vunpack.c.l.b16 %v724
    %v1289 = vunpack.c.h.b16 %v724
    %v1290 = vunpack.c.l.b16 %v725
    %v1291 = vunpack.c.h.b16 %v725
    %v1292 = vunpack.c.l.b16 %v726
    %v1293 = vunpack.c.h.b16 %v726
    %v1294 = vunpack.c.l.b16 %v727
    %v1295 = vunpack.c.h.b16 %v727
    %v1296 = vunpack.c.l.b16 %v728
    %v1297 = vunpack.c.h.b16 %v728
    %v1298 = vunpack.c.l.b16 %v729
    %v1299 = vunpack.c.h.b16 %v729
    %v1300 = vunpack.c.l.b16 %v730
    %v1301 = vunpack.c.h.b16 %v730
    %v1302 = vunpack.c.l.b16 %v731
    %v1303 = vunpack.c.h.b16 %v731
    %v1304 = vunpack.c.l.b16 %v732
    %v1305 = vunpack.c.h.b16 %v732
    %v1306 = vunpack.c.l.b16 %v733
    %v1307 = vunpack.c.h.b16 %v733
    %v1308 = vunpack.c.l.b16 %v734
    %v1309 = vunpack.c.h.b16 %v734
    %v1310 = vunpack.c.l.b16 %v735
    %v1311 = vunpack.c.h.b16 %v735
    %v1312 = vunpack.c.l.b16 %v736
    %v1313 = vunpack.c.h.b16 %v736
    %v1314 = vunpack.c.l.b16 %v737
    %v1315 = vunpack.c.h.b16 %v737
    %v1316 = vunpack.c.l.b16 %v738
    %v1317 = vunpack.c.h.b16 %v738
    %v1318 = vunpack.c.l.b16 %v739
    %v1319 = vunpack.c.h.b16 %v739
    %v1320 = vunpack.c.l.b16 %v740
    %v1321 = vunpack.c.h.b16 %v740
    %v1322 = vunpack.c.l.b16 %v741
    %v1323 = vunpack.c.h.b16 %v741
    %v1324 = vunpack.c.l.b16 %v742
    %v1325 = vunpack.c.h.b16 %v742
    %v1326 = vunpack.c.l.b16 %v743
    %v1327 = vunpack.c.h.b16 %v743
    %v1328 = vunpack.c.l.b16 %v744
    %v1329 = vunpack.c.h.b16 %v744
    %v1330 = vunpack.c.l.b16 %v745
    %v1331 = vunpack.c.h.b16 %v745
    %v1332 = vunpack.c.l.b16 %v746
    %v1333 = vunpack.c.h.b16 %v746
    %v1334 = vunpack.c.l.b16 %v747
    %v1335 = vunpack.c.h.b16 %v747
    %v1336 = vunpack.c.l.b16 %v748
    %v1337 = vunpack.c.h.b16 %v748
    %v1338 = vunpack.c.l.b16 %v749
    %v1339 = vunpack.c.h.b16 %v749
    %v1340 = vunpack.c.l.b16 %v750
    %v1341 = vunpack.c.h.b16 %v750
    %v1342 = vunpack.c.l.b16 %v751
    %v1343 = vunpack.c.h.b16 %v751
    %v1344 = vunpack.c.l.b16 %v752
    %v1345 = vunpack.c.h.b16 %v752
    %v1346 = vunpack.c.l.b16 %v753
    %v1347 = vunpack.c.h.b16 %v753
    %v1348 = vunpack.c.l.b16 %v754
    %v1349 = vunpack.c.h.b16 %v754
    %v1350 = vunpack.c.l.b16 %v755
    %v1351 = vunpack.c.h.b16 %v755
    %v1352 = vunpack.c.l.b16 %v756
    %v1353 = vunpack.c.h.b16 %v756
    %v1354 = vunpack.c.l.b16 %v757
    %v1355 = vunpack.c.h.b16 %v757
    %v1356 = vunpack.c.l.b16 %v758
    %v1357 = vunpack.c.h.b16 %v758
    %v1358 = vunpack.c.l.b16 %v759
    %v1359 = vunpack.c.h.b16 %v759
    %v1360 = vunpack.c.l.b16 %v760
    %v1361 = vunpack.c.h.b16 %v760
    %v1362 = vunpack.c.l.b16 %v761
    %v1363 = vunpack.c.h.b16 %v761
    %v1364 = vunpack.c.l.b16 %v762
    %v1365 = vunpack.c.h.b16 %v762
    %v1366 = vunpack.c.l.b16 %v763
    %v1367 = vunpack.c.h.b16 %v763
    %v1368 = vunpack.c.l.b16 %v764
    %v1369 = vunpack.c.h.b16 %v764
    %v1370 = vunpack.c.l.b16 %v765
    %v1371 = vunpack.c.h.b16 %v765
    %v1372 = vunpack.c.l.b16 %v766
    %v1373 = vunpack.c.h.b16 %v766
    %v1374 = vunpack.c.l.b16 %v767
    %v1375 = vunpack.c.h.b16 %v767
    %v1376 = vunpack.c.l.b16 %v768
    %v1377 = vunpack.c.h.b16 %v768
    %v1378 = vunpack.c.l.b16 %v769
    %v1379 = vunpack.c.h.b16 %v769
    %v1380 = vunpack.c.l.b16 %v770
    %v1381 = vunpack.c.h.b16 %v770
    %v1382 = vunpack.c.l.b16 %v771
    %v1383 = vunpack.c.h.b16 %v771
    %v1384 = vunpack.c.l.b16 %v772
    %v1385 = vunpack.c.h.b16 %v772
    %v1386 = vunpack.c.l.b16 %v773
    %v1387 = vunpack.c.h.b16 %v773
    %v1388 = vunpack.c.l.b16 %v774
    %v1389 = vunpack.c.h.b16 %v774
    %v1390 = vunpack.c.l.b16 %v775
    %v1391 = vunpack.c.h.b16 %v775
    %v1392 = vunpack.c.l.b16 %v776
    %v1393 = vunpack.c.h.b16 %v776
    %v1394 = vunpack.c.l.b16 %v777
    %v1395 = vunpack.c.h.b16 %v777
    %v1396 = vunpack.c.l.b16 %v778
    %v1397 = vunpack.c.h.b16 %v778
    %v1398 = vunpack.c.l.b16 %v779
    %v1399 = vunpack.c.h.b16 %v779
    %v1400 = vunpack.c.l.b16 %v780
    %v1401 = vunpack.c.h.b16 %v780
    %v1402 = vunpack.c.l.b16 %v781
    %v1403 = vunpack.c.h.b16 %v781
    %v1404 = vunpack.c.l.b16 %v782
    %v1405 = vunpack.c.h.b16 %v782
    %v1406 = vunpack.c.l.b16 %v783
    %v1407 = vunpack.c.h.b16 %v783
    %v1408 = vunpack.c.l.b16 %v784
    %v1409 = vunpack.c.h.b16 %v784
    %v1410 = vunpack.c.l.b16 %v785
    %v1411 = vunpack.c.h.b16 %v785
    %v1412 = vunpack.c.l.b16 %v786
    %v1413 = vunpack.c.h.b16 %v786
    %v1414 = vunpack.c.l.b16 %v787
    %v1415 = vunpack.c.h.b16 %v787
    %v1416 = vunpack.c.l.b16 %v788
    %v1417 = vunpack.c.h.b16 %v788
    %v1418 = vunpack.c.l.b16 %v789
    %v1419 = vunpack.c.h.b16 %v789
    %v1420 = vunpack.c.l.b16 %v790
    %v1421 = vunpack.c.h.b16 %v790
    %v1422 = vunpack.c.l.b16 %v791
    %v1423 = vunpack.c.h.b16 %v791
    %v1424 = vunpack.c.l.b16 %v792
    %v1425 = vunpack.c.h.b16 %v792
    %v1426 = vunpack.c.l.b16 %v793
    %v1427 = vunpack.c.h.b16 %v793
    %v1428 = vunpack.c.l.b16 %v794
    %v1429 = vunpack.c.h.b16 %v794
    %v1430 = vunpack.c.l.b16 %v795
    %v1431 = vunpack.c.h.b16 %v795
    %v1432 = vunpack.c.l.b16 %v796
    %v1433 = vunpack.c.h.b16 %v796
    %v1434 = vunpack.c.l.b16 %v797
    %v1435 = vunpack.c.h.b16 %v797
    %v1436 = vunpack.c.l.b16 %v798
    %v1437 = vunpack.c.h.b16 %v798
    %v1438 = vunpack.c.l.b16 %v799
    %v1439 = vunpack.c.h.b16 %v799
    %v1440 = vunpack.c.l.b16 %v800
    %v1441 = vunpack.c.h.b16 %v800
    %v1442 = vunpack.c.l.b16 %v801
    %v1443 = vunpack.c.h.b16 %v801
    %v1444 = vunpack.c.l.b16 %v802
    %v1445 = vunpack.c.h.b16 %v802
    %v1446 = vunpack.c.l.b16 %v803
    %v1447 = vunpack.c.h.b16 %v803
    %v1448 = vunpack.c.l.b16 %v804
    %v1449 = vunpack.c.h.b16 %v804
    %v1450 = vunpack.c.l.b16 %v805
    %v1451 = vunpack.c.h.b16 %v805
    %v1452 = vunpack.c.l.b16 %v806
    %v1453 = vunpack.c.h.b16 %v806
    %v1454 = vunpack.c.l.b16 %v807
    %v1455 = vunpack.c.h.b16 %v807
    %v1456 = vunpack.c.l.b16 %v808
    %v1457 = vunpack.c.h.b16 %v808
    %v1458 = vunpack.c.l.b16 %v809
    %v1459 = vunpack.c.h.b16 %v809
    %v1460 = vunpack.c.l.b16 %v810
    %v1461 = vunpack.c.h.b16 %v810
    %v1462 = vunpack.c.l.b16 %v811
    %v1463 = vunpack.c.h.b16 %v811
    %v1464 = vunpack.c.l.b16 %v812
    %v1465 = vunpack.c.h.b16 %v812
    %v1466 = vunpack.c.l.b16 %v813
    %v1467 = vunpack.c.h.b16 %v813
    %v1468 = vunpack.c.l.b16 %v814
    %v1469 = vunpack.c.h.b16 %v814
    %v1470 = vunpack.c.l.b16 %v815
    %v1471 = vunpack.c.h.b16 %v815
    %v1472 = vunpack.c.l.b16 %v816
    %v1473 = vunpack.c.h.b16 %v816
    %v1474 = vunpack.c.l.b16 %v817
    %v1475 = vunpack.c.h.b16 %v817
    %v1476 = vunpack.c.l.b16 %v818
    %v1477 = vunpack.c.h.b16 %v818
    %v1478 = vunpack.c.l.b16 %v819
    %v1479 = vunpack.c.h.b16 %v819
    %v1480 = vunpack.c.l.b16 %v820
    %v1481 = vunpack.c.h.b16 %v820
    %v1482 = vunpack.c.l.b16 %v821
    %v1483 = vunpack.c.h.b16 %v821
    %v1484 = vunpack.c.l.b16 %v822
    %v1485 = vunpack.c.h.b16 %v822
    %v1486 = vunpack.c.l.b16 %v823
    %v1487 = vunpack.c.h.b16 %v823
    %v1488 = vunpack.c.l.b16 %v824
    %v1489 = vunpack.c.h.b16 %v824
    %v1490 = vunpack.c.l.b16 %v825
    %v1491 = vunpack.c.h.b16 %v825
    %v1492 = vunpack.c.l.b16 %v826
    %v1493 = vunpack.c.h.b16 %v826
    %v1494 = vunpack.c.l.b16 %v827
    %v1495 = vunpack.c.h.b16 %v827
    %v1496 = vunpack.c.l.b16 %v828
    %v1497 = vunpack.c.h.b16 %v828
    %v1498 = vunpack.c.l.b16 %v829
    %v1499 = vunpack.c.h.b16 %v829
    %v1500 = vunpack.c.l.b16 %v830
    %v1501 = vunpack.c.h.b16 %v830
    %v1502 = vunpack.c.l.b16 %v831
    %v1503 = vunpack.c.h.b16 %v831
    %v1504 = vunpack.c.l.b16 %v832
    %v1505 = vunpack.c.h.b16 %v832
    %v1506 = vunpack.c.l.b16 %v833
    %v1507 = vunpack.c.h.b16 %v833
    %v1508 = vunpack.c.l.b16 %v834
    %v1509 = vunpack.c.h.b16 %v834
    %v1510 = vunpack.c.l.b16 %v835
    %v1511 = vunpack.c.h.b16 %v835
    %v1512 = vunpack.c.l.b16 %v836
    %v1513 = vunpack.c.h.b16 %v836
    %v1514 = vunpack.c.l.b16 %v837
    %v1515 = vunpack.c.h.b16 %v837
    %v1516 = vunpack.c.l.b16 %v838
    %v1517 = vunpack.c.h.b16 %v838
    %v1518 = vunpack.c.l.b16 %v839
    %v1519 = vunpack.c.h.b16 %v839
    %v1520 = vunpack.c.l.b16 %v840
    %v1521 = vunpack.c.h.b16 %v840
    %v1522 = vunpack.c.l.b16 %v841
    %v1523 = vunpack.c.h.b16 %v841
    %v1524 = vunpack.c.l.b16 %v842
    %v1525 = vunpack.c.h.b16 %v842
    %v1526 = vunpack.c.l.b16 %v843
    %v1527 = vunpack.c.h.b16 %v843
    %v1528 = vunpack.c.l.b16 %v844
    %v1529 = vunpack.c.h.b16 %v844
    %v1530 = vunpack.c.l.b16 %v845
    %v1531 = vunpack.c.h.b16 %v845
    %v1532 = vunpack.c.l.b16 %v846
    %v1533 = vunpack.c.h.b16 %v846
    %v1534 = vunpack.c.l.b16 %v847
    %v1535 = vunpack.c.h.b16 %v847
    %v1536 = vunpack.c.l.b16 %v848
    %v1537 = vunpack.c.h.b16 %v848
    %v1538 = vunpack.c.l.b16 %v849
    %v1539 = vunpack.c.h.b16 %v849
    %v1540 = vunpack.c.l.b16 %v850
    %v1541 = vunpack.c.h.b16 %v850
    %v1542 = vunpack.c.l.b16 %v851
    %v1543 = vunpack.c.h.b16 %v851
    %v1544 = vunpack.c.l.b16 %v852
    %v1545 = vunpack.c.h.b16 %v852
    %v1546 = vunpack.c.l.b16 %v853
    %v1547 = vunpack.c.h.b16 %v853
    %v1548 = vunpack.c.l.b16 %v854
    %v1549 = vunpack.c.h.b16 %v854
    %v1550 = vunpack.c.l.b16 %v855
    %v1551 = vunpack.c.h.b16 %v855
    %v1552 = vunpack.c.l.b16 %v856
    %v1553 = vunpack.c.h.b16 %v856
    %v1554 = vunpack.c.l.b16 %v857
    %v1555 = vunpack.c.h.b16 %v857
    %v1556 = vunpack.c.l.b16 %v858
    %v1557 = vunpack.c.h.b16 %v858
    %v1558 = vunpack.c.l.b16 %v859
    %v1559 = vunpack.c.h.b16 %v859
    %v1560 = vunpack.c.l.b16 %v860
    %v1561 = vunpack.c.h.b16 %v860
    %v1562 = vunpack.c.l.b16 %v861
    %v1563 = vunpack.c.h.b16 %v861
    %v1564 = vunpack.c.l.b16 %v862
    %v1565 = vunpack.c.h.b16 %v862
    %v1566 = vunpack.c.l.b16 %v863
    %v1567 = vunpack.c.h.b16 %v863
    %v1568 = vunpack.c.l.b16 %v864
    %v1569 = vunpack.c.h.b16 %v864
    %v1570 = vunpack.c.l.b16 %v865
    %v1571 = vunpack.c.h.b16 %v865
    %v1572 = vunpack.c.l.b16 %v866
    %v1573 = vunpack.c.h.b16 %v866
    %v1574 = vunpack.c.l.b16 %v867
    %v1575 = vunpack.c.h.b16 %v867
    %v1576 = vunpack.c.l.b16 %v868
    %v1577 = vunpack.c.h.b16 %v868
    %v1578 = vunpack.c.l.b16 %v869
    %v1579 = vunpack.c.h.b16 %v869
    %v1580 = vunpack.c.l.b16 %v870
    %v1581 = vunpack.c.h.b16 %v870
    %v1582 = vunpack.c.l.b16 %v871
    %v1583 = vunpack.c.h.b16 %v871
    %v1584 = vunpack.c.l.b16 %v872
    %v1585 = vunpack.c.h.b16 %v872
    %v1586 = vunpack.c.l.b16 %v873
    %v1587 = vunpack.c.h.b16 %v873
    %v1588 = vunpack.c.l.b16 %v874
    %v1589 = vunpack.c.h.b16 %v874
    %v1590 = vunpack.c.l.b16 %v875
    %v1591 = vunpack.c.h.b16 %v875
    %v1592 = vunpack.c.l.b16 %v876
    %v1593 = vunpack.c.h.b16 %v876
    %v1594 = vunpack.c.l.b16 %v877
    %v1595 = vunpack.c.h.b16 %v877
    %v1596 = vunpack.c.l.b16 %v878
    %v1597 = vunpack.c.h.b16 %v878
    %v1598 = vunpack.c.l.b16 %v879
    %v1599 = vunpack.c.h.b16 %v879
    %v1600 = vunpack.c.l.b16 %v880
    %v1601 = vunpack.c.h.b16 %v880
    %v1602 = vunpack.c.l.b16 %v881
    %v1603 = vunpack.c.h.b16 %v881
    %v1604 = vunpack.c.l.b16 %v882
    %v1605 = vunpack.c.h.b16 %v882
    %v1606 = vunpack.c.l.b16 %v883
    %v1607 = vunpack.c.h.b16 %v883
    %v1608 = vunpack.c.l.b16 %v884
    %v1609 = vunpack.c.h.b16 %v884
    %v1610 = vunpack.c.l.b16 %v885
    %v1611 = vunpack.c.h.b16 %v885
    %v1612 = vunpack.c.l.b16 %v886
    %v1613 = vunpack.c.h.b16 %v886
    %v1614 = vunpack.c.l.b16 %v887
    %v1615 = vunpack.c.h.b16 %v887
    %v1616 = vunpack.c.l.b16 %v888
    %v1617 = vunpack.c.h.b16 %v888
    %v1618 = vunpack.c.l.b16 %v889
    %v1619 = vunpack.c.h.b16 %v889
    %v1620 = vunpack.c.l.b16 %v890
    %v1621 = vunpack.c.h.b16 %v890
    %v1622 = vunpack.c.l.b16 %v891
    %v1623 = vunpack.c.h.b16 %v891
    %v1624 = vunpack.c.l.b16 %v892
    %v1625 = vunpack.c.h.b16 %v892
    %v1626 = vunpack.c.l.b16 %v893
    %v1627 = vunpack.c.h.b16 %v893
    %v1628 = vunpack.c.l.b16 %v894
    %v1629 = vunpack.c.h.b16 %v894
    %v1630 = vunpack.c.l.b16 %v895
    %v1631 = vunpack.c.h.b16 %v895
    %v1632 = vunpack.c.l.b16 %v896
    %v1633 = vunpack.c.h.b16 %v896
    %v1634 = vunpack.c.l.b16 %v897
    %v1635 = vunpack.c.h.b16 %v897
    %v1636 = vunpack.c.l.b16 %v898
    %v1637 = vunpack.c.h.b16 %v898
    %v1638 = vunpack.c.l.b16 %v899
    %v1639 = vunpack.c.h.b16 %v899
    %v1640 = vunpack.c.l.b16 %v900
    %v1641 = vunpack.c.h.b16 %v900
    %v1642 = vunpack.c.l.b16 %v901
    %v1643 = vunpack.c.h.b16 %v901
    %v1644 = vunpack.c.l.b16 %v902
    %v1645 = vunpack.c.h.b16 %v902
    %v1646 = vunpack.c.l.b16 %v903
    %v1647 = vunpack.c.h.b16 %v903
    %v1648 = vunpack.c.l.b16 %v904
    %v1649 = vunpack.c.h.b16 %v904
    %v1650 = vunpack.c.l.b16 %v905
    %v1651 = vunpack.c.h.b16 %v905
    %v1652 = vunpack.c.l.b16 %v906
    %v1653 = vunpack.c.h.b16 %v906
    %v1654 = vunpack.c.l.b16 %v907
    %v1655 = vunpack.c.h.b16 %v907
    %v1656 = vunpack.c.l.b16 %v908
    %v1657 = vunpack.c.h.b16 %v908
    %v1658 = vunpack.c.l.b16 %v909
    %v1659 = vunpack.c.h.b16 %v909
    %v1660 = vunpack.c.l.b16 %v910
    %v1661 = vunpack.c.h.b16 %v910
    %v1662 = vunpack.c.l.b16 %v911
    %v1663 = vunpack.c.h.b16 %v911
    %v1664 = vunpack.c.l.b16 %v912
    %v1665 = vunpack.c.h.b16 %v912
    %v1666 = vunpack.c.l.b16 %v913
    %v1667 = vunpack.c.h.b16 %v913
    %v1668 = vunpack.c.l.b16 %v914
    %v1669 = vunpack.c.h.b16 %v914
    %v1670 = vunpack.c.l.b16 %v915
    %v1671 = vunpack.c.h.b16 %v915
    %v1672 = vunpack.c.l.b16 %v916
    %v1673 = vunpack.c.h.b16 %v916
    %v1674 = vunpack.c.l.b16 %v917
    %v1675 = vunpack.c.h.b16 %v917
    %v1676 = vunpack.c.l.b16 %v918
    %v1677 = vunpack.c.h.b16 %v918
    %v1678 = vunpack.c.l.b16 %v919
    %v1679 = vunpack.c.h.b16 %v919
    %v1680 = vunpack.c.l.b16 %v920
    %v1681 = vunpack.c.h.b16 %v920
    %v1682 = vunpack.c.l.b16 %v921
    %v1683 = vunpack.c.h.b16 %v921
    %v1684 = vunpack.c.l.b16 %v922
    %v1685 = vunpack.c.h.b16 %v922
    %v1686 = vunpack.c.l.b16 %v923
    %v1687 = vunpack.c.h.b16 %v923
    %v1688 = vunpack.c.l.b16 %v924
    %v1689 = vunpack.c.h.b16 %v924
    %v1690 = vunpack.c.l.b16 %v925
    %v1691 = vunpack.c.h.b16 %v925
    %v1692 = vunpack.c.l.b16 %v926
    %v1693 = vunpack.c.h.b16 %v926
    %v1694 = vunpack.c.l.b16 %v927
    %v1695 = vunpack.c.h.b16 %v927
    %v1696 = vunpack.c.l.b16 %v928
    %v1697 = vunpack.c.h.b16 %v928
    %v1698 = vunpack.c.l.b16 %v929
    %v1699 = vunpack.c.h.b16 %v929
    %v1700 = vunpack.c.l.b16 %v930
    %v1701 = vunpack.c.h.b16 %v930
    %v1702 = vunpack.c.l.b16 %v931
    %v1703 = vunpack.c.h.b16 %v931
    %v1704 = vunpack.c.l.b16 %v932
    %v1705 = vunpack.c.h.b16 %v932
    %v1706 = vunpack.c.l.b16 %v933
    %v1707 = vunpack.c.h.b16 %v933
    %v1708 = vunpack.c.l.b16 %v934
    %v1709 = vunpack.c.h.b16 %v934
    %v1710 = vunpack.c.l.b16 %v935
    %v1711 = vunpack.c.h.b16 %v935
    %v1712 = vunpack.c.l.b16 %v936
    %v1713 = vunpack.c.h.b16 %v936
    %v1714 = vunpack.c.l.b16 %v937
    %v1715 = vunpack.c.h.b16 %v937
    %v1716 = vunpack.c.l.b16 %v938
    %v1717 = vunpack.c.h.b16 %v938
    %v1718 = vunpack.c.l.b16 %v939
    %v1719 = vunpack.c.h.b16 %v939
    %v1720 = vunpack.c.l.b16 %v940
    %v1721 = vunpack.c.h.b16 %v940
    %v1722 = vunpack.c.l.b16 %v941
    %v1723 = vunpack.c.h.b16 %v941
    %v1724 = vunpack.c.l.b16 %v942
    %v1725 = vunpack.c.h.b16 %v942
    %v1726 = vunpack.c.l.b16 %v943
    %v1727 = vunpack.c.h.b16 %v943
    %v1728 = vunpack.c.l.b16 %v944
    %v1729 = vunpack.c.h.b16 %v944
    %v1730 = vpack.c.b16 %v1226, %v1218
    %v1731 = vpack.c.b16 %v1227, %v1219
    %v1732 = vpack.c.b16 %v1228, %v1220
    %v1733 = vpack.c.b16 %v1229, %v1221
    %v1734 = vpack.c.b16 %v1230, %v1222
    %v1735 = vpack.c.b16 %v1231, %v1223
    %v1736 = vpack.c.b16 %v1232, %v1224
    %v1737 = vpack.c.b16 %v1233, %v1225
    %v1738 = vpack.c.b16 %v1242, %v1234
    %v1739 = vpack.c.b16 %v1243, %v1235
    %v1740 = vpack.c.b16 %v1244, %v1236
    %v1741 = vpack.c.b16 %v1245, %v1237
    %v1742 = vpack.c.b16 %v1246, %v1238
    %v1743 = vpack.c.b16 %v1247, %v1239
    %v1744 = vpack.c.b16 %v1248, %v1240
    %v1745 = vpack.c.b16 %v1249, %v1241
    %v1746 = vpack.c.b16 %v1258, %v1250
    %v1747 = vpack.c.b16 %v1259, %v1251
    %v1748 = vpack.c.b16 %v1260, %v1252
    %v1749 = vpack.c.b16 %v1261, %v1253
    %v1750 = vpack.c.b16 %v1262, %v1254
    %v1751 = vpack.c.b16 %v1263, %v1255
    %v1752 = vpack.c.b16 %v1264, %v1256
    %v1753 = vpack.c.b16 %v1265, %v1257
    %v1754 = vpack.c.b16 %v1274, %v1266
    %v1755 = vpack.c.b16 %v1275, %v1267
    %v1756 = vpack.c.b16 %v1276, %v1268
    %v1757 = vpack.c.b16 %v1277, %v1269
    %v1758 = vpack.c.b16 %v1278, %v1270
    %v1759 = vpack.c.b16 %v1279, %v1271
    %v1760 = vpack.c.b16 %v1280, %v1272
    %v1761 = vpack.c.b16 %v1281, %v1273
    %v1762 = vpack.c.b16 %v1290, %v1282
    %v1763 = vpack.c.b16 %v1291, %v1283
    %v1764 = vpack.c.b16 %v1292, %v1284
    %v1765 = vpack.c.b16 %v1293, %v1285
    %v1766 = vpack.c.b16 %v1294, %v1286
    %v1767 = vpack.c.b16 %v1295, %v1287
    %v1768 = vpack.c.b16 %v1296, %v1288
    %v1769 = vpack.c.b16 %v1297, %v1289
    %v1770 = vpack.c.b16 %v1306, %v1298
    %v1771 = vpack.c.b16 %v1307, %v1299
    %v1772 = vpack.c.b16 %v1308, %v1300
    %v1773 = vpack.c.b16 %v1309, %v1301
    %v1774 = vpack.c.b16 %v1310, %v1302
    %v1775 = vpack.c.b16 %v1311, %v1303
    %v1776 = vpack.c.b16 %v1312, %v1304
    %v1777 = vpack.c.b16 %v1313, %v1305
    %v1778 = vpack.c.b16 %v1322, %v1314
    %v1779 = vpack.c.b16 %v1323, %v1315
    %v1780 = vpack.c.b16 %v1324, %v1316
    %v1781 = vpack.c.b16 %v1325, %v1317
    %v1782 = vpack.c.b16 %v1326, %v1318
    %v1783 = vpack.c.b16 %v1327, %v1319
    %v1784 = vpack.c.b16 %v1328, %v1320
    %v1785 = vpack.c.b16 %v1329, %v1321
    %v1786 = vpack.c.b16 %v1338, %v1330
    %v1787 = vpack.c.b16 %v1339, %v1331
    %v1788 = vpack.c.b16 %v1340, %v1332
    %v1789 = vpack.c.b16 %v1341, %v1333
    %v1790 = vpack.c.b16 %v1342, %v1334
    %v1791 = vpack.c.b16 %v1343, %v1335
    %v1792 = vpack.c.b16 %v1344, %v1336
    %v1793 = vpack.c.b16 %v1345, %v1337
    %v1794 = vpack.c.b16 %v1354, %v1346
    %v1795 = vpack.c.b16 %v1355, %v1347
    %v1796 = vpack.c.b16 %v1356, %v1348
    %v1797 = vpack.c.b16 %v1357, %v1349
    %v1798 = vpack.c.b16 %v1358, %v1350
    %v1799 = vpack.c.b16 %v1359, %v1351
    %v1800 = vpack.c.b16 %v1360, %v1352
    %v1801 = vpack.c.b16 %v1361, %v1353
    %v1802 = vpack.c.b16 %v1370, %v1362
    %v1803 = vpack.c.b16 %v1371, %v1363
    %v1804 = vpack.c.b16 %v1372, %v1364
    %v1805 = vpack.c.b16 %v1373, %v1365
    %v1806 = vpack.c.b16 %v1374, %v1366
    %v1807 = vpack.c.b16 %v1375, %v1367
    %v1808 = vpack.c.b16 %v1376, %v1368
    %v1809 = vpack.c.b16 %v1377, %v1369
    %v1810 = vpack.c.b16 %v1386, %v1378
    %v1811 = vpack.c.b16 %v1387, %v1379
    %v1812 = vpack.c.b16 %v1388, %v1380
    %v1813 = vpack.c.b16 %v1389, %v1381
    %v1814 = vpack.c.b16 %v1390, %v1382
    %v1815 = vpack.c.b16 %v1391, %v1383
    %v1816 = vpack.c.b16 %v1392, %v1384
    %v1817 = vpack.c.b16 %v1393, %v1385
    %v1818 = vpack.c.b16 %v1402, %v1394
    %v1819 = vpack.c.b16 %v1403, %v1395
    %v1820 = vpack.c.b16 %v1404, %v1396
    %v1821 = vpack.c.b16 %v1405, %v1397
    %v1822 = vpack.c.b16 %v1406, %v1398
    %v1823 = vpack.c.b16 %v1407, %v1399
    %v1824 = vpack.c.b16 %v1408, %v1400
    %v1825 = vpack.c.b16 %v1409, %v1401
    %v1826 = vpack.c.b16 %v1418, %v1410
    %v1827 = vpack.c.b16 %v1419, %v1411
    %v1828 = vpack.c.b16 %v1420, %v1412
    %v1829 = vpack.c.b16 %v1421, %v1413
    %v1830 = vpack.c.b16 %v1422, %v1414
    %v1831 = vpack.c.b16 %v1423, %v1415
    %v1832 = vpack.c.b16 %v1424, %v1416
    %v1833 = vpack.c.b16 %v1425, %v1417
    %v1834 = vpack.c.b16 %v1434, %v1426
    %v1835 = vpack.c.b16 %v1435, %v1427
    %v1836 = vpack.c.b16 %v1436, %v1428
    %v1837 = vpack.c.b16 %v1437, %v1429
    %v1838 = vpack.c.b16 %v1438, %v1430
    %v1839 = vpack.c.b16 %v1439, %v1431
    %v1840 = vpack.c.b16 %v1440, %v1432
    %v1841 = vpack.c.b16 %v1441, %v1433
    %v1842 = vpack.c.b16 %v1450, %v1442
    %v1843 = vpack.c.b16 %v1451, %v1443
    %v1844 = vpack.c.b16 %v1452, %v1444
    %v1845 = vpack.c.b16 %v1453, %v1445
    %v1846 = vpack.c.b16 %v1454, %v1446
    %v1847 = vpack.c.b16 %v1455, %v1447
    %v1848 = vpack.c.b16 %v1456, %v1448
    %v1849 = vpack.c.b16 %v1457, %v1449
    %v1850 = vpack.c.b16 %v1466, %v1458
    %v1851 = vpack.c.b16 %v1467, %v1459
    %v1852 = vpack.c.b16 %v1468, %v1460
    %v1853 = vpack.c.b16 %v1469, %v1461
    %v1854 = vpack.c.b16 %v1470, %v1462
    %v1855 = vpack.c.b16 %v1471, %v1463
    %v1856 = vpack.c.b16 %v1472, %v1464
    %v1857 = vpack.c.b16 %v1473, %v1465
    %v1858 = vpack.c.b16 %v1482, %v1474
    %v1859 = vpack.c.b16 %v1483, %v1475
    %v1860 = vpack.c.b16 %v1484, %v1476
    %v1861 = vpack.c.b16 %v1485, %v1477
    %v1862 = vpack.c.b16 %v1486, %v1478
    %v1863 = vpack.c.b16 %v1487, %v1479
    %v1864 = vpack.c.b16 %v1488, %v1480
    %v1865 = vpack.c.b16 %v1489, %v1481
    %v1866 = vpack.c.b16 %v1498, %v1490
    %v1867 = vpack.c.b16 %v1499, %v1491
    %v1868 = vpack.c.b16 %v1500, %v1492
    %v1869 = vpack.c.b16 %v1501, %v1493
    %v1870 = vpack.c.b16 %v1502, %v1494
    %v1871 = vpack.c.b16 %v1503, %v1495
    %v1872 = vpack.c.b16 %v1504, %v1496
    %v1873 = vpack.c.b16 %v1505, %v1497
    %v1874 = vpack.c.b16 %v1514, %v1506
    %v1875 = vpack.c.b16 %v1515, %v1507
    %v1876 = vpack.c.b16 %v1516, %v1508
    %v1877 = vpack.c.b16 %v1517, %v1509
    %v1878 = vpack.c.b16 %v1518, %v1510
    %v1879 = vpack.c.b16 %v1519, %v1511
    %v1880 = vpack.c.b16 %v1520, %v1512
    %v1881 = vpack.c.b16 %v1521, %v1513
    %v1882 = vpack.c.b16 %v1530, %v1522
    %v1883 = vpack.c.b16 %v1531, %v1523
    %v1884 = vpack.c.b16 %v1532, %v1524
    %v1885 = vpack.c.b16 %v1533, %v1525
    %v1886 = vpack.c.b16 %v1534, %v1526
    %v1887 = vpack.c.b16 %v1535, %v1527
    %v1888 = vpack.c.b16 %v1536, %v1528
    %v1889 = vpack.c.b16 %v1537, %v1529
    %v1890 = vpack.c.b16 %v1546, %v1538
    %v1891 = vpack.c.b16 %v1547, %v1539
    %v1892 = vpack.c.b16 %v1548, %v1540
    %v1893 = vpack.c.b16 %v1549, %v1541
    %v1894 = vpack.c.b16 %v1550, %v1542
    %v1895 = vpack.c.b16 %v1551, %v1543
    %v1896 = vpack.c.b16 %v1552, %v1544
    %v1897 = vpack.c.b16 %v1553, %v1545
    %v1898 = vpack.c.b16 %v1562, %v1554
    %v1899 = vpack.c.b16 %v1563, %v1555
    %v1900 = vpack.c.b16 %v1564, %v1556
    %v1901 = vpack.c.b16 %v1565, %v1557
    %v1902 = vpack.c.b16 %v1566, %v1558
    %v1903 = vpack.c.b16 %v1567, %v1559
    %v1904 = vpack.c.b16 %v1568, %v1560
    %v1905 = vpack.c.b16 %v1569, %v1561
    %v1906 = vpack.c.b16 %v1578, %v1570
    %v1907 = vpack.c.b16 %v1579, %v1571
    %v1908 = vpack.c.b16 %v1580, %v1572
    %v1909 = vpack.c.b16 %v1581, %v1573
    %v1910 = vpack.c.b16 %v1582, %v1574
    %v1911 = vpack.c.b16 %v1583, %v1575
    %v1912 = vpack.c.b16 %v1584, %v1576
    %v1913 = vpack.c.b16 %v1585, %v1577
    %v1914 = vpack.c.b16 %v1594, %v1586
    %v1915 = vpack.c.b16 %v1595, %v1587
    %v1916 = vpack.c.b16 %v1596, %v1588
    %v1917 = vpack.c.b16 %v1597, %v1589
    %v1918 = vpack.c.b16 %v1598, %v1590
    %v1919 = vpack.c.b16 %v1599, %v1591
    %v1920 = vpack.c.b16 %v1600, %v1592
    %v1921 = vpack.c.b16 %v1601, %v1593
    %v1922 = vpack.c.b16 %v1610, %v1602
    %v1923 = vpack.c.b16 %v1611, %v1603
    %v1924 = vpack.c.b16 %v1612, %v1604
    %v1925 = vpack.c.b16 %v1613, %v1605
    %v1926 = vpack.c.b16 %v1614, %v1606
    %v1927 = vpack.c.b16 %v1615, %v1607
    %v1928 = vpack.c.b16 %v1616, %v1608
    %v1929 = vpack.c.b16 %v1617, %v1609
    %v1930 = vpack.c.b16 %v1626, %v1618
    %v1931 = vpack.c.b16 %v1627, %v1619
    %v1932 = vpack.c.b16 %v1628, %v1620
    %v1933 = vpack.c.b16 %v1629, %v1621
    %v1934 = vpack.c.b16 %v1630, %v1622
    %v1935 = vpack.c.b16 %v1631, %v1623
    %v1936 = vpack.c.b16 %v1632, %v1624
    %v1937 = vpack.c.b16 %v1633, %v1625
    %v1938 = vpack.c.b16 %v1642, %v1634
    %v1939 = vpack.c.b16 %v1643, %v1635
    %v1940 = vpack.c.b16 %v1644, %v1636
    %v1941 = vpack.c.b16 %v1645, %v1637
    %v1942 = vpack.c.b16 %v1646, %v1638
    %v1943 = vpack.c.b16 %v1647, %v1639
    %v1944 = vpack.c.b16 %v1648, %v1640
    %v1945 = vpack.c.b16 %v1649, %v1641
    %v1946 = vpack.c.b16 %v1658, %v1650
    %v1947 = vpack.c.b16 %v1659, %v1651
    %v1948 = vpack.c.b16 %v1660, %v1652
    %v1949 = vpack.c.b16 %v1661, %v1653
    %v1950 = vpack.c.b16 %v1662, %v1654
    %v1951 = vpack.c.b16 %v1663, %v1655
    %v1952 = vpack.c.b16 %v1664, %v1656
    %v1953 = vpack.c.b16 %v1665, %v1657
    %v1954 = vpack.c.b16 %v1674, %v1666
    %v1955 = vpack.c.b16 %v1675, %v1667
    %v1956 = vpack.c.b16 %v1676, %v1668
    %v1957 = vpack.c.b16 %v1677, %v1669
    %v1958 = vpack.c.b16 %v1678, %v1670
    %v1959 = vpack.c.b16 %v1679, %v1671
    %v1960 = vpack.c.b16 %v1680, %v1672
    %v1961 = vpack.c.b16 %v1681, %v1673
    %v1962 = vpack.c.b16 %v1690, %v1682
    %v1963 = vpack.c.b16 %v1691, %v1683
    %v1964 = vpack.c.b16 %v1692, %v1684
    %v1965 = vpack.c.b16 %v1693, %v1685
    %v1966 = vpack.c.b16 %v1694, %v1686
    %v1967 = vpack.c.b16 %v1695, %v1687
    %v1968 = vpack.c.b16 %v1696, %v1688
    %v1969 = vpack.c.b16 %v1697, %v1689
    %v1970 = vpack.c.b16 %v1706, %v1698
    %v1971 = vpack.c.b16 %v1707, %v1699
    %v1972 = vpack.c.b16 %v1708, %v1700
    %v1973 = vpack.c.b16 %v1709, %v1701
    %v1974 = vpack.c.b16 %v1710, %v1702
    %v1975 = vpack.c.b16 %v1711, %v1703
    %v1976 = vpack.c.b16 %v1712, %v1704
    %v1977 = vpack.c.b16 %v1713, %v1705
    %v1978 = vpack.c.b16 %v1722, %v1714
    %v1979 = vpack.c.b16 %v1723, %v1715
    %v1980 = vpack.c.b16 %v1724, %v1716
    %v1981 = vpack.c.b16 %v1725, %v1717
    %v1982 = vpack.c.b16 %v1726, %v1718
    %v1983 = vpack.c.b16 %v1727, %v1719
    %v1984 = vpack.c.b16 %v1728, %v1720
    %v1985 = vpack.c.b16 %v1729, %v1721
    %2242 = vmatpush.bf16.msra.mxu0 %v1786
    %2243 = vmatpush.bf16.msra.mxu0 %v1778
    %2244 = vmatpush.bf16.msra.mxu0 %v1770
    %2245 = vmatpush.bf16.msra.mxu0 %v1762
    %2246 = vmatpush.bf16.msra.mxu0 %v1754
    %2247 = vmatpush.bf16.msra.mxu0 %v1746
    %2248 = vmatpush.bf16.msra.mxu0 %v1738
    %2249 = vmatpush.bf16.msra.mxu0 %v1730
    %2250 = vmatmul.bf16.gmra.mxu0 %v685
    %v2251 = vpop.f32.mrf.mxu0
    %v2252 = vadd.f32 %v946, %v2251
    %v2253 = vpop.f32.mrf.mxu0
    %2254 = vdwg.mxu0
    %2255 = vmatpush.bf16.msra.mxu0 %v1850
    %2256 = vmatpush.bf16.msra.mxu0 %v1842
    %2257 = vmatpush.bf16.msra.mxu0 %v1834
    %2258 = vmatpush.bf16.msra.mxu0 %v1826
    %2259 = vmatpush.bf16.msra.mxu0 %v1818
    %2260 = vmatpush.bf16.msra.mxu0 %v1810
    %2261 = vmatpush.bf16.msra.mxu0 %v1802
    %2262 = vmatpush.bf16.msra.mxu0 %v1794
    %2263 = vmatmul.bf16.gmra.mxu0 %v686
    %v2264 = vpop.f32.mrf.mxu0
    %v2265 = vadd.f32 %v2252, %v2264
    %v2266 = vpop.f32.mrf.mxu0
    %2267 = vdwg.mxu0
    %2268 = vmatpush.bf16.msra.mxu0 %v1914
    %2269 = vmatpush.bf16.msra.mxu0 %v1906
    %2270 = vmatpush.bf16.msra.mxu0 %v1898
    %2271 = vmatpush.bf16.msra.mxu0 %v1890
    %2272 = vmatpush.bf16.msra.mxu0 %v1882
    %2273 = vmatpush.bf16.msra.mxu0 %v1874
    %2274 = vmatpush.bf16.msra.mxu0 %v1866
    %2275 = vmatpush.bf16.msra.mxu0 %v1858
    %2276 = vmatmul.bf16.gmra.mxu0 %v687
    %v2277 = vpop.f32.mrf.mxu0
    %v2278 = vadd.f32 %v2265, %v2277
    %v2279 = vpop.f32.mrf.mxu0
    %2280 = vdwg.mxu0
    %2281 = vmatpush.bf16.msra.mxu0 %v1978
    %2282 = vmatpush.bf16.msra.mxu0 %v1970
    %2283 = vmatpush.bf16.msra.mxu0 %v1962
    %2284 = vmatpush.bf16.msra.mxu0 %v1954
    %2285 = vmatpush.bf16.msra.mxu0 %v1946
    %2286 = vmatpush.bf16.msra.mxu0 %v1938
    %2287 = vmatpush.bf16.msra.mxu0 %v1930
    %2288 = vmatpush.bf16.msra.mxu0 %v1922
    %2289 = vmatmul.bf16.gmra.mxu0 %v688
    %v2290 = vpop.f32.mrf.mxu0
    %v2291 = vadd.f32 %v2278, %v2290
    %v2292 = vpop.f32.mrf.mxu0
    %2293 = vdwg.mxu0
    %2294 = vmatpush.bf16.msra.mxu0 %v1787
    %2295 = vmatpush.bf16.msra.mxu0 %v1779
    %2296 = vmatpush.bf16.msra.mxu0 %v1771
    %2297 = vmatpush.bf16.msra.mxu0 %v1763
    %2298 = vmatpush.bf16.msra.mxu0 %v1755
    %2299 = vmatpush.bf16.msra.mxu0 %v1747
    %2300 = vmatpush.bf16.msra.mxu0 %v1739
    %2301 = vmatpush.bf16.msra.mxu0 %v1731
    %2302 = vmatmul.bf16.gmra.mxu0 %v685
    %v2303 = vpop.f32.mrf.mxu0
    %v2304 = vadd.f32 %v947, %v2303
    %v2305 = vpop.f32.mrf.mxu0
    %2306 = vdwg.mxu0
    %2307 = vmatpush.bf16.msra.mxu0 %v1851
    %2308 = vmatpush.bf16.msra.mxu0 %v1843
    %2309 = vmatpush.bf16.msra.mxu0 %v1835
    %2310 = vmatpush.bf16.msra.mxu0 %v1827
    %2311 = vmatpush.bf16.msra.mxu0 %v1819
    %2312 = vmatpush.bf16.msra.mxu0 %v1811
    %2313 = vmatpush.bf16.msra.mxu0 %v1803
    %2314 = vmatpush.bf16.msra.mxu0 %v1795
    %2315 = vmatmul.bf16.gmra.mxu0 %v686
    %v2316 = vpop.f32.mrf.mxu0
    %v2317 = vadd.f32 %v2304, %v2316
    %v2318 = vpop.f32.mrf.mxu0
    %2319 = vdwg.mxu0
    %2320 = vmatpush.bf16.msra.mxu0 %v1915
    %2321 = vmatpush.bf16.msra.mxu0 %v1907
    %2322 = vmatpush.bf16.msra.mxu0 %v1899
    %2323 = vmatpush.bf16.msra.mxu0 %v1891
    %2324 = vmatpush.bf16.msra.mxu0 %v1883
    %2325 = vmatpush.bf16.msra.mxu0 %v1875
    %2326 = vmatpush.bf16.msra.mxu0 %v1867
    %2327 = vmatpush.bf16.msra.mxu0 %v1859
    %2328 = vmatmul.bf16.gmra.mxu0 %v687
    %v2329 = vpop.f32.mrf.mxu0
    %v2330 = vadd.f32 %v2317, %v2329
    %v2331 = vpop.f32.mrf.mxu0
    %2332 = vdwg.mxu0
    %2333 = vmatpush.bf16.msra.mxu0 %v1979
    %2334 = vmatpush.bf16.msra.mxu0 %v1971
    %2335 = vmatpush.bf16.msra.mxu0 %v1963
    %2336 = vmatpush.bf16.msra.mxu0 %v1955
    %2337 = vmatpush.bf16.msra.mxu0 %v1947
    %2338 = vmatpush.bf16.msra.mxu0 %v1939
    %2339 = vmatpush.bf16.msra.mxu0 %v1931
    %2340 = vmatpush.bf16.msra.mxu0 %v1923
    %2341 = vmatmul.bf16.gmra.mxu0 %v688
    %v2342 = vpop.f32.mrf.mxu0
    %v2343 = vadd.f32 %v2330, %v2342
    %v2344 = vpop.f32.mrf.mxu0
    %2345 = vdwg.mxu0
    %2346 = vmatpush.bf16.msra.mxu0 %v1788
    %2347 = vmatpush.bf16.msra.mxu0 %v1780
    %2348 = vmatpush.bf16.msra.mxu0 %v1772
    %2349 = vmatpush.bf16.msra.mxu0 %v1764
    %2350 = vmatpush.bf16.msra.mxu0 %v1756
    %2351 = vmatpush.bf16.msra.mxu0 %v1748
    %2352 = vmatpush.bf16.msra.mxu0 %v1740
    %2353 = vmatpush.bf16.msra.mxu0 %v1732
    %2354 = vmatmul.bf16.gmra.mxu0 %v685
    %v2355 = vpop.f32.mrf.mxu0
    %v2356 = vadd.f32 %v948, %v2355
    %v2357 = vpop.f32.mrf.mxu0
    %2358 = vdwg.mxu0
    %2359 = vmatpush.bf16.msra.mxu0 %v1852
    %2360 = vmatpush.bf16.msra.mxu0 %v1844
    %2361 = vmatpush.bf16.msra.mxu0 %v1836
    %2362 = vmatpush.bf16.msra.mxu0 %v1828
    %2363 = vmatpush.bf16.msra.mxu0 %v1820
    %2364 = vmatpush.bf16.msra.mxu0 %v1812
    %2365 = vmatpush.bf16.msra.mxu0 %v1804
    %2366 = vmatpush.bf16.msra.mxu0 %v1796
    %2367 = vmatmul.bf16.gmra.mxu0 %v686
    %v2368 = vpop.f32.mrf.mxu0
    %v2369 = vadd.f32 %v2356, %v2368
    %v2370 = vpop.f32.mrf.mxu0
    %2371 = vdwg.mxu0
    %2372 = vmatpush.bf16.msra.mxu0 %v1916
    %2373 = vmatpush.bf16.msra.mxu0 %v1908
    %2374 = vmatpush.bf16.msra.mxu0 %v1900
    %2375 = vmatpush.bf16.msra.mxu0 %v1892
    %2376 = vmatpush.bf16.msra.mxu0 %v1884
    %2377 = vmatpush.bf16.msra.mxu0 %v1876
    %2378 = vmatpush.bf16.msra.mxu0 %v1868
    %2379 = vmatpush.bf16.msra.mxu0 %v1860
    %2380 = vmatmul.bf16.gmra.mxu0 %v687
    %v2381 = vpop.f32.mrf.mxu0
    %v2382 = vadd.f32 %v2369, %v2381
    %v2383 = vpop.f32.mrf.mxu0
    %2384 = vdwg.mxu0
    %2385 = vmatpush.bf16.msra.mxu0 %v1980
    %2386 = vmatpush.bf16.msra.mxu0 %v1972
    %2387 = vmatpush.bf16.msra.mxu0 %v1964
    %2388 = vmatpush.bf16.msra.mxu0 %v1956
    %2389 = vmatpush.bf16.msra.mxu0 %v1948
    %2390 = vmatpush.bf16.msra.mxu0 %v1940
    %2391 = vmatpush.bf16.msra.mxu0 %v1932
    %2392 = vmatpush.bf16.msra.mxu0 %v1924
    %2393 = vmatmul.bf16.gmra.mxu0 %v688
    %v2394 = vpop.f32.mrf.mxu0
    %v2395 = vadd.f32 %v2382, %v2394
    %v2396 = vpop.f32.mrf.mxu0
    %2397 = vdwg.mxu0
    %2398 = vmatpush.bf16.msra.mxu0 %v1789
    %2399 = vmatpush.bf16.msra.mxu0 %v1781
    %2400 = vmatpush.bf16.msra.mxu0 %v1773
    %2401 = vmatpush.bf16.msra.mxu0 %v1765
    %2402 = vmatpush.bf16.msra.mxu0 %v1757
    %2403 = vmatpush.bf16.msra.mxu0 %v1749
    %2404 = vmatpush.bf16.msra.mxu0 %v1741
    %2405 = vmatpush.bf16.msra.mxu0 %v1733
    %2406 = vmatmul.bf16.gmra.mxu0 %v685
    %v2407 = vpop.f32.mrf.mxu0
    %v2408 = vadd.f32 %v949, %v2407
    %v2409 = vpop.f32.mrf.mxu0
    %2410 = vdwg.mxu0
    %2411 = vmatpush.bf16.msra.mxu0 %v1853
    %2412 = vmatpush.bf16.msra.mxu0 %v1845
    %2413 = vmatpush.bf16.msra.mxu0 %v1837
    %2414 = vmatpush.bf16.msra.mxu0 %v1829
    %2415 = vmatpush.bf16.msra.mxu0 %v1821
    %2416 = vmatpush.bf16.msra.mxu0 %v1813
    %2417 = vmatpush.bf16.msra.mxu0 %v1805
    %2418 = vmatpush.bf16.msra.mxu0 %v1797
    %2419 = vmatmul.bf16.gmra.mxu0 %v686
    %v2420 = vpop.f32.mrf.mxu0
    %v2421 = vadd.f32 %v2408, %v2420
    %v2422 = vpop.f32.mrf.mxu0
    %2423 = vdwg.mxu0
    %2424 = vmatpush.bf16.msra.mxu0 %v1917
    %2425 = vmatpush.bf16.msra.mxu0 %v1909
    %2426 = vmatpush.bf16.msra.mxu0 %v1901
    %2427 = vmatpush.bf16.msra.mxu0 %v1893
    %2428 = vmatpush.bf16.msra.mxu0 %v1885
    %2429 = vmatpush.bf16.msra.mxu0 %v1877
    %2430 = vmatpush.bf16.msra.mxu0 %v1869
    %2431 = vmatpush.bf16.msra.mxu0 %v1861
    %2432 = vmatmul.bf16.gmra.mxu0 %v687
    %v2433 = vpop.f32.mrf.mxu0
    %v2434 = vadd.f32 %v2421, %v2433
    %v2435 = vpop.f32.mrf.mxu0
    %2436 = vdwg.mxu0
    %2437 = vmatpush.bf16.msra.mxu0 %v1981
    %2438 = vmatpush.bf16.msra.mxu0 %v1973
    %2439 = vmatpush.bf16.msra.mxu0 %v1965
    %2440 = vmatpush.bf16.msra.mxu0 %v1957
    %2441 = vmatpush.bf16.msra.mxu0 %v1949
    %2442 = vmatpush.bf16.msra.mxu0 %v1941
    %2443 = vmatpush.bf16.msra.mxu0 %v1933
    %2444 = vmatpush.bf16.msra.mxu0 %v1925
    %2445 = vmatmul.bf16.gmra.mxu0 %v688
    %v2446 = vpop.f32.mrf.mxu0
    %v2447 = vadd.f32 %v2434, %v2446
    %v2448 = vpop.f32.mrf.mxu0
    %2449 = vdwg.mxu0
    %2450 = vmatpush.bf16.msra.mxu0 %v1790
    %2451 = vmatpush.bf16.msra.mxu0 %v1782
    %2452 = vmatpush.bf16.msra.mxu0 %v1774
    %2453 = vmatpush.bf16.msra.mxu0 %v1766
    %2454 = vmatpush.bf16.msra.mxu0 %v1758
    %2455 = vmatpush.bf16.msra.mxu0 %v1750
    %2456 = vmatpush.bf16.msra.mxu0 %v1742
    %2457 = vmatpush.bf16.msra.mxu0 %v1734
    %2458 = vmatmul.bf16.gmra.mxu0 %v685
    %v2459 = vpop.f32.mrf.mxu0
    %v2460 = vadd.f32 %v950, %v2459
    %v2461 = vpop.f32.mrf.mxu0
    %2462 = vdwg.mxu0
    %2463 = vmatpush.bf16.msra.mxu0 %v1854
    %2464 = vmatpush.bf16.msra.mxu0 %v1846
    %2465 = vmatpush.bf16.msra.mxu0 %v1838
    %2466 = vmatpush.bf16.msra.mxu0 %v1830
    %2467 = vmatpush.bf16.msra.mxu0 %v1822
    %2468 = vmatpush.bf16.msra.mxu0 %v1814
    %2469 = vmatpush.bf16.msra.mxu0 %v1806
    %2470 = vmatpush.bf16.msra.mxu0 %v1798
    %2471 = vmatmul.bf16.gmra.mxu0 %v686
    %v2472 = vpop.f32.mrf.mxu0
    %v2473 = vadd.f32 %v2460, %v2472
    %v2474 = vpop.f32.mrf.mxu0
    %2475 = vdwg.mxu0
    %2476 = vmatpush.bf16.msra.mxu0 %v1918
    %2477 = vmatpush.bf16.msra.mxu0 %v1910
    %2478 = vmatpush.bf16.msra.mxu0 %v1902
    %2479 = vmatpush.bf16.msra.mxu0 %v1894
    %2480 = vmatpush.bf16.msra.mxu0 %v1886
    %2481 = vmatpush.bf16.msra.mxu0 %v1878
    %2482 = vmatpush.bf16.msra.mxu0 %v1870
    %2483 = vmatpush.bf16.msra.mxu0 %v1862
    %2484 = vmatmul.bf16.gmra.mxu0 %v687
    %v2485 = vpop.f32.mrf.mxu0
    %v2486 = vadd.f32 %v2473, %v2485
    %v2487 = vpop.f32.mrf.mxu0
    %2488 = vdwg.mxu0
    %2489 = vmatpush.bf16.msra.mxu0 %v1982
    %2490 = vmatpush.bf16.msra.mxu0 %v1974
    %2491 = vmatpush.bf16.msra.mxu0 %v1966
    %2492 = vmatpush.bf16.msra.mxu0 %v1958
    %2493 = vmatpush.bf16.msra.mxu0 %v1950
    %2494 = vmatpush.bf16.msra.mxu0 %v1942
    %2495 = vmatpush.bf16.msra.mxu0 %v1934
    %2496 = vmatpush.bf16.msra.mxu0 %v1926
    %2497 = vmatmul.bf16.gmra.mxu0 %v688
    %v2498 = vpop.f32.mrf.mxu0
    %v2499 = vadd.f32 %v2486, %v2498
    %v2500 = vpop.f32.mrf.mxu0
    %2501 = vdwg.mxu0
    %2502 = vmatpush.bf16.msra.mxu0 %v1791
    %2503 = vmatpush.bf16.msra.mxu0 %v1783
    %2504 = vmatpush.bf16.msra.mxu0 %v1775
    %2505 = vmatpush.bf16.msra.mxu0 %v1767
    %2506 = vmatpush.bf16.msra.mxu0 %v1759
    %2507 = vmatpush.bf16.msra.mxu0 %v1751
    %2508 = vmatpush.bf16.msra.mxu0 %v1743
    %2509 = vmatpush.bf16.msra.mxu0 %v1735
    %2510 = vmatmul.bf16.gmra.mxu0 %v685
    %v2511 = vpop.f32.mrf.mxu0
    %v2512 = vadd.f32 %v951, %v2511
    %v2513 = vpop.f32.mrf.mxu0
    %2514 = vdwg.mxu0
    %2515 = vmatpush.bf16.msra.mxu0 %v1855
    %2516 = vmatpush.bf16.msra.mxu0 %v1847
    %2517 = vmatpush.bf16.msra.mxu0 %v1839
    %2518 = vmatpush.bf16.msra.mxu0 %v1831
    %2519 = vmatpush.bf16.msra.mxu0 %v1823
    %2520 = vmatpush.bf16.msra.mxu0 %v1815
    %2521 = vmatpush.bf16.msra.mxu0 %v1807
    %2522 = vmatpush.bf16.msra.mxu0 %v1799
    %2523 = vmatmul.bf16.gmra.mxu0 %v686
    %v2524 = vpop.f32.mrf.mxu0
    %v2525 = vadd.f32 %v2512, %v2524
    %v2526 = vpop.f32.mrf.mxu0
    %2527 = vdwg.mxu0
    %2528 = vmatpush.bf16.msra.mxu0 %v1919
    %2529 = vmatpush.bf16.msra.mxu0 %v1911
    %2530 = vmatpush.bf16.msra.mxu0 %v1903
    %2531 = vmatpush.bf16.msra.mxu0 %v1895
    %2532 = vmatpush.bf16.msra.mxu0 %v1887
    %2533 = vmatpush.bf16.msra.mxu0 %v1879
    %2534 = vmatpush.bf16.msra.mxu0 %v1871
    %2535 = vmatpush.bf16.msra.mxu0 %v1863
    %2536 = vmatmul.bf16.gmra.mxu0 %v687
    %v2537 = vpop.f32.mrf.mxu0
    %v2538 = vadd.f32 %v2525, %v2537
    %v2539 = vpop.f32.mrf.mxu0
    %2540 = vdwg.mxu0
    %2541 = vmatpush.bf16.msra.mxu0 %v1983
    %2542 = vmatpush.bf16.msra.mxu0 %v1975
    %2543 = vmatpush.bf16.msra.mxu0 %v1967
    %2544 = vmatpush.bf16.msra.mxu0 %v1959
    %2545 = vmatpush.bf16.msra.mxu0 %v1951
    %2546 = vmatpush.bf16.msra.mxu0 %v1943
    %2547 = vmatpush.bf16.msra.mxu0 %v1935
    %2548 = vmatpush.bf16.msra.mxu0 %v1927
    %2549 = vmatmul.bf16.gmra.mxu0 %v688
    %v2550 = vpop.f32.mrf.mxu0
    %v2551 = vadd.f32 %v2538, %v2550
    %v2552 = vpop.f32.mrf.mxu0
    %2553 = vdwg.mxu0
    %2554 = vmatpush.bf16.msra.mxu0 %v1792
    %2555 = vmatpush.bf16.msra.mxu0 %v1784
    %2556 = vmatpush.bf16.msra.mxu0 %v1776
    %2557 = vmatpush.bf16.msra.mxu0 %v1768
    %2558 = vmatpush.bf16.msra.mxu0 %v1760
    %2559 = vmatpush.bf16.msra.mxu0 %v1752
    %2560 = vmatpush.bf16.msra.mxu0 %v1744
    %2561 = vmatpush.bf16.msra.mxu0 %v1736
    %2562 = vmatmul.bf16.gmra.mxu0 %v685
    %v2563 = vpop.f32.mrf.mxu0
    %v2564 = vadd.f32 %v952, %v2563
    %v2565 = vpop.f32.mrf.mxu0
    %2566 = vdwg.mxu0
    %2567 = vmatpush.bf16.msra.mxu0 %v1856
    %2568 = vmatpush.bf16.msra.mxu0 %v1848
    %2569 = vmatpush.bf16.msra.mxu0 %v1840
    %2570 = vmatpush.bf16.msra.mxu0 %v1832
    %2571 = vmatpush.bf16.msra.mxu0 %v1824
    %2572 = vmatpush.bf16.msra.mxu0 %v1816
    %2573 = vmatpush.bf16.msra.mxu0 %v1808
    %2574 = vmatpush.bf16.msra.mxu0 %v1800
    %2575 = vmatmul.bf16.gmra.mxu0 %v686
    %v2576 = vpop.f32.mrf.mxu0
    %v2577 = vadd.f32 %v2564, %v2576
    %v2578 = vpop.f32.mrf.mxu0
    %2579 = vdwg.mxu0
    %2580 = vmatpush.bf16.msra.mxu0 %v1920
    %2581 = vmatpush.bf16.msra.mxu0 %v1912
    %2582 = vmatpush.bf16.msra.mxu0 %v1904
    %2583 = vmatpush.bf16.msra.mxu0 %v1896
    %2584 = vmatpush.bf16.msra.mxu0 %v1888
    %2585 = vmatpush.bf16.msra.mxu0 %v1880
    %2586 = vmatpush.bf16.msra.mxu0 %v1872
    %2587 = vmatpush.bf16.msra.mxu0 %v1864
    %2588 = vmatmul.bf16.gmra.mxu0 %v687
    %v2589 = vpop.f32.mrf.mxu0
    %v2590 = vadd.f32 %v2577, %v2589
    %v2591 = vpop.f32.mrf.mxu0
    %2592 = vdwg.mxu0
    %2593 = vmatpush.bf16.msra.mxu0 %v1984
    %2594 = vmatpush.bf16.msra.mxu0 %v1976
    %2595 = vmatpush.bf16.msra.mxu0 %v1968
    %2596 = vmatpush.bf16.msra.mxu0 %v1960
    %2597 = vmatpush.bf16.msra.mxu0 %v1952
    %2598 = vmatpush.bf16.msra.mxu0 %v1944
    %2599 = vmatpush.bf16.msra.mxu0 %v1936
    %2600 = vmatpush.bf16.msra.mxu0 %v1928
    %2601 = vmatmul.bf16.gmra.mxu0 %v688
    %v2602 = vpop.f32.mrf.mxu0
    %v2603 = vadd.f32 %v2590, %v2602
    %v2604 = vpop.f32.mrf.mxu0
    %2605 = vdwg.mxu0
    %2606 = vmatpush.bf16.msra.mxu0 %v1793
    %2607 = vmatpush.bf16.msra.mxu0 %v1785
    %2608 = vmatpush.bf16.msra.mxu0 %v1777
    %2609 = vmatpush.bf16.msra.mxu0 %v1769
    %2610 = vmatpush.bf16.msra.mxu0 %v1761
    %2611 = vmatpush.bf16.msra.mxu0 %v1753
    %2612 = vmatpush.bf16.msra.mxu0 %v1745
    %2613 = vmatpush.bf16.msra.mxu0 %v1737
    %2614 = vmatmul.bf16.gmra.mxu0 %v685
    %v2615 = vpop.f32.mrf.mxu0
    %v2616 = vadd.f32 %v953, %v2615
    %v2617 = vpop.f32.mrf.mxu0
    %2618 = vdwg.mxu0
    %2619 = vmatpush.bf16.msra.mxu0 %v1857
    %2620 = vmatpush.bf16.msra.mxu0 %v1849
    %2621 = vmatpush.bf16.msra.mxu0 %v1841
    %2622 = vmatpush.bf16.msra.mxu0 %v1833
    %2623 = vmatpush.bf16.msra.mxu0 %v1825
    %2624 = vmatpush.bf16.msra.mxu0 %v1817
    %2625 = vmatpush.bf16.msra.mxu0 %v1809
    %2626 = vmatpush.bf16.msra.mxu0 %v1801
    %2627 = vmatmul.bf16.gmra.mxu0 %v686
    %v2628 = vpop.f32.mrf.mxu0
    %v2629 = vadd.f32 %v2616, %v2628
    %v2630 = vpop.f32.mrf.mxu0
    %2631 = vdwg.mxu0
    %2632 = vmatpush.bf16.msra.mxu0 %v1921
    %2633 = vmatpush.bf16.msra.mxu0 %v1913
    %2634 = vmatpush.bf16.msra.mxu0 %v1905
    %2635 = vmatpush.bf16.msra.mxu0 %v1897
    %2636 = vmatpush.bf16.msra.mxu0 %v1889
    %2637 = vmatpush.bf16.msra.mxu0 %v1881
    %2638 = vmatpush.bf16.msra.mxu0 %v1873
    %2639 = vmatpush.bf16.msra.mxu0 %v1865
    %2640 = vmatmul.bf16.gmra.mxu0 %v687
    %v2641 = vpop.f32.mrf.mxu0
    %v2642 = vadd.f32 %v2629, %v2641
    %v2643 = vpop.f32.mrf.mxu0
    %2644 = vdwg.mxu0
    %2645 = vmatpush.bf16.msra.mxu0 %v1985
    %2646 = vmatpush.bf16.msra.mxu0 %v1977
    %2647 = vmatpush.bf16.msra.mxu0 %v1969
    %2648 = vmatpush.bf16.msra.mxu0 %v1961
    %2649 = vmatpush.bf16.msra.mxu0 %v1953
    %2650 = vmatpush.bf16.msra.mxu0 %v1945
    %2651 = vmatpush.bf16.msra.mxu0 %v1937
    %2652 = vmatpush.bf16.msra.mxu0 %v1929
    %2653 = vmatmul.bf16.gmra.mxu0 %v688
    %v2654 = vpop.f32.mrf.mxu0
    %v2655 = vadd.f32 %v2642, %v2654
    %v2656 = vpop.f32.mrf.mxu0
    %2657 = vdwg.mxu0
    %v2658 = vmax.f32 %v2291, 0.0
    %v2659 = vmax.f32 %v2343, 0.0
    %v2660 = vmax.f32 %v2395, 0.0
    %v2661 = vmax.f32 %v2447, 0.0
    %v2662 = vmax.f32 %v2499, 0.0
    %v2663 = vmax.f32 %v2551, 0.0
    %v2664 = vmax.f32 %v2603, 0.0
    %v2665 = vmax.f32 %v2655, 0.0
    %v2666 = vpack.c.bf16 %v2658, %v2658
    %v2667 = vpack.c.bf16 %v2659, %v2659
    %v2668 = vpack.c.bf16 %v2660, %v2660
    %v2669 = vpack.c.bf16 %v2661, %v2661
    %v2670 = vpack.c.bf16 %v2662, %v2662
    %v2671 = vpack.c.bf16 %v2663, %v2663
    %v2672 = vpack.c.bf16 %v2664, %v2664
    %v2673 = vpack.c.bf16 %v2665, %v2665
    %v2674 = vld [vmem:[#allocation10] sm:$0xf]
    %v2675 = vld [vmem:[#allocation10 + $0x4] sm:$0xf]
    %v2676 = vld [vmem:[#allocation10 + $0x8] sm:$0xf]
    %v2677 = vld [vmem:[#allocation10 + $0xc] sm:$0xf]
    %v2678 = vld [vmem:[#allocation10 + $0x10] sm:$0xf]
    %v2679 = vld [vmem:[#allocation10 + $0x14] sm:$0xf]
    %v2680 = vld [vmem:[#allocation10 + $0x18] sm:$0xf]
    %v2681 = vld [vmem:[#allocation10 + $0x1c] sm:$0xf]
    %v2682 = vld [vmem:[#allocation10 + $0x20] sm:$0xf]
    %v2683 = vld [vmem:[#allocation10 + $0x24] sm:$0xf]
    %v2684 = vld [vmem:[#allocation10 + $0x28] sm:$0xf]
    %v2685 = vld [vmem:[#allocation10 + $0x2c] sm:$0xf]
    %v2686 = vld [vmem:[#allocation10 + $0x30] sm:$0xf]
    %v2687 = vld [vmem:[#allocation10 + $0x34] sm:$0xf]
    %v2688 = vld [vmem:[#allocation10 + $0x38] sm:$0xf]
    %v2689 = vld [vmem:[#allocation10 + $0x3c] sm:$0xf]
    %v2690 = vld [vmem:[#allocation10 + $0x40] sm:$0xf]
    %v2691 = vld [vmem:[#allocation10 + $0x44] sm:$0xf]
    %v2692 = vld [vmem:[#allocation10 + $0x48] sm:$0xf]
    %v2693 = vld [vmem:[#allocation10 + $0x4c] sm:$0xf]
    %v2694 = vld [vmem:[#allocation10 + $0x50] sm:$0xf]
    %v2695 = vld [vmem:[#allocation10 + $0x54] sm:$0xf]
    %v2696 = vld [vmem:[#allocation10 + $0x58] sm:$0xf]
    %v2697 = vld [vmem:[#allocation10 + $0x5c] sm:$0xf]
    %v2698 = vld [vmem:[#allocation10 + $0x60] sm:$0xf]
    %v2699 = vld [vmem:[#allocation10 + $0x64] sm:$0xf]
    %v2700 = vld [vmem:[#allocation10 + $0x68] sm:$0xf]
    %v2701 = vld [vmem:[#allocation10 + $0x6c] sm:$0xf]
    %v2702 = vld [vmem:[#allocation10 + $0x70] sm:$0xf]
    %v2703 = vld [vmem:[#allocation10 + $0x74] sm:$0xf]
    %v2704 = vld [vmem:[#allocation10 + $0x78] sm:$0xf]
    %v2705 = vld [vmem:[#allocation10 + $0x7c] sm:$0xf]
    %v2706 = vld [vmem:[#allocation10 + $0x80] sm:$0xf]
    %v2707 = vld [vmem:[#allocation10 + $0x84] sm:$0xf]
    %v2708 = vld [vmem:[#allocation10 + $0x88] sm:$0xf]
    %v2709 = vld [vmem:[#allocation10 + $0x8c] sm:$0xf]
    %v2710 = vld [vmem:[#allocation10 + $0x90] sm:$0xf]
    %v2711 = vld [vmem:[#allocation10 + $0x94] sm:$0xf]
    %v2712 = vld [vmem:[#allocation10 + $0x98] sm:$0xf]
    %v2713 = vld [vmem:[#allocation10 + $0x9c] sm:$0xf]
    %v2714 = vld [vmem:[#allocation10 + $0xa0] sm:$0xf]
    %v2715 = vld [vmem:[#allocation10 + $0xa4] sm:$0xf]
    %v2716 = vld [vmem:[#allocation10 + $0xa8] sm:$0xf]
    %v2717 = vld [vmem:[#allocation10 + $0xac] sm:$0xf]
    %v2718 = vld [vmem:[#allocation10 + $0xb0] sm:$0xf]
    %v2719 = vld [vmem:[#allocation10 + $0xb4] sm:$0xf]
    %v2720 = vld [vmem:[#allocation10 + $0xb8] sm:$0xf]
    %v2721 = vld [vmem:[#allocation10 + $0xbc] sm:$0xf]
    %v2722 = vld [vmem:[#allocation10 + $0xc0] sm:$0xf]
    %v2723 = vld [vmem:[#allocation10 + $0xc4] sm:$0xf]
    %v2724 = vld [vmem:[#allocation10 + $0xc8] sm:$0xf]
    %v2725 = vld [vmem:[#allocation10 + $0xcc] sm:$0xf]
    %v2726 = vld [vmem:[#allocation10 + $0xd0] sm:$0xf]
    %v2727 = vld [vmem:[#allocation10 + $0xd4] sm:$0xf]
    %v2728 = vld [vmem:[#allocation10 + $0xd8] sm:$0xf]
    %v2729 = vld [vmem:[#allocation10 + $0xdc] sm:$0xf]
    %v2730 = vld [vmem:[#allocation10 + $0xe0] sm:$0xf]
    %v2731 = vld [vmem:[#allocation10 + $0xe4] sm:$0xf]
    %v2732 = vld [vmem:[#allocation10 + $0xe8] sm:$0xf]
    %v2733 = vld [vmem:[#allocation10 + $0xec] sm:$0xf]
    %v2734 = vld [vmem:[#allocation10 + $0xf0] sm:$0xf]
    %v2735 = vld [vmem:[#allocation10 + $0xf4] sm:$0xf]
    %v2736 = vld [vmem:[#allocation10 + $0xf8] sm:$0xf]
    %v2737 = vld [vmem:[#allocation10 + $0xfc] sm:$0xf]
    %v2738 = vld [vmem:[#allocation10 + $0x100] sm:$0xf]
    %v2739 = vld [vmem:[#allocation10 + $0x104] sm:$0xf]
    %v2740 = vld [vmem:[#allocation10 + $0x108] sm:$0xf]
    %v2741 = vld [vmem:[#allocation10 + $0x10c] sm:$0xf]
    %v2742 = vld [vmem:[#allocation10 + $0x110] sm:$0xf]
    %v2743 = vld [vmem:[#allocation10 + $0x114] sm:$0xf]
    %v2744 = vld [vmem:[#allocation10 + $0x118] sm:$0xf]
    %v2745 = vld [vmem:[#allocation10 + $0x11c] sm:$0xf]
    %v2746 = vld [vmem:[#allocation10 + $0x120] sm:$0xf]
    %v2747 = vld [vmem:[#allocation10 + $0x124] sm:$0xf]
    %v2748 = vld [vmem:[#allocation10 + $0x128] sm:$0xf]
    %v2749 = vld [vmem:[#allocation10 + $0x12c] sm:$0xf]
    %v2750 = vld [vmem:[#allocation10 + $0x130] sm:$0xf]
    %v2751 = vld [vmem:[#allocation10 + $0x134] sm:$0xf]
    %v2752 = vld [vmem:[#allocation10 + $0x138] sm:$0xf]
    %v2753 = vld [vmem:[#allocation10 + $0x13c] sm:$0xf]
    %v2754 = vld [vmem:[#allocation10 + $0x140] sm:$0xf]
    %v2755 = vld [vmem:[#allocation10 + $0x144] sm:$0xf]
    %v2756 = vld [vmem:[#allocation10 + $0x148] sm:$0xf]
    %v2757 = vld [vmem:[#allocation10 + $0x14c] sm:$0xf]
    %v2758 = vld [vmem:[#allocation10 + $0x150] sm:$0xf]
    %v2759 = vld [vmem:[#allocation10 + $0x154] sm:$0xf]
    %v2760 = vld [vmem:[#allocation10 + $0x158] sm:$0xf]
    %v2761 = vld [vmem:[#allocation10 + $0x15c] sm:$0xf]
    %v2762 = vld [vmem:[#allocation10 + $0x160] sm:$0xf]
    %v2763 = vld [vmem:[#allocation10 + $0x164] sm:$0xf]
    %v2764 = vld [vmem:[#allocation10 + $0x168] sm:$0xf]
    %v2765 = vld [vmem:[#allocation10 + $0x16c] sm:$0xf]
    %v2766 = vld [vmem:[#allocation10 + $0x170] sm:$0xf]
    %v2767 = vld [vmem:[#allocation10 + $0x174] sm:$0xf]
    %v2768 = vld [vmem:[#allocation10 + $0x178] sm:$0xf]
    %v2769 = vld [vmem:[#allocation10 + $0x17c] sm:$0xf]
    %v2770 = vld [vmem:[#allocation10 + $0x180] sm:$0xf]
    %v2771 = vld [vmem:[#allocation10 + $0x184] sm:$0xf]
    %v2772 = vld [vmem:[#allocation10 + $0x188] sm:$0xf]
    %v2773 = vld [vmem:[#allocation10 + $0x18c] sm:$0xf]
    %v2774 = vld [vmem:[#allocation10 + $0x190] sm:$0xf]
    %v2775 = vld [vmem:[#allocation10 + $0x194] sm:$0xf]
    %v2776 = vld [vmem:[#allocation10 + $0x198] sm:$0xf]
    %v2777 = vld [vmem:[#allocation10 + $0x19c] sm:$0xf]
    %v2778 = vld [vmem:[#allocation10 + $0x1a0] sm:$0xf]
    %v2779 = vld [vmem:[#allocation10 + $0x1a4] sm:$0xf]
    %v2780 = vld [vmem:[#allocation10 + $0x1a8] sm:$0xf]
    %v2781 = vld [vmem:[#allocation10 + $0x1ac] sm:$0xf]
    %v2782 = vld [vmem:[#allocation10 + $0x1b0] sm:$0xf]
    %v2783 = vld [vmem:[#allocation10 + $0x1b4] sm:$0xf]
    %v2784 = vld [vmem:[#allocation10 + $0x1b8] sm:$0xf]
    %v2785 = vld [vmem:[#allocation10 + $0x1bc] sm:$0xf]
    %v2786 = vld [vmem:[#allocation10 + $0x1c0] sm:$0xf]
    %v2787 = vld [vmem:[#allocation10 + $0x1c4] sm:$0xf]
    %v2788 = vld [vmem:[#allocation10 + $0x1c8] sm:$0xf]
    %v2789 = vld [vmem:[#allocation10 + $0x1cc] sm:$0xf]
    %v2790 = vld [vmem:[#allocation10 + $0x1d0] sm:$0xf]
    %v2791 = vld [vmem:[#allocation10 + $0x1d4] sm:$0xf]
    %v2792 = vld [vmem:[#allocation10 + $0x1d8] sm:$0xf]
    %v2793 = vld [vmem:[#allocation10 + $0x1dc] sm:$0xf]
    %v2794 = vld [vmem:[#allocation10 + $0x1e0] sm:$0xf]
    %v2795 = vld [vmem:[#allocation10 + $0x1e4] sm:$0xf]
    %v2796 = vld [vmem:[#allocation10 + $0x1e8] sm:$0xf]
    %v2797 = vld [vmem:[#allocation10 + $0x1ec] sm:$0xf]
    %v2798 = vld [vmem:[#allocation10 + $0x1f0] sm:$0xf]
    %v2799 = vld [vmem:[#allocation10 + $0x1f4] sm:$0xf]
    %v2800 = vld [vmem:[#allocation10 + $0x1f8] sm:$0xf]
    %v2801 = vld [vmem:[#allocation10 + $0x1fc] sm:$0xf]
    %v2803 = vperm.slane %v118, 0
    %v2933 = vunpack.c.l.b16 %v2674
    %v2934 = vunpack.c.l.b16 %v2675
    %v2935 = vunpack.c.l.b16 %v2676
    %v2936 = vunpack.c.l.b16 %v2677
    %v2937 = vunpack.c.l.b16 %v2678
    %v2938 = vunpack.c.l.b16 %v2679
    %v2939 = vunpack.c.l.b16 %v2680
    %v2940 = vunpack.c.l.b16 %v2681
    %v2941 = vunpack.c.l.b16 %v2682
    %v2942 = vunpack.c.l.b16 %v2683
    %v2943 = vunpack.c.l.b16 %v2684
    %v2944 = vunpack.c.l.b16 %v2685
    %v2945 = vunpack.c.l.b16 %v2686
    %v2946 = vunpack.c.l.b16 %v2687
    %v2947 = vunpack.c.l.b16 %v2688
    %v2948 = vunpack.c.l.b16 %v2689
    %v2949 = vunpack.c.l.b16 %v2690
    %v2950 = vunpack.c.l.b16 %v2691
    %v2951 = vunpack.c.l.b16 %v2692
    %v2952 = vunpack.c.l.b16 %v2693
    %v2953 = vunpack.c.l.b16 %v2694
    %v2954 = vunpack.c.l.b16 %v2695
    %v2955 = vunpack.c.l.b16 %v2696
    %v2956 = vunpack.c.l.b16 %v2697
    %v2957 = vunpack.c.l.b16 %v2698
    %v2958 = vunpack.c.l.b16 %v2699
    %v2959 = vunpack.c.l.b16 %v2700
    %v2960 = vunpack.c.l.b16 %v2701
    %v2961 = vunpack.c.l.b16 %v2702
    %v2962 = vunpack.c.l.b16 %v2703
    %v2963 = vunpack.c.l.b16 %v2704
    %v2964 = vunpack.c.l.b16 %v2705
    %v2965 = vunpack.c.l.b16 %v2706
    %v2966 = vunpack.c.l.b16 %v2707
    %v2967 = vunpack.c.l.b16 %v2708
    %v2968 = vunpack.c.l.b16 %v2709
    %v2969 = vunpack.c.l.b16 %v2710
    %v2970 = vunpack.c.l.b16 %v2711
    %v2971 = vunpack.c.l.b16 %v2712
    %v2972 = vunpack.c.l.b16 %v2713
    %v2973 = vunpack.c.l.b16 %v2714
    %v2974 = vunpack.c.l.b16 %v2715
    %v2975 = vunpack.c.l.b16 %v2716
    %v2976 = vunpack.c.l.b16 %v2717
    %v2977 = vunpack.c.l.b16 %v2718
    %v2978 = vunpack.c.l.b16 %v2719
    %v2979 = vunpack.c.l.b16 %v2720
    %v2980 = vunpack.c.l.b16 %v2721
    %v2981 = vunpack.c.l.b16 %v2722
    %v2982 = vunpack.c.l.b16 %v2723
    %v2983 = vunpack.c.l.b16 %v2724
    %v2984 = vunpack.c.l.b16 %v2725
    %v2985 = vunpack.c.l.b16 %v2726
    %v2986 = vunpack.c.l.b16 %v2727
    %v2987 = vunpack.c.l.b16 %v2728
    %v2988 = vunpack.c.l.b16 %v2729
    %v2989 = vunpack.c.l.b16 %v2730
    %v2990 = vunpack.c.l.b16 %v2731
    %v2991 = vunpack.c.l.b16 %v2732
    %v2992 = vunpack.c.l.b16 %v2733
    %v2993 = vunpack.c.l.b16 %v2734
    %v2994 = vunpack.c.l.b16 %v2735
    %v2995 = vunpack.c.l.b16 %v2736
    %v2996 = vunpack.c.l.b16 %v2737
    %v2997 = vunpack.c.l.b16 %v2738
    %v2998 = vunpack.c.l.b16 %v2739
    %v2999 = vunpack.c.l.b16 %v2740
    %v3000 = vunpack.c.l.b16 %v2741
    %v3001 = vunpack.c.l.b16 %v2742
    %v3002 = vunpack.c.l.b16 %v2743
    %v3003 = vunpack.c.l.b16 %v2744
    %v3004 = vunpack.c.l.b16 %v2745
    %v3005 = vunpack.c.l.b16 %v2746
    %v3006 = vunpack.c.l.b16 %v2747
    %v3007 = vunpack.c.l.b16 %v2748
    %v3008 = vunpack.c.l.b16 %v2749
    %v3009 = vunpack.c.l.b16 %v2750
    %v3010 = vunpack.c.l.b16 %v2751
    %v3011 = vunpack.c.l.b16 %v2752
    %v3012 = vunpack.c.l.b16 %v2753
    %v3013 = vunpack.c.l.b16 %v2754
    %v3014 = vunpack.c.l.b16 %v2755
    %v3015 = vunpack.c.l.b16 %v2756
    %v3016 = vunpack.c.l.b16 %v2757
    %v3017 = vunpack.c.l.b16 %v2758
    %v3018 = vunpack.c.l.b16 %v2759
    %v3019 = vunpack.c.l.b16 %v2760
    %v3020 = vunpack.c.l.b16 %v2761
    %v3021 = vunpack.c.l.b16 %v2762
    %v3022 = vunpack.c.l.b16 %v2763
    %v3023 = vunpack.c.l.b16 %v2764
    %v3024 = vunpack.c.l.b16 %v2765
    %v3025 = vunpack.c.l.b16 %v2766
    %v3026 = vunpack.c.l.b16 %v2767
    %v3027 = vunpack.c.l.b16 %v2768
    %v3028 = vunpack.c.l.b16 %v2769
    %v3029 = vunpack.c.l.b16 %v2770
    %v3030 = vunpack.c.l.b16 %v2771
    %v3031 = vunpack.c.l.b16 %v2772
    %v3032 = vunpack.c.l.b16 %v2773
    %v3033 = vunpack.c.l.b16 %v2774
    %v3034 = vunpack.c.l.b16 %v2775
    %v3035 = vunpack.c.l.b16 %v2776
    %v3036 = vunpack.c.l.b16 %v2777
    %v3037 = vunpack.c.l.b16 %v2778
    %v3038 = vunpack.c.l.b16 %v2779
    %v3039 = vunpack.c.l.b16 %v2780
    %v3040 = vunpack.c.l.b16 %v2781
    %v3041 = vunpack.c.l.b16 %v2782
    %v3042 = vunpack.c.l.b16 %v2783
    %v3043 = vunpack.c.l.b16 %v2784
    %v3044 = vunpack.c.l.b16 %v2785
    %v3045 = vunpack.c.l.b16 %v2786
    %v3046 = vunpack.c.l.b16 %v2787
    %v3047 = vunpack.c.l.b16 %v2788
    %v3048 = vunpack.c.l.b16 %v2789
    %v3049 = vunpack.c.l.b16 %v2790
    %v3050 = vunpack.c.l.b16 %v2791
    %v3051 = vunpack.c.l.b16 %v2792
    %v3052 = vunpack.c.l.b16 %v2793
    %v3053 = vunpack.c.l.b16 %v2794
    %v3054 = vunpack.c.l.b16 %v2795
    %v3055 = vunpack.c.l.b16 %v2796
    %v3056 = vunpack.c.l.b16 %v2797
    %v3057 = vunpack.c.l.b16 %v2798
    %v3058 = vunpack.c.l.b16 %v2799
    %v3059 = vunpack.c.l.b16 %v2800
    %v3060 = vunpack.c.l.b16 %v2801
    %v3061 = vpack.c.b16 %v2934, %v2933
    %v3062 = vpack.c.b16 %v2936, %v2935
    %v3063 = vpack.c.b16 %v2938, %v2937
    %v3064 = vpack.c.b16 %v2940, %v2939
    %v3065 = vpack.c.b16 %v2942, %v2941
    %v3066 = vpack.c.b16 %v2944, %v2943
    %v3067 = vpack.c.b16 %v2946, %v2945
    %v3068 = vpack.c.b16 %v2948, %v2947
    %v3069 = vpack.c.b16 %v2950, %v2949
    %v3070 = vpack.c.b16 %v2952, %v2951
    %v3071 = vpack.c.b16 %v2954, %v2953
    %v3072 = vpack.c.b16 %v2956, %v2955
    %v3073 = vpack.c.b16 %v2958, %v2957
    %v3074 = vpack.c.b16 %v2960, %v2959
    %v3075 = vpack.c.b16 %v2962, %v2961
    %v3076 = vpack.c.b16 %v2964, %v2963
    %v3077 = vpack.c.b16 %v2966, %v2965
    %v3078 = vpack.c.b16 %v2968, %v2967
    %v3079 = vpack.c.b16 %v2970, %v2969
    %v3080 = vpack.c.b16 %v2972, %v2971
    %v3081 = vpack.c.b16 %v2974, %v2973
    %v3082 = vpack.c.b16 %v2976, %v2975
    %v3083 = vpack.c.b16 %v2978, %v2977
    %v3084 = vpack.c.b16 %v2980, %v2979
    %v3085 = vpack.c.b16 %v2982, %v2981
    %v3086 = vpack.c.b16 %v2984, %v2983
    %v3087 = vpack.c.b16 %v2986, %v2985
    %v3088 = vpack.c.b16 %v2988, %v2987
    %v3089 = vpack.c.b16 %v2990, %v2989
    %v3090 = vpack.c.b16 %v2992, %v2991
    %v3091 = vpack.c.b16 %v2994, %v2993
    %v3092 = vpack.c.b16 %v2996, %v2995
    %v3093 = vpack.c.b16 %v2998, %v2997
    %v3094 = vpack.c.b16 %v3000, %v2999
    %v3095 = vpack.c.b16 %v3002, %v3001
    %v3096 = vpack.c.b16 %v3004, %v3003
    %v3097 = vpack.c.b16 %v3006, %v3005
    %v3098 = vpack.c.b16 %v3008, %v3007
    %v3099 = vpack.c.b16 %v3010, %v3009
    %v3100 = vpack.c.b16 %v3012, %v3011
    %v3101 = vpack.c.b16 %v3014, %v3013
    %v3102 = vpack.c.b16 %v3016, %v3015
    %v3103 = vpack.c.b16 %v3018, %v3017
    %v3104 = vpack.c.b16 %v3020, %v3019
    %v3105 = vpack.c.b16 %v3022, %v3021
    %v3106 = vpack.c.b16 %v3024, %v3023
    %v3107 = vpack.c.b16 %v3026, %v3025
    %v3108 = vpack.c.b16 %v3028, %v3027
    %v3109 = vpack.c.b16 %v3030, %v3029
    %v3110 = vpack.c.b16 %v3032, %v3031
    %v3111 = vpack.c.b16 %v3034, %v3033
    %v3112 = vpack.c.b16 %v3036, %v3035
    %v3113 = vpack.c.b16 %v3038, %v3037
    %v3114 = vpack.c.b16 %v3040, %v3039
    %v3115 = vpack.c.b16 %v3042, %v3041
    %v3116 = vpack.c.b16 %v3044, %v3043
    %v3117 = vpack.c.b16 %v3046, %v3045
    %v3118 = vpack.c.b16 %v3048, %v3047
    %v3119 = vpack.c.b16 %v3050, %v3049
    %v3120 = vpack.c.b16 %v3052, %v3051
    %v3121 = vpack.c.b16 %v3054, %v3053
    %v3122 = vpack.c.b16 %v3056, %v3055
    %v3123 = vpack.c.b16 %v3058, %v3057
    %v3124 = vpack.c.b16 %v3060, %v3059
    %3189 = vmatpush.bf16.msra.mxu0 %v3068
    %3190 = vmatpush.bf16.msra.mxu0 %v3067
    %3191 = vmatpush.bf16.msra.mxu0 %v3066
    %3192 = vmatpush.bf16.msra.mxu0 %v3065
    %3193 = vmatpush.bf16.msra.mxu0 %v3064
    %3194 = vmatpush.bf16.msra.mxu0 %v3063
    %3195 = vmatpush.bf16.msra.mxu0 %v3062
    %3196 = vmatpush.bf16.msra.mxu0 %v3061
    %3197 = vmatmul.bf16.gmra.mxu0 %v2666
    %v3198 = vpop.f32.mrf.mxu0
    %v3199 = vadd.f32 %v2803, %v3198
    %v3200 = vpop.f32.mrf.mxu0
    %3201 = vdwg.mxu0
    %3202 = vmatpush.bf16.msra.mxu0 %v3076
    %3203 = vmatpush.bf16.msra.mxu0 %v3075
    %3204 = vmatpush.bf16.msra.mxu0 %v3074
    %3205 = vmatpush.bf16.msra.mxu0 %v3073
    %3206 = vmatpush.bf16.msra.mxu0 %v3072
    %3207 = vmatpush.bf16.msra.mxu0 %v3071
    %3208 = vmatpush.bf16.msra.mxu0 %v3070
    %3209 = vmatpush.bf16.msra.mxu0 %v3069
    %3210 = vmatmul.bf16.gmra.mxu0 %v2667
    %v3211 = vpop.f32.mrf.mxu0
    %v3212 = vadd.f32 %v3199, %v3211
    %v3213 = vpop.f32.mrf.mxu0
    %3214 = vdwg.mxu0
    %3215 = vmatpush.bf16.msra.mxu0 %v3084
    %3216 = vmatpush.bf16.msra.mxu0 %v3083
    %3217 = vmatpush.bf16.msra.mxu0 %v3082
    %3218 = vmatpush.bf16.msra.mxu0 %v3081
    %3219 = vmatpush.bf16.msra.mxu0 %v3080
    %3220 = vmatpush.bf16.msra.mxu0 %v3079
    %3221 = vmatpush.bf16.msra.mxu0 %v3078
    %3222 = vmatpush.bf16.msra.mxu0 %v3077
    %3223 = vmatmul.bf16.gmra.mxu0 %v2668
    %v3224 = vpop.f32.mrf.mxu0
    %v3225 = vadd.f32 %v3212, %v3224
    %v3226 = vpop.f32.mrf.mxu0
    %3227 = vdwg.mxu0
    %3228 = vmatpush.bf16.msra.mxu0 %v3092
    %3229 = vmatpush.bf16.msra.mxu0 %v3091
    %3230 = vmatpush.bf16.msra.mxu0 %v3090
    %3231 = vmatpush.bf16.msra.mxu0 %v3089
    %3232 = vmatpush.bf16.msra.mxu0 %v3088
    %3233 = vmatpush.bf16.msra.mxu0 %v3087
    %3234 = vmatpush.bf16.msra.mxu0 %v3086
    %3235 = vmatpush.bf16.msra.mxu0 %v3085
    %3236 = vmatmul.bf16.gmra.mxu0 %v2669
    %v3237 = vpop.f32.mrf.mxu0
    %v3238 = vadd.f32 %v3225, %v3237
    %v3239 = vpop.f32.mrf.mxu0
    %3240 = vdwg.mxu0
    %3241 = vmatpush.bf16.msra.mxu0 %v3100
    %3242 = vmatpush.bf16.msra.mxu0 %v3099
    %3243 = vmatpush.bf16.msra.mxu0 %v3098
    %3244 = vmatpush.bf16.msra.mxu0 %v3097
    %3245 = vmatpush.bf16.msra.mxu0 %v3096
    %3246 = vmatpush.bf16.msra.mxu0 %v3095
    %3247 = vmatpush.bf16.msra.mxu0 %v3094
    %3248 = vmatpush.bf16.msra.mxu0 %v3093
    %3249 = vmatmul.bf16.gmra.mxu0 %v2670
    %v3250 = vpop.f32.mrf.mxu0
    %v3251 = vadd.f32 %v3238, %v3250
    %v3252 = vpop.f32.mrf.mxu0
    %3253 = vdwg.mxu0
    %3254 = vmatpush.bf16.msra.mxu0 %v3108
    %3255 = vmatpush.bf16.msra.mxu0 %v3107
    %3256 = vmatpush.bf16.msra.mxu0 %v3106
    %3257 = vmatpush.bf16.msra.mxu0 %v3105
    %3258 = vmatpush.bf16.msra.mxu0 %v3104
    %3259 = vmatpush.bf16.msra.mxu0 %v3103
    %3260 = vmatpush.bf16.msra.mxu0 %v3102
    %3261 = vmatpush.bf16.msra.mxu0 %v3101
    %3262 = vmatmul.bf16.gmra.mxu0 %v2671
    %v3263 = vpop.f32.mrf.mxu0
    %v3264 = vadd.f32 %v3251, %v3263
    %v3265 = vpop.f32.mrf.mxu0
    %3266 = vdwg.mxu0
    %3267 = vmatpush.bf16.msra.mxu0 %v3116
    %3268 = vmatpush.bf16.msra.mxu0 %v3115
    %3269 = vmatpush.bf16.msra.mxu0 %v3114
    %3270 = vmatpush.bf16.msra.mxu0 %v3113
    %3271 = vmatpush.bf16.msra.mxu0 %v3112
    %3272 = vmatpush.bf16.msra.mxu0 %v3111
    %3273 = vmatpush.bf16.msra.mxu0 %v3110
    %3274 = vmatpush.bf16.msra.mxu0 %v3109
    %3275 = vmatmul.bf16.gmra.mxu0 %v2672
    %v3276 = vpop.f32.mrf.mxu0
    %v3277 = vadd.f32 %v3264, %v3276
    %v3278 = vpop.f32.mrf.mxu0
    %3279 = vdwg.mxu0
    %3280 = vmatpush.bf16.msra.mxu0 %v3124
    %3281 = vmatpush.bf16.msra.mxu0 %v3123
    %3282 = vmatpush.bf16.msra.mxu0 %v3122
    %3283 = vmatpush.bf16.msra.mxu0 %v3121
    %3284 = vmatpush.bf16.msra.mxu0 %v3120
    %3285 = vmatpush.bf16.msra.mxu0 %v3119
    %3286 = vmatpush.bf16.msra.mxu0 %v3118
    %3287 = vmatpush.bf16.msra.mxu0 %v3117
    %3288 = vmatmul.bf16.gmra.mxu0 %v2673
    %v3289 = vpop.f32.mrf.mxu0
    %v3290 = vadd.f32 %v3277, %v3289
    %v3291 = vpop.f32.mrf.mxu0
    %3292 = vdwg.mxu0
    %3293 = vst [vmem:[#allocation13] sm:$0xff] %v3290
    // Predicated region
    $region50: #{_run.1} parent=1 // pred_check
      _
    $region51: #{_run.1} parent=1 // pred_check_branch
      %3295 = sbr.rel (0) target = $region53
    $region52: #{_run.1} parent=1 // pred_region
      %3297 = vsyncadd [#allocation4], 0
      %s3299 = sshll.u32 [#allocation13], 4
      %s3300 = int_to_ptr.vmem [resolvable:$true] %s3299
      %s3301 = sshll.u32 %s6, 4
      %s3302 = int_to_ptr.hbm [resolvable:$true] %s3301
      %3304 = dma.vmem_to_hbm [thread:$0]  %s3300, 128, %s3302, [#allocation4]
    $region53: #{_run.1} parent=1 // pred_fallthru
      _
    // Predicated region
    $region54: #{_run.1} parent=1 // pred_check
      _
    $region55: #{_run.1} parent=1 // pred_check_branch
      %3306 = sbr.rel (0) target = $region57
    $region56: #{_run.1} parent=1 // pred_region
      %3308 = dma.done [#allocation4], 128
    $region57: #{_run.1} parent=1 // pred_fallthru
      _
    %3309 = vsyncpa [#allocation3], 1
    %3310 = vsyncpa [#allocation6], 1
    %3311 = vsyncpa [#allocation9], 1
    %3312 = vsyncpa [#allocation12], 1
    %3313 = vsyncpa [#allocation4], 1

// kernel: _run.1
$region0: #{_run.1}
  #allocation0 [shape = 'u32[]', space=smem, size = 0x4, offset = 0x4, fixed_abs, tag = 'smem constant byte address 0x4 - core index']
  #allocation1 [shape = 'u32[72,128]{1,0:T(1,128)}', space=vmem, size = 0x9000, scoped, tag = 'internal scratch']
  %s0 = inlined_call_operand.hbm [shape: f32[8,32], index: 0, kind: input, shape index: {}]
  %s1 = inlined_call_operand.hbm [shape: bf16[32,256], index: 1, kind: input, shape index: {}]
  %s2 = inlined_call_operand.hbm [shape: bf16[256,512], index: 2, kind: input, shape index: {}]
  %s3 = inlined_call_operand.hbm [shape: bf16[512,1024], index: 3, kind: input, shape index: {}]
  %s4 = inlined_call_operand.hbm [shape: bf16[1024,128], index: 4, kind: input, shape index: {}]
  %s5 = inlined_call_operand.hbm [shape: f32[1,1920], index: 5, kind: input, shape index: {}]
  %s6 = inlined_call_operand.hbm [shape: f32[8,128], index: 6, kind: output, shape index: {}]
  %s7 = sld [smem:[#allocation0]]
  $region58: #{_run.1} parent=0
    _
  %s9 = ssub.s32 1, %s7
  %s10 = scalar_select 0, %s9, %s7
  $region1: #{_run.1} parent=0
    #allocation2 [shape = 'u8[4096]{0}', space=vmem, size = 0x1000, scoped, tag = 'input window, operand 0, single buffered']
    #allocation3 [shape = 's32[1]{0}', space=sflag, size = 0x4, scoped, tag = 'scoped memory for _run.1']
    #allocation4 [shape = 's32[1]{0}', space=sflag, size = 0x4, scoped, tag = 'scoped memory for _run.1']
    #allocation5 [shape = 'u8[16384]{0}', space=vmem, size = 0x4000, scoped, tag = 'input window, operand 1, single buffered']
    #allocation6 [shape = 's32[1]{0}', space=sflag, size = 0x4, scoped, tag = 'scoped memory for _run.1']
    #allocation7 [shape = 'u8[262144]{0}', space=vmem, size = 0x40000, scoped, tag = 'input window, operand 2, single buffered']
    #allocation8 [shape = 'u8[1048576]{0}', space=vmem, size = 0x100000, scoped, tag = 'input window, operand 3, single buffered']
    #allocation9 [shape = 's32[1]{0}', space=sflag, size = 0x4, scoped, tag = 'scoped memory for _run.1']
    #allocation10 [shape = 'u8[262144]{0}', space=vmem, size = 0x40000, scoped, tag = 'input window, operand 4, single buffered']
    #allocation11 [shape = 'u8[7680]{0}', space=vmem, size = 0x2000, scoped, tag = 'input window, operand 5, single buffered']
    #allocation12 [shape = 's32[1]{0}', space=sflag, size = 0x4, scoped, tag = 'scoped memory for _run.1']
    #allocation13 [shape = 'u8[4096]{0}', space=vmem, size = 0x1000, scoped, tag = 'output window, operand 0, single buffered']
    %11 = vsyncpa [#allocation3], 0
    %12 = vsyncpa [#allocation6], 0
    %13 = vsyncpa [#allocation9], 0
    %14 = vsyncpa [#allocation12], 0
    %15 = vsyncpa [#allocation4], 0
    // Predicated region
    $region2: #{_run.1} parent=1 // pred_check
      _
    $region3: #{_run.1} parent=1 // pred_check_branch
      %17 = sbr.rel (0) target = $region5
    $region4: #{_run.1} parent=1 // pred_region
      %19 = vsyncadd [#allocation3], 0
      %s21 = sshll.u32 %s0, 4
      %s22 = int_to_ptr.hbm [resolvable:$true] %s21
      %s23 = sshll.u32 [#allocation2], 4
      %s24 = int_to_ptr.vmem [resolvable:$true] %s23
      %26 = dma.hbm_to_vmem [thread:$0]  %s22, 128, %s24, [#allocation3]
    $region5: #{_run.1} parent=1 // pred_fallthru
      _
    // Predicated region
    $region6: #{_run.1} parent=1 // pred_check
      _
    $region7: #{_run.1} parent=1 // pred_check_branch
      %28 = sbr.rel (0) target = $region9
    $region8: #{_run.1} parent=1 // pred_region
      %30 = vsyncadd [#allocation6], 0
      %s31 = sshll.u32 %s1, 4
      %s32 = int_to_ptr.hbm [resolvable:$true] %s31
      %s33 = sshll.u32 [#allocation5], 4
      %s34 = int_to_ptr.vmem [resolvable:$true] %s33
      %39 = dma.hbm_to_vmem [thread:$0]  %s32, 512, %s34, [#allocation6], 128, 128, 8
    $region9: #{_run.1} parent=1 // pred_fallthru
      _
    // Predicated region
    $region10: #{_run.1} parent=1 // pred_check
      _
    $region11: #{_run.1} parent=1 // pred_check_branch
      %41 = sbr.rel (0) target = $region13
    $region12: #{_run.1} parent=1 // pred_region
      %43 = vsyncadd [#allocation6], 0
      %s44 = sshll.u32 %s2, 4
      %s45 = int_to_ptr.hbm [resolvable:$true] %s44
      %s46 = sshll.u32 [#allocation7], 4
      %s47 = int_to_ptr.vmem [resolvable:$true] %s46
      %52 = dma.hbm_to_vmem [thread:$0]  %s45, 8192, %s47, [#allocation6], 256, 256, 16
    $region13: #{_run.1} parent=1 // pred_fallthru
      _
    // Predicated region
    $region14: #{_run.1} parent=1 // pred_check
      _
    $region15: #{_run.1} parent=1 // pred_check_branch
      %54 = sbr.rel (0) target = $region17
    $region16: #{_run.1} parent=1 // pred_region
      %56 = vsyncadd [#allocation9], 0
      %s57 = sshll.u32 %s3, 4
      %s58 = int_to_ptr.hbm [resolvable:$true] %s57
      %s59 = sshll.u32 [#allocation8], 4
      %s60 = int_to_ptr.vmem [resolvable:$true] %s59
      %65 = dma.hbm_to_vmem [thread:$0]  %s58, 32768, %s60, [#allocation9], 512, 512, 32
    $region17: #{_run.1} parent=1 // pred_fallthru
      _
    // Predicated region
    $region18: #{_run.1} parent=1 // pred_check
      _
    $region19: #{_run.1} parent=1 // pred_check_branch
      %67 = sbr.rel (0) target = $region21
    $region20: #{_run.1} parent=1 // pred_region
      %69 = vsyncadd [#allocation9], 0
      %s70 = sshll.u32 %s4, 4
      %s71 = int_to_ptr.hbm [resolvable:$true] %s70
      %s72 = sshll.u32 [#allocation10], 4
      %s73 = int_to_ptr.vmem [resolvable:$true] %s72
      %78 = dma.hbm_to_vmem [thread:$0]  %s71, 8192, %s73, [#allocation9], 64, 64, 4
    $region21: #{_run.1} parent=1 // pred_fallthru
      _
    // Predicated region
    $region22: #{_run.1} parent=1 // pred_check
      _
    $region23: #{_run.1} parent=1 // pred_check_branch
      %80 = sbr.rel (0) target = $region25
    $region24: #{_run.1} parent=1 // pred_region
      %82 = vsyncadd [#allocation12], 0
      %s84 = sshll.u32 %s5, 4
      %s85 = int_to_ptr.hbm [resolvable:$true] %s84
      %s86 = sshll.u32 [#allocation11], 4
      %s87 = int_to_ptr.vmem [resolvable:$true] %s86
      %89 = dma.hbm_to_vmem [thread:$0]  %s85, 240, %s87, [#allocation12]
    $region25: #{_run.1} parent=1 // pred_fallthru
      _
    // Predicated region
    $region26: #{_run.1} parent=1 // pred_check
      _
    $region27: #{_run.1} parent=1 // pred_check_branch
      %91 = sbr.rel (0) target = $region29
    $region28: #{_run.1} parent=1 // pred_region
      %93 = dma.done [#allocation3], 128
    $region29: #{_run.1} parent=1 // pred_fallthru
      _
    // Predicated region
    $region30: #{_run.1} parent=1 // pred_check
      _
    $region31: #{_run.1} parent=1 // pred_check_branch
      %95 = sbr.rel (0) target = $region33
    $region32: #{_run.1} parent=1 // pred_region
      %97 = dma.done [#allocation6], 512
    $region33: #{_run.1} parent=1 // pred_fallthru
      _
    // Predicated region
    $region34: #{_run.1} parent=1 // pred_check
      _
    $region35: #{_run.1} parent=1 // pred_check_branch
      %99 = sbr.rel (0) target = $region37
    $region36: #{_run.1} parent=1 // pred_region
      %101 = dma.done [#allocation6], 8192
    $region37: #{_run.1} parent=1 // pred_fallthru
      _
    // Predicated region
    $region38: #{_run.1} parent=1 // pred_check
      _
    $region39: #{_run.1} parent=1 // pred_check_branch
      %103 = sbr.rel (0) target = $region41
    $region40: #{_run.1} parent=1 // pred_region
      %105 = dma.done [#allocation9], 32768
    $region41: #{_run.1} parent=1 // pred_fallthru
      _
    // Predicated region
    $region42: #{_run.1} parent=1 // pred_check
      _
    $region43: #{_run.1} parent=1 // pred_check_branch
      %107 = sbr.rel (0) target = $region45
    $region44: #{_run.1} parent=1 // pred_region
      %109 = dma.done [#allocation9], 8192
    $region45: #{_run.1} parent=1 // pred_fallthru
      _
    // Predicated region
    $region46: #{_run.1} parent=1 // pred_check
      _
    $region47: #{_run.1} parent=1 // pred_check_branch
      %111 = sbr.rel (0) target = $region49
    $region48: #{_run.1} parent=1 // pred_region
      %113 = dma.done [#allocation12], 240
    $region49: #{_run.1} parent=1 // pred_fallthru
      _
    %v115 = vld [vmem:[#allocation11] sm:$0x3]
    %v116 = vld [vmem:[#allocation11 + $0x2] sm:$0xf]
    %v117 = vld [vmem:[#allocation11 + $0x6] sm:$0xff]
    %v118 = vld [vmem:[#allocation11 + $0xe] sm:$0x1]
    %v119 = vld [vmem:[#allocation2] sm:$0xff]
    %v120 = vpack.c.bf16 %v119, %v119
    %v121 = vld [vmem:[#allocation5] sm:$0xff]
    %v122 = vld [vmem:[#allocation5 + $0x8] sm:$0xff]
    %v123 = vld [vmem:[#allocation5 + $0x10] sm:$0xff]
    %v124 = vld [vmem:[#allocation5 + $0x18] sm:$0xff]
    %v126 = vperm.slane %v115, 0
    %v127 = vperm.slane %v115, 1
    %v134 = vunpack.c.l.b16 %v121
    %v135 = vunpack.c.h.b16 %v121
    %v136 = vunpack.c.l.b16 %v122
    %v137 = vunpack.c.h.b16 %v122
    %v138 = vunpack.c.l.b16 %v123
    %v139 = vunpack.c.h.b16 %v123
    %v140 = vunpack.c.l.b16 %v124
    %v141 = vunpack.c.h.b16 %v124
    %v142 = vpack.c.b16 %v136, %v134
    %v143 = vpack.c.b16 %v137, %v135
    %v144 = vpack.c.b16 %v140, %v138
    %v145 = vpack.c.b16 %v141, %v139
    %vm150 = vcmask 261120
    %v152 = vsel %vm150, %v120, 0
    %154 = vmatpush.bf16.msra.mxu0 0
    %155 = vmatpush.bf16.msra.mxu0 0
    %156 = vmatpush.bf16.msra.mxu0 0
    %157 = vmatpush.bf16.msra.mxu0 0
    %158 = vmatpush.bf16.msra.mxu0 0
    %159 = vmatpush.bf16.msra.mxu0 0
    %160 = vmatpush.bf16.msra.mxu0 %v144
    %161 = vmatpush.bf16.msra.mxu0 %v142
    %162 = vmatmul.bf16.gmra.mxu0 %v152
    %v163 = vpop.f32.mrf.mxu0
    %v164 = vadd.f32 %v126, %v163
    %v165 = vpop.f32.mrf.mxu0
    %166 = vdwg.mxu0
    %167 = vmatpush.bf16.msra.mxu0 0
    %168 = vmatpush.bf16.msra.mxu0 0
    %169 = vmatpush.bf16.msra.mxu0 0
    %170 = vmatpush.bf16.msra.mxu0 0
    %171 = vmatpush.bf16.msra.mxu0 0
    %172 = vmatpush.bf16.msra.mxu0 0
    %173 = vmatpush.bf16.msra.mxu0 %v145
    %174 = vmatpush.bf16.msra.mxu0 %v143
    %175 = vmatmul.bf16.gmra.mxu0 %v152
    %v176 = vpop.f32.mrf.mxu0
    %v177 = vadd.f32 %v127, %v176
    %v178 = vpop.f32.mrf.mxu0
    %179 = vdwg.mxu0
    %v180 = vmax.f32 %v164, 0.0
    %v181 = vmax.f32 %v177, 0.0
    %v182 = vpack.c.bf16 %v180, %v180
    %v183 = vpack.c.bf16 %v181, %v181
    %v184 = vld [vmem:[#allocation7] sm:$0xff]
    %v185 = vld [vmem:[#allocation7 + $0x8] sm:$0xff]
    %v186 = vld [vmem:[#allocation7 + $0x10] sm:$0xff]
    %v187 = vld [vmem:[#allocation7 + $0x18] sm:$0xff]
    %v188 = vld [vmem:[#allocation7 + $0x20] sm:$0xff]
    %v189 = vld [vmem:[#allocation7 + $0x28] sm:$0xff]
    %v190 = vld [vmem:[#allocation7 + $0x30] sm:$0xff]
    %v191 = vld [vmem:[#allocation7 + $0x38] sm:$0xff]
    %v192 = vld [vmem:[#allocation7 + $0x40] sm:$0xff]
    %v193 = vld [vmem:[#allocation7 + $0x48] sm:$0xff]
    %v194 = vld [vmem:[#allocation7 + $0x50] sm:$0xff]
    %v195 = vld [vmem:[#allocation7 + $0x58] sm:$0xff]
    %v196 = vld [vmem:[#allocation7 + $0x60] sm:$0xff]
    %v197 = vld [vmem:[#allocation7 + $0x68] sm:$0xff]
    %v198 = vld [vmem:[#allocation7 + $0x70] sm:$0xff]
    %v199 = vld [vmem:[#allocation7 + $0x78] sm:$0xff]
    %v200 = vld [vmem:[#allocation7 + $0x80] sm:$0xff]
    %v201 = vld [vmem:[#allocation7 + $0x88] sm:$0xff]
    %v202 = vld [vmem:[#allocation7 + $0x90] sm:$0xff]
    %v203 = vld [vmem:[#allocation7 + $0x98] sm:$0xff]
    %v204 = vld [vmem:[#allocation7 + $0xa0] sm:$0xff]
    %v205 = vld [vmem:[#allocation7 + $0xa8] sm:$0xff]
    %v206 = vld [vmem:[#allocation7 + $0xb0] sm:$0xff]
    %v207 = vld [vmem:[#allocation7 + $0xb8] sm:$0xff]
    %v208 = vld [vmem:[#allocation7 + $0xc0] sm:$0xff]
    %v209 = vld [vmem:[#allocation7 + $0xc8] sm:$0xff]
    %v210 = vld [vmem:[#allocation7 + $0xd0] sm:$0xff]
    %v211 = vld [vmem:[#allocation7 + $0xd8] sm:$0xff]
    %v212 = vld [vmem:[#allocation7 + $0xe0] sm:$0xff]
    %v213 = vld [vmem:[#allocation7 + $0xe8] sm:$0xff]
    %v214 = vld [vmem:[#allocation7 + $0xf0] sm:$0xff]
    %v215 = vld [vmem:[#allocation7 + $0xf8] sm:$0xff]
    %v216 = vld [vmem:[#allocation7 + $0x100] sm:$0xff]
    %v217 = vld [vmem:[#allocation7 + $0x108] sm:$0xff]
    %v218 = vld [vmem:[#allocation7 + $0x110] sm:$0xff]
    %v219 = vld [vmem:[#allocation7 + $0x118] sm:$0xff]
    %v220 = vld [vmem:[#allocation7 + $0x120] sm:$0xff]
    %v221 = vld [vmem:[#allocation7 + $0x128] sm:$0xff]
    %v222 = vld [vmem:[#allocation7 + $0x130] sm:$0xff]
    %v223 = vld [vmem:[#allocation7 + $0x138] sm:$0xff]
    %v224 = vld [vmem:[#allocation7 + $0x140] sm:$0xff]
    %v225 = vld [vmem:[#allocation7 + $0x148] sm:$0xff]
    %v226 = vld [vmem:[#allocation7 + $0x150] sm:$0xff]
    %v227 = vld [vmem:[#allocation7 + $0x158] sm:$0xff]
    %v228 = vld [vmem:[#allocation7 + $0x160] sm:$0xff]
    %v229 = vld [vmem:[#allocation7 + $0x168] sm:$0xff]
    %v230 = vld [vmem:[#allocation7 + $0x170] sm:$0xff]
    %v231 = vld [vmem:[#allocation7 + $0x178] sm:$0xff]
    %v232 = vld [vmem:[#allocation7 + $0x180] sm:$0xff]
    %v233 = vld [vmem:[#allocation7 + $0x188] sm:$0xff]
    %v234 = vld [vmem:[#allocation7 + $0x190] sm:$0xff]
    %v235 = vld [vmem:[#allocation7 + $0x198] sm:$0xff]
    %v236 = vld [vmem:[#allocation7 + $0x1a0] sm:$0xff]
    %v237 = vld [vmem:[#allocation7 + $0x1a8] sm:$0xff]
    %v238 = vld [vmem:[#allocation7 + $0x1b0] sm:$0xff]
    %v239 = vld [vmem:[#allocation7 + $0x1b8] sm:$0xff]
    %v240 = vld [vmem:[#allocation7 + $0x1c0] sm:$0xff]
    %v241 = vld [vmem:[#allocation7 + $0x1c8] sm:$0xff]
    %v242 = vld [vmem:[#allocation7 + $0x1d0] sm:$0xff]
    %v243 = vld [vmem:[#allocation7 + $0x1d8] sm:$0xff]
    %v244 = vld [vmem:[#allocation7 + $0x1e0] sm:$0xff]
    %v245 = vld [vmem:[#allocation7 + $0x1e8] sm:$0xff]
    %v246 = vld [vmem:[#allocation7 + $0x1f0] sm:$0xff]
    %v247 = vld [vmem:[#allocation7 + $0x1f8] sm:$0xff]
    %v249 = vperm.slane %v116, 0
    %v250 = vperm.slane %v116, 1
    %v251 = vperm.slane %v116, 2
    %v252 = vperm.slane %v116, 3
    %v321 = vunpack.c.l.b16 %v184
    %v322 = vunpack.c.h.b16 %v184
    %v323 = vunpack.c.l.b16 %v185
    %v324 = vunpack.c.h.b16 %v185
    %v325 = vunpack.c.l.b16 %v186
    %v326 = vunpack.c.h.b16 %v186
    %v327 = vunpack.c.l.b16 %v187
    %v328 = vunpack.c.h.b16 %v187
    %v329 = vunpack.c.l.b16 %v188
    %v330 = vunpack.c.h.b16 %v188
    %v331 = vunpack.c.l.b16 %v189
    %v332 = vunpack.c.h.b16 %v189
    %v333 = vunpack.c.l.b16 %v190
    %v334 = vunpack.c.h.b16 %v190
    %v335 = vunpack.c.l.b16 %v191
    %v336 = vunpack.c.h.b16 %v191
    %v337 = vunpack.c.l.b16 %v192
    %v338 = vunpack.c.h.b16 %v192
    %v339 = vunpack.c.l.b16 %v193
    %v340 = vunpack.c.h.b16 %v193
    %v341 = vunpack.c.l.b16 %v194
    %v342 = vunpack.c.h.b16 %v194
    %v343 = vunpack.c.l.b16 %v195
    %v344 = vunpack.c.h.b16 %v195
    %v345 = vunpack.c.l.b16 %v196
    %v346 = vunpack.c.h.b16 %v196
    %v347 = vunpack.c.l.b16 %v197
    %v348 = vunpack.c.h.b16 %v197
    %v349 = vunpack.c.l.b16 %v198
    %v350 = vunpack.c.h.b16 %v198
    %v351 = vunpack.c.l.b16 %v199
    %v352 = vunpack.c.h.b16 %v199
    %v353 = vunpack.c.l.b16 %v200
    %v354 = vunpack.c.h.b16 %v200
    %v355 = vunpack.c.l.b16 %v201
    %v356 = vunpack.c.h.b16 %v201
    %v357 = vunpack.c.l.b16 %v202
    %v358 = vunpack.c.h.b16 %v202
    %v359 = vunpack.c.l.b16 %v203
    %v360 = vunpack.c.h.b16 %v203
    %v361 = vunpack.c.l.b16 %v204
    %v362 = vunpack.c.h.b16 %v204
    %v363 = vunpack.c.l.b16 %v205
    %v364 = vunpack.c.h.b16 %v205
    %v365 = vunpack.c.l.b16 %v206
    %v366 = vunpack.c.h.b16 %v206
    %v367 = vunpack.c.l.b16 %v207
    %v368 = vunpack.c.h.b16 %v207
    %v369 = vunpack.c.l.b16 %v208
    %v370 = vunpack.c.h.b16 %v208
    %v371 = vunpack.c.l.b16 %v209
    %v372 = vunpack.c.h.b16 %v209
    %v373 = vunpack.c.l.b16 %v210
    %v374 = vunpack.c.h.b16 %v210
    %v375 = vunpack.c.l.b16 %v211
    %v376 = vunpack.c.h.b16 %v211
    %v377 = vunpack.c.l.b16 %v212
    %v378 = vunpack.c.h.b16 %v212
    %v379 = vunpack.c.l.b16 %v213
    %v380 = vunpack.c.h.b16 %v213
    %v381 = vunpack.c.l.b16 %v214
    %v382 = vunpack.c.h.b16 %v214
    %v383 = vunpack.c.l.b16 %v215
    %v384 = vunpack.c.h.b16 %v215
    %v385 = vunpack.c.l.b16 %v216
    %v386 = vunpack.c.h.b16 %v216
    %v387 = vunpack.c.l.b16 %v217
    %v388 = vunpack.c.h.b16 %v217
    %v389 = vunpack.c.l.b16 %v218
    %v390 = vunpack.c.h.b16 %v218
    %v391 = vunpack.c.l.b16 %v219
    %v392 = vunpack.c.h.b16 %v219
    %v393 = vunpack.c.l.b16 %v220
    %v394 = vunpack.c.h.b16 %v220
    %v395 = vunpack.c.l.b16 %v221
    %v396 = vunpack.c.h.b16 %v221
    %v397 = vunpack.c.l.b16 %v222
    %v398 = vunpack.c.h.b16 %v222
    %v399 = vunpack.c.l.b16 %v223
    %v400 = vunpack.c.h.b16 %v223
    %v401 = vunpack.c.l.b16 %v224
    %v402 = vunpack.c.h.b16 %v224
    %v403 = vunpack.c.l.b16 %v225
    %v404 = vunpack.c.h.b16 %v225
    %v405 = vunpack.c.l.b16 %v226
    %v406 = vunpack.c.h.b16 %v226
    %v407 = vunpack.c.l.b16 %v227
    %v408 = vunpack.c.h.b16 %v227
    %v409 = vunpack.c.l.b16 %v228
    %v410 = vunpack.c.h.b16 %v228
    %v411 = vunpack.c.l.b16 %v229
    %v412 = vunpack.c.h.b16 %v229
    %v413 = vunpack.c.l.b16 %v230
    %v414 = vunpack.c.h.b16 %v230
    %v415 = vunpack.c.l.b16 %v231
    %v416 = vunpack.c.h.b16 %v231
    %v417 = vunpack.c.l.b16 %v232
    %v418 = vunpack.c.h.b16 %v232
    %v419 = vunpack.c.l.b16 %v233
    %v420 = vunpack.c.h.b16 %v233
    %v421 = vunpack.c.l.b16 %v234
    %v422 = vunpack.c.h.b16 %v234
    %v423 = vunpack.c.l.b16 %v235
    %v424 = vunpack.c.h.b16 %v235
    %v425 = vunpack.c.l.b16 %v236
    %v426 = vunpack.c.h.b16 %v236
    %v427 = vunpack.c.l.b16 %v237
    %v428 = vunpack.c.h.b16 %v237
    %v429 = vunpack.c.l.b16 %v238
    %v430 = vunpack.c.h.b16 %v238
    %v431 = vunpack.c.l.b16 %v239
    %v432 = vunpack.c.h.b16 %v239
    %v433 = vunpack.c.l.b16 %v240
    %v434 = vunpack.c.h.b16 %v240
    %v435 = vunpack.c.l.b16 %v241
    %v436 = vunpack.c.h.b16 %v241
    %v437 = vunpack.c.l.b16 %v242
    %v438 = vunpack.c.h.b16 %v242
    %v439 = vunpack.c.l.b16 %v243
    %v440 = vunpack.c.h.b16 %v243
    %v441 = vunpack.c.l.b16 %v244
    %v442 = vunpack.c.h.b16 %v244
    %v443 = vunpack.c.l.b16 %v245
    %v444 = vunpack.c.h.b16 %v245
    %v445 = vunpack.c.l.b16 %v246
    %v446 = vunpack.c.h.b16 %v246
    %v447 = vunpack.c.l.b16 %v247
    %v448 = vunpack.c.h.b16 %v247
    %v449 = vpack.c.b16 %v325, %v321
    %v450 = vpack.c.b16 %v326, %v322
    %v451 = vpack.c.b16 %v327, %v323
    %v452 = vpack.c.b16 %v328, %v324
    %v453 = vpack.c.b16 %v333, %v329
    %v454 = vpack.c.b16 %v334, %v330
    %v455 = vpack.c.b16 %v335, %v331
    %v456 = vpack.c.b16 %v336, %v332
    %v457 = vpack.c.b16 %v341, %v337
    %v458 = vpack.c.b16 %v342, %v338
    %v459 = vpack.c.b16 %v343, %v339
    %v460 = vpack.c.b16 %v344, %v340
    %v461 = vpack.c.b16 %v349, %v345
    %v462 = vpack.c.b16 %v350, %v346
    %v463 = vpack.c.b16 %v351, %v347
    %v464 = vpack.c.b16 %v352, %v348
    %v465 = vpack.c.b16 %v357, %v353
    %v466 = vpack.c.b16 %v358, %v354
    %v467 = vpack.c.b16 %v359, %v355
    %v468 = vpack.c.b16 %v360, %v356
    %v469 = vpack.c.b16 %v365, %v361
    %v470 = vpack.c.b16 %v366, %v362
    %v471 = vpack.c.b16 %v367, %v363
    %v472 = vpack.c.b16 %v368, %v364
    %v473 = vpack.c.b16 %v373, %v369
    %v474 = vpack.c.b16 %v374, %v370
    %v475 = vpack.c.b16 %v375, %v371
    %v476 = vpack.c.b16 %v376, %v372
    %v477 = vpack.c.b16 %v381, %v377
    %v478 = vpack.c.b16 %v382, %v378
    %v479 = vpack.c.b16 %v383, %v379
    %v480 = vpack.c.b16 %v384, %v380
    %v481 = vpack.c.b16 %v389, %v385
    %v482 = vpack.c.b16 %v390, %v386
    %v483 = vpack.c.b16 %v391, %v387
    %v484 = vpack.c.b16 %v392, %v388
    %v485 = vpack.c.b16 %v397, %v393
    %v486 = vpack.c.b16 %v398, %v394
    %v487 = vpack.c.b16 %v399, %v395
    %v488 = vpack.c.b16 %v400, %v396
    %v489 = vpack.c.b16 %v405, %v401
    %v490 = vpack.c.b16 %v406, %v402
    %v491 = vpack.c.b16 %v407, %v403
    %v492 = vpack.c.b16 %v408, %v404
    %v493 = vpack.c.b16 %v413, %v409
    %v494 = vpack.c.b16 %v414, %v410
    %v495 = vpack.c.b16 %v415, %v411
    %v496 = vpack.c.b16 %v416, %v412
    %v497 = vpack.c.b16 %v421, %v417
    %v498 = vpack.c.b16 %v422, %v418
    %v499 = vpack.c.b16 %v423, %v419
    %v500 = vpack.c.b16 %v424, %v420
    %v501 = vpack.c.b16 %v429, %v425
    %v502 = vpack.c.b16 %v430, %v426
    %v503 = vpack.c.b16 %v431, %v427
    %v504 = vpack.c.b16 %v432, %v428
    %v505 = vpack.c.b16 %v437, %v433
    %v506 = vpack.c.b16 %v438, %v434
    %v507 = vpack.c.b16 %v439, %v435
    %v508 = vpack.c.b16 %v440, %v436
    %v509 = vpack.c.b16 %v445, %v441
    %v510 = vpack.c.b16 %v446, %v442
    %v511 = vpack.c.b16 %v447, %v443
    %v512 = vpack.c.b16 %v448, %v444
    %577 = vmatpush.bf16.msra.mxu0 %v477
    %578 = vmatpush.bf16.msra.mxu0 %v473
    %579 = vmatpush.bf16.msra.mxu0 %v469
    %580 = vmatpush.bf16.msra.mxu0 %v465
    %581 = vmatpush.bf16.msra.mxu0 %v461
    %582 = vmatpush.bf16.msra.mxu0 %v457
    %583 = vmatpush.bf16.msra.mxu0 %v453
    %584 = vmatpush.bf16.msra.mxu0 %v449
    %585 = vmatmul.bf16.gmra.mxu0 %v182
    %v586 = vpop.f32.mrf.mxu0
    %v587 = vadd.f32 %v249, %v586
    %v588 = vpop.f32.mrf.mxu0
    %589 = vdwg.mxu0
    %590 = vmatpush.bf16.msra.mxu0 %v509
    %591 = vmatpush.bf16.msra.mxu0 %v505
    %592 = vmatpush.bf16.msra.mxu0 %v501
    %593 = vmatpush.bf16.msra.mxu0 %v497
    %594 = vmatpush.bf16.msra.mxu0 %v493
    %595 = vmatpush.bf16.msra.mxu0 %v489
    %596 = vmatpush.bf16.msra.mxu0 %v485
    %597 = vmatpush.bf16.msra.mxu0 %v481
    %598 = vmatmul.bf16.gmra.mxu0 %v183
    %v599 = vpop.f32.mrf.mxu0
    %v600 = vadd.f32 %v587, %v599
    %v601 = vpop.f32.mrf.mxu0
    %602 = vdwg.mxu0
    %603 = vmatpush.bf16.msra.mxu0 %v478
    %604 = vmatpush.bf16.msra.mxu0 %v474
    %605 = vmatpush.bf16.msra.mxu0 %v470
    %606 = vmatpush.bf16.msra.mxu0 %v466
    %607 = vmatpush.bf16.msra.mxu0 %v462
    %608 = vmatpush.bf16.msra.mxu0 %v458
    %609 = vmatpush.bf16.msra.mxu0 %v454
    %610 = vmatpush.bf16.msra.mxu0 %v450
    %611 = vmatmul.bf16.gmra.mxu0 %v182
    %v612 = vpop.f32.mrf.mxu0
    %v613 = vadd.f32 %v250, %v612
    %v614 = vpop.f32.mrf.mxu0
    %615 = vdwg.mxu0
    %616 = vmatpush.bf16.msra.mxu0 %v510
    %617 = vmatpush.bf16.msra.mxu0 %v506
    %618 = vmatpush.bf16.msra.mxu0 %v502
    %619 = vmatpush.bf16.msra.mxu0 %v498
    %620 = vmatpush.bf16.msra.mxu0 %v494
    %621 = vmatpush.bf16.msra.mxu0 %v490
    %622 = vmatpush.bf16.msra.mxu0 %v486
    %623 = vmatpush.bf16.msra.mxu0 %v482
    %624 = vmatmul.bf16.gmra.mxu0 %v183
    %v625 = vpop.f32.mrf.mxu0
    %v626 = vadd.f32 %v613, %v625
    %v627 = vpop.f32.mrf.mxu0
    %628 = vdwg.mxu0
    %629 = vmatpush.bf16.msra.mxu0 %v479
    %630 = vmatpush.bf16.msra.mxu0 %v475
    %631 = vmatpush.bf16.msra.mxu0 %v471
    %632 = vmatpush.bf16.msra.mxu0 %v467
    %633 = vmatpush.bf16.msra.mxu0 %v463
    %634 = vmatpush.bf16.msra.mxu0 %v459
    %635 = vmatpush.bf16.msra.mxu0 %v455
    %636 = vmatpush.bf16.msra.mxu0 %v451
    %637 = vmatmul.bf16.gmra.mxu0 %v182
    %v638 = vpop.f32.mrf.mxu0
    %v639 = vadd.f32 %v251, %v638
    %v640 = vpop.f32.mrf.mxu0
    %641 = vdwg.mxu0
    %642 = vmatpush.bf16.msra.mxu0 %v511
    %643 = vmatpush.bf16.msra.mxu0 %v507
    %644 = vmatpush.bf16.msra.mxu0 %v503
    %645 = vmatpush.bf16.msra.mxu0 %v499
    %646 = vmatpush.bf16.msra.mxu0 %v495
    %647 = vmatpush.bf16.msra.mxu0 %v491
    %648 = vmatpush.bf16.msra.mxu0 %v487
    %649 = vmatpush.bf16.msra.mxu0 %v483
    %650 = vmatmul.bf16.gmra.mxu0 %v183
    %v651 = vpop.f32.mrf.mxu0
    %v652 = vadd.f32 %v639, %v651
    %v653 = vpop.f32.mrf.mxu0
    %654 = vdwg.mxu0
    %655 = vmatpush.bf16.msra.mxu0 %v480
    %656 = vmatpush.bf16.msra.mxu0 %v476
    %657 = vmatpush.bf16.msra.mxu0 %v472
    %658 = vmatpush.bf16.msra.mxu0 %v468
    %659 = vmatpush.bf16.msra.mxu0 %v464
    %660 = vmatpush.bf16.msra.mxu0 %v460
    %661 = vmatpush.bf16.msra.mxu0 %v456
    %662 = vmatpush.bf16.msra.mxu0 %v452
    %663 = vmatmul.bf16.gmra.mxu0 %v182
    %v664 = vpop.f32.mrf.mxu0
    %v665 = vadd.f32 %v252, %v664
    %v666 = vpop.f32.mrf.mxu0
    %667 = vdwg.mxu0
    %668 = vmatpush.bf16.msra.mxu0 %v512
    %669 = vmatpush.bf16.msra.mxu0 %v508
    %670 = vmatpush.bf16.msra.mxu0 %v504
    %671 = vmatpush.bf16.msra.mxu0 %v500
    %672 = vmatpush.bf16.msra.mxu0 %v496
    %673 = vmatpush.bf16.msra.mxu0 %v492
    %674 = vmatpush.bf16.msra.mxu0 %v488
    %675 = vmatpush.bf16.msra.mxu0 %v484
    %676 = vmatmul.bf16.gmra.mxu0 %v183
    %v677 = vpop.f32.mrf.mxu0
    %v678 = vadd.f32 %v665, %v677
    %v679 = vpop.f32.mrf.mxu0
    %680 = vdwg.mxu0
    %v681 = vmax.f32 %v600, 0.0
    %v682 = vmax.f32 %v626, 0.0
    %v683 = vmax.f32 %v652, 0.0
    %v684 = vmax.f32 %v678, 0.0
    %v685 = vpack.c.bf16 %v681, %v681
    %v686 = vpack.c.bf16 %v682, %v682
    %v687 = vpack.c.bf16 %v683, %v683
    %v688 = vpack.c.bf16 %v684, %v684
    %v689 = vld [vmem:[#allocation8] sm:$0xff]
    %v690 = vld [vmem:[#allocation8 + $0x8] sm:$0xff]
    %v691 = vld [vmem:[#allocation8 + $0x10] sm:$0xff]
    %v692 = vld [vmem:[#allocation8 + $0x18] sm:$0xff]
    %v693 = vld [vmem:[#allocation8 + $0x20] sm:$0xff]
    %v694 = vld [vmem:[#allocation8 + $0x28] sm:$0xff]
    %v695 = vld [vmem:[#allocation8 + $0x30] sm:$0xff]
    %v696 = vld [vmem:[#allocation8 + $0x38] sm:$0xff]
    %v697 = vld [vmem:[#allocation8 + $0x40] sm:$0xff]
    %v698 = vld [vmem:[#allocation8 + $0x48] sm:$0xff]
    %v699 = vld [vmem:[#allocation8 + $0x50] sm:$0xff]
    %v700 = vld [vmem:[#allocation8 + $0x58] sm:$0xff]
    %v701 = vld [vmem:[#allocation8 + $0x60] sm:$0xff]
    %v702 = vld [vmem:[#allocation8 + $0x68] sm:$0xff]
    %v703 = vld [vmem:[#allocation8 + $0x70] sm:$0xff]
    %v704 = vld [vmem:[#allocation8 + $0x78] sm:$0xff]
    %v705 = vld [vmem:[#allocation8 + $0x80] sm:$0xff]
    %v706 = vld [vmem:[#allocation8 + $0x88] sm:$0xff]
    %v707 = vld [vmem:[#allocation8 + $0x90] sm:$0xff]
    %v708 = vld [vmem:[#allocation8 + $0x98] sm:$0xff]
    %v709 = vld [vmem:[#allocation8 + $0xa0] sm:$0xff]
    %v710 = vld [vmem:[#allocation8 + $0xa8] sm:$0xff]
    %v711 = vld [vmem:[#allocation8 + $0xb0] sm:$0xff]
    %v712 = vld [vmem:[#allocation8 + $0xb8] sm:$0xff]
    %v713 = vld [vmem:[#allocation8 + $0xc0] sm:$0xff]
    %v714 = vld [vmem:[#allocation8 + $0xc8] sm:$0xff]
    %v715 = vld [vmem:[#allocation8 + $0xd0] sm:$0xff]
    %v716 = vld [vmem:[#allocation8 + $0xd8] sm:$0xff]
    %v717 = vld [vmem:[#allocation8 + $0xe0] sm:$0xff]
    %v718 = vld [vmem:[#allocation8 + $0xe8] sm:$0xff]
    %v719 = vld [vmem:[#allocation8 + $0xf0] sm:$0xff]
    %v720 = vld [vmem:[#allocation8 + $0xf8] sm:$0xff]
    %v721 = vld [vmem:[#allocation8 + $0x100] sm:$0xff]
    %v722 = vld [vmem:[#allocation8 + $0x108] sm:$0xff]
    %v723 = vld [vmem:[#allocation8 + $0x110] sm:$0xff]
    %v724 = vld [vmem:[#allocation8 + $0x118] sm:$0xff]
    %v725 = vld [vmem:[#allocation8 + $0x120] sm:$0xff]
    %v726 = vld [vmem:[#allocation8 + $0x128] sm:$0xff]
    %v727 = vld [vmem:[#allocation8 + $0x130] sm:$0xff]
    %v728 = vld [vmem:[#allocation8 + $0x138] sm:$0xff]
    %v729 = vld [vmem:[#allocation8 + $0x140] sm:$0xff]
    %v730 = vld [vmem:[#allocation8 + $0x148] sm:$0xff]
    %v731 = vld [vmem:[#allocation8 + $0x150] sm:$0xff]
    %v732 = vld [vmem:[#allocation8 + $0x158] sm:$0xff]
    %v733 = vld [vmem:[#allocation8 + $0x160] sm:$0xff]
    %v734 = vld [vmem:[#allocation8 + $0x168] sm:$0xff]
    %v735 = vld [vmem:[#allocation8 + $0x170] sm:$0xff]
    %v736 = vld [vmem:[#allocation8 + $0x178] sm:$0xff]
    %v737 = vld [vmem:[#allocation8 + $0x180] sm:$0xff]
    %v738 = vld [vmem:[#allocation8 + $0x188] sm:$0xff]
    %v739 = vld [vmem:[#allocation8 + $0x190] sm:$0xff]
    %v740 = vld [vmem:[#allocation8 + $0x198] sm:$0xff]
    %v741 = vld [vmem:[#allocation8 + $0x1a0] sm:$0xff]
    %v742 = vld [vmem:[#allocation8 + $0x1a8] sm:$0xff]
    %v743 = vld [vmem:[#allocation8 + $0x1b0] sm:$0xff]
    %v744 = vld [vmem:[#allocation8 + $0x1b8] sm:$0xff]
    %v745 = vld [vmem:[#allocation8 + $0x1c0] sm:$0xff]
    %v746 = vld [vmem:[#allocation8 + $0x1c8] sm:$0xff]
    %v747 = vld [vmem:[#allocation8 + $0x1d0] sm:$0xff]
    %v748 = vld [vmem:[#allocation8 + $0x1d8] sm:$0xff]
    %v749 = vld [vmem:[#allocation8 + $0x1e0] sm:$0xff]
    %v750 = vld [vmem:[#allocation8 + $0x1e8] sm:$0xff]
    %v751 = vld [vmem:[#allocation8 + $0x1f0] sm:$0xff]
    %v752 = vld [vmem:[#allocation8 + $0x1f8] sm:$0xff]
    %v753 = vld [vmem:[#allocation8 + $0x200] sm:$0xff]
    %v754 = vld [vmem:[#allocation8 + $0x208] sm:$0xff]
    %v755 = vld [vmem:[#allocation8 + $0x210] sm:$0xff]
    %v756 = vld [vmem:[#allocation8 + $0x218] sm:$0xff]
    %v757 = vld [vmem:[#allocation8 + $0x220] sm:$0xff]
    %v758 = vld [vmem:[#allocation8 + $0x228] sm:$0xff]
    %v759 = vld [vmem:[#allocation8 + $0x230] sm:$0xff]
    %v760 = vld [vmem:[#allocation8 + $0x238] sm:$0xff]
    %v761 = vld [vmem:[#allocation8 + $0x240] sm:$0xff]
    %v762 = vld [vmem:[#allocation8 + $0x248] sm:$0xff]
    %v763 = vld [vmem:[#allocation8 + $0x250] sm:$0xff]
    %v764 = vld [vmem:[#allocation8 + $0x258] sm:$0xff]
    %v765 = vld [vmem:[#allocation8 + $0x260] sm:$0xff]
    %v766 = vld [vmem:[#allocation8 + $0x268] sm:$0xff]
    %v767 = vld [vmem:[#allocation8 + $0x270] sm:$0xff]
    %v768 = vld [vmem:[#allocation8 + $0x278] sm:$0xff]
    %v769 = vld [vmem:[#allocation8 + $0x280] sm:$0xff]
    %v770 = vld [vmem:[#allocation8 + $0x288] sm:$0xff]
    %v771 = vld [vmem:[#allocation8 + $0x290] sm:$0xff]
    %v772 = vld [vmem:[#allocation8 + $0x298] sm:$0xff]
    %v773 = vld [vmem:[#allocation8 + $0x2a0] sm:$0xff]
    %v774 = vld [vmem:[#allocation8 + $0x2a8] sm:$0xff]
    %v775 = vld [vmem:[#allocation8 + $0x2b0] sm:$0xff]
    %v776 = vld [vmem:[#allocation8 + $0x2b8] sm:$0xff]
    %v777 = vld [vmem:[#allocation8 + $0x2c0] sm:$0xff]
    %v778 = vld [vmem:[#allocation8 + $0x2c8] sm:$0xff]
    %v779 = vld [vmem:[#allocation8 + $0x2d0] sm:$0xff]
    %v780 = vld [vmem:[#allocation8 + $0x2d8] sm:$0xff]
    %v781 = vld [vmem:[#allocation8 + $0x2e0] sm:$0xff]
    %v782 = vld [vmem:[#allocation8 + $0x2e8] sm:$0xff]
    %v783 = vld [vmem:[#allocation8 + $0x2f0] sm:$0xff]
    %v784 = vld [vmem:[#allocation8 + $0x2f8] sm:$0xff]
    %v785 = vld [vmem:[#allocation8 + $0x300] sm:$0xff]
    %v786 = vld [vmem:[#allocation8 + $0x308] sm:$0xff]
    %v787 = vld [vmem:[#allocation8 + $0x310] sm:$0xff]
    %v788 = vld [vmem:[#allocation8 + $0x318] sm:$0xff]
    %v789 = vld [vmem:[#allocation8 + $0x320] sm:$0xff]
    %v790 = vld [vmem:[#allocation8 + $0x328] sm:$0xff]
    %v791 = vld [vmem:[#allocation8 + $0x330] sm:$0xff]
    %v792 = vld [vmem:[#allocation8 + $0x338] sm:$0xff]
    %v793 = vld [vmem:[#allocation8 + $0x340] sm:$0xff]
    %v794 = vld [vmem:[#allocation8 + $0x348] sm:$0xff]
    %v795 = vld [vmem:[#allocation8 + $0x350] sm:$0xff]
    %v796 = vld [vmem:[#allocation8 + $0x358] sm:$0xff]
    %v797 = vld [vmem:[#allocation8 + $0x360] sm:$0xff]
    %v798 = vld [vmem:[#allocation8 + $0x368] sm:$0xff]
    %v799 = vld [vmem:[#allocation8 + $0x370] sm:$0xff]
    %v800 = vld [vmem:[#allocation8 + $0x378] sm:$0xff]
    %v801 = vld [vmem:[#allocation8 + $0x380] sm:$0xff]
    %v802 = vld [vmem:[#allocation8 + $0x388] sm:$0xff]
    %v803 = vld [vmem:[#allocation8 + $0x390] sm:$0xff]
    %v804 = vld [vmem:[#allocation8 + $0x398] sm:$0xff]
    %v805 = vld [vmem:[#allocation8 + $0x3a0] sm:$0xff]
    %v806 = vld [vmem:[#allocation8 + $0x3a8] sm:$0xff]
    %v807 = vld [vmem:[#allocation8 + $0x3b0] sm:$0xff]
    %v808 = vld [vmem:[#allocation8 + $0x3b8] sm:$0xff]
    %v809 = vld [vmem:[#allocation8 + $0x3c0] sm:$0xff]
    %v810 = vld [vmem:[#allocation8 + $0x3c8] sm:$0xff]
    %v811 = vld [vmem:[#allocation8 + $0x3d0] sm:$0xff]
    %v812 = vld [vmem:[#allocation8 + $0x3d8] sm:$0xff]
    %v813 = vld [vmem:[#allocation8 + $0x3e0] sm:$0xff]
    %v814 = vld [vmem:[#allocation8 + $0x3e8] sm:$0xff]
    %v815 = vld [vmem:[#allocation8 + $0x3f0] sm:$0xff]
    %v816 = vld [vmem:[#allocation8 + $0x3f8] sm:$0xff]
    %v817 = vld [vmem:[#allocation8 + $0x400] sm:$0xff]
    %v818 = vld [vmem:[#allocation8 + $0x408] sm:$0xff]
    %v819 = vld [vmem:[#allocation8 + $0x410] sm:$0xff]
    %v820 = vld [vmem:[#allocation8 + $0x418] sm:$0xff]
    %v821 = vld [vmem:[#allocation8 + $0x420] sm:$0xff]
    %v822 = vld [vmem:[#allocation8 + $0x428] sm:$0xff]
    %v823 = vld [vmem:[#allocation8 + $0x430] sm:$0xff]
    %v824 = vld [vmem:[#allocation8 + $0x438] sm:$0xff]
    %v825 = vld [vmem:[#allocation8 + $0x440] sm:$0xff]
    %v826 = vld [vmem:[#allocation8 + $0x448] sm:$0xff]
    %v827 = vld [vmem:[#allocation8 + $0x450] sm:$0xff]
    %v828 = vld [vmem:[#allocation8 + $0x458] sm:$0xff]
    %v829 = vld [vmem:[#allocation8 + $0x460] sm:$0xff]
    %v830 = vld [vmem:[#allocation8 + $0x468] sm:$0xff]
    %v831 = vld [vmem:[#allocation8 + $0x470] sm:$0xff]
    %v832 = vld [vmem:[#allocation8 + $0x478] sm:$0xff]
    %v833 = vld [vmem:[#allocation8 + $0x480] sm:$0xff]
    %v834 = vld [vmem:[#allocation8 + $0x488] sm:$0xff]
    %v835 = vld [vmem:[#allocation8 + $0x490] sm:$0xff]
    %v836 = vld [vmem:[#allocation8 + $0x498] sm:$0xff]
    %v837 = vld [vmem:[#allocation8 + $0x4a0] sm:$0xff]
    %v838 = vld [vmem:[#allocation8 + $0x4a8] sm:$0xff]
    %v839 = vld [vmem:[#allocation8 + $0x4b0] sm:$0xff]
    %v840 = vld [vmem:[#allocation8 + $0x4b8] sm:$0xff]
    %v841 = vld [vmem:[#allocation8 + $0x4c0] sm:$0xff]
    %v842 = vld [vmem:[#allocation8 + $0x4c8] sm:$0xff]
    %v843 = vld [vmem:[#allocation8 + $0x4d0] sm:$0xff]
    %v844 = vld [vmem:[#allocation8 + $0x4d8] sm:$0xff]
    %v845 = vld [vmem:[#allocation8 + $0x4e0] sm:$0xff]
    %v846 = vld [vmem:[#allocation8 + $0x4e8] sm:$0xff]
    %v847 = vld [vmem:[#allocation8 + $0x4f0] sm:$0xff]
    %v848 = vld [vmem:[#allocation8 + $0x4f8] sm:$0xff]
    %v849 = vld [vmem:[#allocation8 + $0x500] sm:$0xff]
    %v850 = vld [vmem:[#allocation8 + $0x508] sm:$0xff]
    %v851 = vld [vmem:[#allocation8 + $0x510] sm:$0xff]
    %v852 = vld [vmem:[#allocation8 + $0x518] sm:$0xff]
    %v853 = vld [vmem:[#allocation8 + $0x520] sm:$0xff]
    %v854 = vld [vmem:[#allocation8 + $0x528] sm:$0xff]
    %v855 = vld [vmem:[#allocation8 + $0x530] sm:$0xff]
    %v856 = vld [vmem:[#allocation8 + $0x538] sm:$0xff]
    %v857 = vld [vmem:[#allocation8 + $0x540] sm:$0xff]
    %v858 = vld [vmem:[#allocation8 + $0x548] sm:$0xff]
    %v859 = vld [vmem:[#allocation8 + $0x550] sm:$0xff]
    %v860 = vld [vmem:[#allocation8 + $0x558] sm:$0xff]
    %v861 = vld [vmem:[#allocation8 + $0x560] sm:$0xff]
    %v862 = vld [vmem:[#allocation8 + $0x568] sm:$0xff]
    %v863 = vld [vmem:[#allocation8 + $0x570] sm:$0xff]
    %v864 = vld [vmem:[#allocation8 + $0x578] sm:$0xff]
    %v865 = vld [vmem:[#allocation8 + $0x580] sm:$0xff]
    %v866 = vld [vmem:[#allocation8 + $0x588] sm:$0xff]
    %v867 = vld [vmem:[#allocation8 + $0x590] sm:$0xff]
    %v868 = vld [vmem:[#allocation8 + $0x598] sm:$0xff]
    %v869 = vld [vmem:[#allocation8 + $0x5a0] sm:$0xff]
    %v870 = vld [vmem:[#allocation8 + $0x5a8] sm:$0xff]
    %v871 = vld [vmem:[#allocation8 + $0x5b0] sm:$0xff]
    %v872 = vld [vmem:[#allocation8 + $0x5b8] sm:$0xff]
    %v873 = vld [vmem:[#allocation8 + $0x5c0] sm:$0xff]
    %v874 = vld [vmem:[#allocation8 + $0x5c8] sm:$0xff]
    %v875 = vld [vmem:[#allocation8 + $0x5d0] sm:$0xff]
    %v876 = vld [vmem:[#allocation8 + $0x5d8] sm:$0xff]
    %v877 = vld [vmem:[#allocation8 + $0x5e0] sm:$0xff]
    %v878 = vld [vmem:[#allocation8 + $0x5e8] sm:$0xff]
    %v879 = vld [vmem:[#allocation8 + $0x5f0] sm:$0xff]
    %v880 = vld [vmem:[#allocation8 + $0x5f8] sm:$0xff]
    %v881 = vld [vmem:[#allocation8 + $0x600] sm:$0xff]
    %v882 = vld [vmem:[#allocation8 + $0x608] sm:$0xff]
    %v883 = vld [vmem:[#allocation8 + $0x610] sm:$0xff]
    %v884 = vld [vmem:[#allocation8 + $0x618] sm:$0xff]
    %v885 = vld [vmem:[#allocation8 + $0x620] sm:$0xff]
    %v886 = vld [vmem:[#allocation8 + $0x628] sm:$0xff]
    %v887 = vld [vmem:[#allocation8 + $0x630] sm:$0xff]
    %v888 = vld [vmem:[#allocation8 + $0x638] sm:$0xff]
    %v889 = vld [vmem:[#allocation8 + $0x640] sm:$0xff]
    %v890 = vld [vmem:[#allocation8 + $0x648] sm:$0xff]
    %v891 = vld [vmem:[#allocation8 + $0x650] sm:$0xff]
    %v892 = vld [vmem:[#allocation8 + $0x658] sm:$0xff]
    %v893 = vld [vmem:[#allocation8 + $0x660] sm:$0xff]
    %v894 = vld [vmem:[#allocation8 + $0x668] sm:$0xff]
    %v895 = vld [vmem:[#allocation8 + $0x670] sm:$0xff]
    %v896 = vld [vmem:[#allocation8 + $0x678] sm:$0xff]
    %v897 = vld [vmem:[#allocation8 + $0x680] sm:$0xff]
    %v898 = vld [vmem:[#allocation8 + $0x688] sm:$0xff]
    %v899 = vld [vmem:[#allocation8 + $0x690] sm:$0xff]
    %v900 = vld [vmem:[#allocation8 + $0x698] sm:$0xff]
    %v901 = vld [vmem:[#allocation8 + $0x6a0] sm:$0xff]
    %v902 = vld [vmem:[#allocation8 + $0x6a8] sm:$0xff]
    %v903 = vld [vmem:[#allocation8 + $0x6b0] sm:$0xff]
    %v904 = vld [vmem:[#allocation8 + $0x6b8] sm:$0xff]
    %v905 = vld [vmem:[#allocation8 + $0x6c0] sm:$0xff]
    %v906 = vld [vmem:[#allocation8 + $0x6c8] sm:$0xff]
    %v907 = vld [vmem:[#allocation8 + $0x6d0] sm:$0xff]
    %v908 = vld [vmem:[#allocation8 + $0x6d8] sm:$0xff]
    %v909 = vld [vmem:[#allocation8 + $0x6e0] sm:$0xff]
    %v910 = vld [vmem:[#allocation8 + $0x6e8] sm:$0xff]
    %v911 = vld [vmem:[#allocation8 + $0x6f0] sm:$0xff]
    %v912 = vld [vmem:[#allocation8 + $0x6f8] sm:$0xff]
    %v913 = vld [vmem:[#allocation8 + $0x700] sm:$0xff]
    %v914 = vld [vmem:[#allocation8 + $0x708] sm:$0xff]
    %v915 = vld [vmem:[#allocation8 + $0x710] sm:$0xff]
    %v916 = vld [vmem:[#allocation8 + $0x718] sm:$0xff]
    %v917 = vld [vmem:[#allocation8 + $0x720] sm:$0xff]
    %v918 = vld [vmem:[#allocation8 + $0x728] sm:$0xff]
    %v919 = vld [vmem:[#allocation8 + $0x730] sm:$0xff]
    %v920 = vld [vmem:[#allocation8 + $0x738] sm:$0xff]
    %v921 = vld [vmem:[#allocation8 + $0x740] sm:$0xff]
    %v922 = vld [vmem:[#allocation8 + $0x748] sm:$0xff]
    %v923 = vld [vmem:[#allocation8 + $0x750] sm:$0xff]
    %v924 = vld [vmem:[#allocation8 + $0x758] sm:$0xff]
    %v925 = vld [vmem:[#allocation8 + $0x760] sm:$0xff]
    %v926 = vld [vmem:[#allocation8 + $0x768] sm:$0xff]
    %v927 = vld [vmem:[#allocation8 + $0x770] sm:$0xff]
    %v928 = vld [vmem:[#allocation8 + $0x778] sm:$0xff]
    %v929 = vld [vmem:[#allocation8 + $0x780] sm:$0xff]
    %v930 = vld [vmem:[#allocation8 + $0x788] sm:$0xff]
    %v931 = vld [vmem:[#allocation8 + $0x790] sm:$0xff]
    %v932 = vld [vmem:[#allocation8 + $0x798] sm:$0xff]
    %v933 = vld [vmem:[#allocation8 + $0x7a0] sm:$0xff]
    %v934 = vld [vmem:[#allocation8 + $0x7a8] sm:$0xff]
    %v935 = vld [vmem:[#allocation8 + $0x7b0] sm:$0xff]
    %v936 = vld [vmem:[#allocation8 + $0x7b8] sm:$0xff]
    %v937 = vld [vmem:[#allocation8 + $0x7c0] sm:$0xff]
    %v938 = vld [vmem:[#allocation8 + $0x7c8] sm:$0xff]
    %v939 = vld [vmem:[#allocation8 + $0x7d0] sm:$0xff]
    %v940 = vld [vmem:[#allocation8 + $0x7d8] sm:$0xff]
    %v941 = vld [vmem:[#allocation8 + $0x7e0] sm:$0xff]
    %v942 = vld [vmem:[#allocation8 + $0x7e8] sm:$0xff]
    %v943 = vld [vmem:[#allocation8 + $0x7f0] sm:$0xff]
    %v944 = vld [vmem:[#allocation8 + $0x7f8] sm:$0xff]
    %v946 = vperm.slane %v117, 0
    %v947 = vperm.slane %v117, 1
    %v948 = vperm.slane %v117, 2
    %v949 = vperm.slane %v117, 3
    %v950 = vperm.slane %v117, 4
    %v951 = vperm.slane %v117, 5
    %v952 = vperm.slane %v117, 6
    %v953 = vperm.slane %v117, 7
    %v1218 = vunpack.c.l.b16 %v689
    %v1219 = vunpack.c.h.b16 %v689
    %v1220 = vunpack.c.l.b16 %v690
    %v1221 = vunpack.c.h.b16 %v690
    %v1222 = vunpack.c.l.b16 %v691
    %v1223 = vunpack.c.h.b16 %v691
    %v1224 = vunpack.c.l.b16 %v692
    %v1225 = vunpack.c.h.b16 %v692
    %v1226 = vunpack.c.l.b16 %v693
    %v1227 = vunpack.c.h.b16 %v693
    %v1228 = vunpack.c.l.b16 %v694
    %v1229 = vunpack.c.h.b16 %v694
    %v1230 = vunpack.c.l.b16 %v695
    %v1231 = vunpack.c.h.b16 %v695
    %v1232 = vunpack.c.l.b16 %v696
    %v1233 = vunpack.c.h.b16 %v696
    %v1234 = vunpack.c.l.b16 %v697
    %v1235 = vunpack.c.h.b16 %v697
    %v1236 = vunpack.c.l.b16 %v698
    %v1237 = vunpack.c.h.b16 %v698
    %v1238 = vunpack.c.l.b16 %v699
    %v1239 = vunpack.c.h.b16 %v699
    %v1240 = vunpack.c.l.b16 %v700
    %v1241 = vunpack.c.h.b16 %v700
    %v1242 = vunpack.c.l.b16 %v701
    %v1243 = vunpack.c.h.b16 %v701
    %v1244 = vunpack.c.l.b16 %v702
    %v1245 = vunpack.c.h.b16 %v702
    %v1246 = vunpack.c.l.b16 %v703
    %v1247 = vunpack.c.h.b16 %v703
    %v1248 = vunpack.c.l.b16 %v704
    %v1249 = vunpack.c.h.b16 %v704
    %v1250 = vunpack.c.l.b16 %v705
    %v1251 = vunpack.c.h.b16 %v705
    %v1252 = vunpack.c.l.b16 %v706
    %v1253 = vunpack.c.h.b16 %v706
    %v1254 = vunpack.c.l.b16 %v707
    %v1255 = vunpack.c.h.b16 %v707
    %v1256 = vunpack.c.l.b16 %v708
    %v1257 = vunpack.c.h.b16 %v708
    %v1258 = vunpack.c.l.b16 %v709
    %v1259 = vunpack.c.h.b16 %v709
    %v1260 = vunpack.c.l.b16 %v710
    %v1261 = vunpack.c.h.b16 %v710
    %v1262 = vunpack.c.l.b16 %v711
    %v1263 = vunpack.c.h.b16 %v711
    %v1264 = vunpack.c.l.b16 %v712
    %v1265 = vunpack.c.h.b16 %v712
    %v1266 = vunpack.c.l.b16 %v713
    %v1267 = vunpack.c.h.b16 %v713
    %v1268 = vunpack.c.l.b16 %v714
    %v1269 = vunpack.c.h.b16 %v714
    %v1270 = vunpack.c.l.b16 %v715
    %v1271 = vunpack.c.h.b16 %v715
    %v1272 = vunpack.c.l.b16 %v716
    %v1273 = vunpack.c.h.b16 %v716
    %v1274 = vunpack.c.l.b16 %v717
    %v1275 = vunpack.c.h.b16 %v717
    %v1276 = vunpack.c.l.b16 %v718
    %v1277 = vunpack.c.h.b16 %v718
    %v1278 = vunpack.c.l.b16 %v719
    %v1279 = vunpack.c.h.b16 %v719
    %v1280 = vunpack.c.l.b16 %v720
    %v1281 = vunpack.c.h.b16 %v720
    %v1282 = vunpack.c.l.b16 %v721
    %v1283 = vunpack.c.h.b16 %v721
    %v1284 = vunpack.c.l.b16 %v722
    %v1285 = vunpack.c.h.b16 %v722
    %v1286 = vunpack.c.l.b16 %v723
    %v1287 = vunpack.c.h.b16 %v723
    %v1288 = vunpack.c.l.b16 %v724
    %v1289 = vunpack.c.h.b16 %v724
    %v1290 = vunpack.c.l.b16 %v725
    %v1291 = vunpack.c.h.b16 %v725
    %v1292 = vunpack.c.l.b16 %v726
    %v1293 = vunpack.c.h.b16 %v726
    %v1294 = vunpack.c.l.b16 %v727
    %v1295 = vunpack.c.h.b16 %v727
    %v1296 = vunpack.c.l.b16 %v728
    %v1297 = vunpack.c.h.b16 %v728
    %v1298 = vunpack.c.l.b16 %v729
    %v1299 = vunpack.c.h.b16 %v729
    %v1300 = vunpack.c.l.b16 %v730
    %v1301 = vunpack.c.h.b16 %v730
    %v1302 = vunpack.c.l.b16 %v731
    %v1303 = vunpack.c.h.b16 %v731
    %v1304 = vunpack.c.l.b16 %v732
    %v1305 = vunpack.c.h.b16 %v732
    %v1306 = vunpack.c.l.b16 %v733
    %v1307 = vunpack.c.h.b16 %v733
    %v1308 = vunpack.c.l.b16 %v734
    %v1309 = vunpack.c.h.b16 %v734
    %v1310 = vunpack.c.l.b16 %v735
    %v1311 = vunpack.c.h.b16 %v735
    %v1312 = vunpack.c.l.b16 %v736
    %v1313 = vunpack.c.h.b16 %v736
    %v1314 = vunpack.c.l.b16 %v737
    %v1315 = vunpack.c.h.b16 %v737
    %v1316 = vunpack.c.l.b16 %v738
    %v1317 = vunpack.c.h.b16 %v738
    %v1318 = vunpack.c.l.b16 %v739
    %v1319 = vunpack.c.h.b16 %v739
    %v1320 = vunpack.c.l.b16 %v740
    %v1321 = vunpack.c.h.b16 %v740
    %v1322 = vunpack.c.l.b16 %v741
    %v1323 = vunpack.c.h.b16 %v741
    %v1324 = vunpack.c.l.b16 %v742
    %v1325 = vunpack.c.h.b16 %v742
    %v1326 = vunpack.c.l.b16 %v743
    %v1327 = vunpack.c.h.b16 %v743
    %v1328 = vunpack.c.l.b16 %v744
    %v1329 = vunpack.c.h.b16 %v744
    %v1330 = vunpack.c.l.b16 %v745
    %v1331 = vunpack.c.h.b16 %v745
    %v1332 = vunpack.c.l.b16 %v746
    %v1333 = vunpack.c.h.b16 %v746
    %v1334 = vunpack.c.l.b16 %v747
    %v1335 = vunpack.c.h.b16 %v747
    %v1336 = vunpack.c.l.b16 %v748
    %v1337 = vunpack.c.h.b16 %v748
    %v1338 = vunpack.c.l.b16 %v749
    %v1339 = vunpack.c.h.b16 %v749
    %v1340 = vunpack.c.l.b16 %v750
    %v1341 = vunpack.c.h.b16 %v750
    %v1342 = vunpack.c.l.b16 %v751
    %v1343 = vunpack.c.h.b16 %v751
    %v1344 = vunpack.c.l.b16 %v752
    %v1345 = vunpack.c.h.b16 %v752
    %v1346 = vunpack.c.l.b16 %v753
    %v1347 = vunpack.c.h.b16 %v753
    %v1348 = vunpack.c.l.b16 %v754
    %v1349 = vunpack.c.h.b16 %v754
    %v1350 = vunpack.c.l.b16 %v755
    %v1351 = vunpack.c.h.b16 %v755
    %v1352 = vunpack.c.l.b16 %v756
    %v1353 = vunpack.c.h.b16 %v756
    %v1354 = vunpack.c.l.b16 %v757
    %v1355 = vunpack.c.h.b16 %v757
    %v1356 = vunpack.c.l.b16 %v758
    %v1357 = vunpack.c.h.b16 %v758
    %v1358 = vunpack.c.l.b16 %v759
    %v1359 = vunpack.c.h.b16 %v759
    %v1360 = vunpack.c.l.b16 %v760
    %v1361 = vunpack.c.h.b16 %v760
    %v1362 = vunpack.c.l.b16 %v761
    %v1363 = vunpack.c.h.b16 %v761
    %v1364 = vunpack.c.l.b16 %v762
    %v1365 = vunpack.c.h.b16 %v762
    %v1366 = vunpack.c.l.b16 %v763
    %v1367 = vunpack.c.h.b16 %v763
    %v1368 = vunpack.c.l.b16 %v764
    %v1369 = vunpack.c.h.b16 %v764
    %v1370 = vunpack.c.l.b16 %v765
    %v1371 = vunpack.c.h.b16 %v765
    %v1372 = vunpack.c.l.b16 %v766
    %v1373 = vunpack.c.h.b16 %v766
    %v1374 = vunpack.c.l.b16 %v767
    %v1375 = vunpack.c.h.b16 %v767
    %v1376 = vunpack.c.l.b16 %v768
    %v1377 = vunpack.c.h.b16 %v768
    %v1378 = vunpack.c.l.b16 %v769
    %v1379 = vunpack.c.h.b16 %v769
    %v1380 = vunpack.c.l.b16 %v770
    %v1381 = vunpack.c.h.b16 %v770
    %v1382 = vunpack.c.l.b16 %v771
    %v1383 = vunpack.c.h.b16 %v771
    %v1384 = vunpack.c.l.b16 %v772
    %v1385 = vunpack.c.h.b16 %v772
    %v1386 = vunpack.c.l.b16 %v773
    %v1387 = vunpack.c.h.b16 %v773
    %v1388 = vunpack.c.l.b16 %v774
    %v1389 = vunpack.c.h.b16 %v774
    %v1390 = vunpack.c.l.b16 %v775
    %v1391 = vunpack.c.h.b16 %v775
    %v1392 = vunpack.c.l.b16 %v776
    %v1393 = vunpack.c.h.b16 %v776
    %v1394 = vunpack.c.l.b16 %v777
    %v1395 = vunpack.c.h.b16 %v777
    %v1396 = vunpack.c.l.b16 %v778
    %v1397 = vunpack.c.h.b16 %v778
    %v1398 = vunpack.c.l.b16 %v779
    %v1399 = vunpack.c.h.b16 %v779
    %v1400 = vunpack.c.l.b16 %v780
    %v1401 = vunpack.c.h.b16 %v780
    %v1402 = vunpack.c.l.b16 %v781
    %v1403 = vunpack.c.h.b16 %v781
    %v1404 = vunpack.c.l.b16 %v782
    %v1405 = vunpack.c.h.b16 %v782
    %v1406 = vunpack.c.l.b16 %v783
    %v1407 = vunpack.c.h.b16 %v783
    %v1408 = vunpack.c.l.b16 %v784
    %v1409 = vunpack.c.h.b16 %v784
    %v1410 = vunpack.c.l.b16 %v785
    %v1411 = vunpack.c.h.b16 %v785
    %v1412 = vunpack.c.l.b16 %v786
    %v1413 = vunpack.c.h.b16 %v786
    %v1414 = vunpack.c.l.b16 %v787
    %v1415 = vunpack.c.h.b16 %v787
    %v1416 = vunpack.c.l.b16 %v788
    %v1417 = vunpack.c.h.b16 %v788
    %v1418 = vunpack.c.l.b16 %v789
    %v1419 = vunpack.c.h.b16 %v789
    %v1420 = vunpack.c.l.b16 %v790
    %v1421 = vunpack.c.h.b16 %v790
    %v1422 = vunpack.c.l.b16 %v791
    %v1423 = vunpack.c.h.b16 %v791
    %v1424 = vunpack.c.l.b16 %v792
    %v1425 = vunpack.c.h.b16 %v792
    %v1426 = vunpack.c.l.b16 %v793
    %v1427 = vunpack.c.h.b16 %v793
    %v1428 = vunpack.c.l.b16 %v794
    %v1429 = vunpack.c.h.b16 %v794
    %v1430 = vunpack.c.l.b16 %v795
    %v1431 = vunpack.c.h.b16 %v795
    %v1432 = vunpack.c.l.b16 %v796
    %v1433 = vunpack.c.h.b16 %v796
    %v1434 = vunpack.c.l.b16 %v797
    %v1435 = vunpack.c.h.b16 %v797
    %v1436 = vunpack.c.l.b16 %v798
    %v1437 = vunpack.c.h.b16 %v798
    %v1438 = vunpack.c.l.b16 %v799
    %v1439 = vunpack.c.h.b16 %v799
    %v1440 = vunpack.c.l.b16 %v800
    %v1441 = vunpack.c.h.b16 %v800
    %v1442 = vunpack.c.l.b16 %v801
    %v1443 = vunpack.c.h.b16 %v801
    %v1444 = vunpack.c.l.b16 %v802
    %v1445 = vunpack.c.h.b16 %v802
    %v1446 = vunpack.c.l.b16 %v803
    %v1447 = vunpack.c.h.b16 %v803
    %v1448 = vunpack.c.l.b16 %v804
    %v1449 = vunpack.c.h.b16 %v804
    %v1450 = vunpack.c.l.b16 %v805
    %v1451 = vunpack.c.h.b16 %v805
    %v1452 = vunpack.c.l.b16 %v806
    %v1453 = vunpack.c.h.b16 %v806
    %v1454 = vunpack.c.l.b16 %v807
    %v1455 = vunpack.c.h.b16 %v807
    %v1456 = vunpack.c.l.b16 %v808
    %v1457 = vunpack.c.h.b16 %v808
    %v1458 = vunpack.c.l.b16 %v809
    %v1459 = vunpack.c.h.b16 %v809
    %v1460 = vunpack.c.l.b16 %v810
    %v1461 = vunpack.c.h.b16 %v810
    %v1462 = vunpack.c.l.b16 %v811
    %v1463 = vunpack.c.h.b16 %v811
    %v1464 = vunpack.c.l.b16 %v812
    %v1465 = vunpack.c.h.b16 %v812
    %v1466 = vunpack.c.l.b16 %v813
    %v1467 = vunpack.c.h.b16 %v813
    %v1468 = vunpack.c.l.b16 %v814
    %v1469 = vunpack.c.h.b16 %v814
    %v1470 = vunpack.c.l.b16 %v815
    %v1471 = vunpack.c.h.b16 %v815
    %v1472 = vunpack.c.l.b16 %v816
    %v1473 = vunpack.c.h.b16 %v816
    %v1474 = vunpack.c.l.b16 %v817
    %v1475 = vunpack.c.h.b16 %v817
    %v1476 = vunpack.c.l.b16 %v818
    %v1477 = vunpack.c.h.b16 %v818
    %v1478 = vunpack.c.l.b16 %v819
    %v1479 = vunpack.c.h.b16 %v819
    %v1480 = vunpack.c.l.b16 %v820
    %v1481 = vunpack.c.h.b16 %v820
    %v1482 = vunpack.c.l.b16 %v821
    %v1483 = vunpack.c.h.b16 %v821
    %v1484 = vunpack.c.l.b16 %v822
    %v1485 = vunpack.c.h.b16 %v822
    %v1486 = vunpack.c.l.b16 %v823
    %v1487 = vunpack.c.h.b16 %v823
    %v1488 = vunpack.c.l.b16 %v824
    %v1489 = vunpack.c.h.b16 %v824
    %v1490 = vunpack.c.l.b16 %v825
    %v1491 = vunpack.c.h.b16 %v825
    %v1492 = vunpack.c.l.b16 %v826
    %v1493 = vunpack.c.h.b16 %v826
    %v1494 = vunpack.c.l.b16 %v827
    %v1495 = vunpack.c.h.b16 %v827
    %v1496 = vunpack.c.l.b16 %v828
    %v1497 = vunpack.c.h.b16 %v828
    %v1498 = vunpack.c.l.b16 %v829
    %v1499 = vunpack.c.h.b16 %v829
    %v1500 = vunpack.c.l.b16 %v830
    %v1501 = vunpack.c.h.b16 %v830
    %v1502 = vunpack.c.l.b16 %v831
    %v1503 = vunpack.c.h.b16 %v831
    %v1504 = vunpack.c.l.b16 %v832
    %v1505 = vunpack.c.h.b16 %v832
    %v1506 = vunpack.c.l.b16 %v833
    %v1507 = vunpack.c.h.b16 %v833
    %v1508 = vunpack.c.l.b16 %v834
    %v1509 = vunpack.c.h.b16 %v834
    %v1510 = vunpack.c.l.b16 %v835
    %v1511 = vunpack.c.h.b16 %v835
    %v1512 = vunpack.c.l.b16 %v836
    %v1513 = vunpack.c.h.b16 %v836
    %v1514 = vunpack.c.l.b16 %v837
    %v1515 = vunpack.c.h.b16 %v837
    %v1516 = vunpack.c.l.b16 %v838
    %v1517 = vunpack.c.h.b16 %v838
    %v1518 = vunpack.c.l.b16 %v839
    %v1519 = vunpack.c.h.b16 %v839
    %v1520 = vunpack.c.l.b16 %v840
    %v1521 = vunpack.c.h.b16 %v840
    %v1522 = vunpack.c.l.b16 %v841
    %v1523 = vunpack.c.h.b16 %v841
    %v1524 = vunpack.c.l.b16 %v842
    %v1525 = vunpack.c.h.b16 %v842
    %v1526 = vunpack.c.l.b16 %v843
    %v1527 = vunpack.c.h.b16 %v843
    %v1528 = vunpack.c.l.b16 %v844
    %v1529 = vunpack.c.h.b16 %v844
    %v1530 = vunpack.c.l.b16 %v845
    %v1531 = vunpack.c.h.b16 %v845
    %v1532 = vunpack.c.l.b16 %v846
    %v1533 = vunpack.c.h.b16 %v846
    %v1534 = vunpack.c.l.b16 %v847
    %v1535 = vunpack.c.h.b16 %v847
    %v1536 = vunpack.c.l.b16 %v848
    %v1537 = vunpack.c.h.b16 %v848
    %v1538 = vunpack.c.l.b16 %v849
    %v1539 = vunpack.c.h.b16 %v849
    %v1540 = vunpack.c.l.b16 %v850
    %v1541 = vunpack.c.h.b16 %v850
    %v1542 = vunpack.c.l.b16 %v851
    %v1543 = vunpack.c.h.b16 %v851
    %v1544 = vunpack.c.l.b16 %v852
    %v1545 = vunpack.c.h.b16 %v852
    %v1546 = vunpack.c.l.b16 %v853
    %v1547 = vunpack.c.h.b16 %v853
    %v1548 = vunpack.c.l.b16 %v854
    %v1549 = vunpack.c.h.b16 %v854
    %v1550 = vunpack.c.l.b16 %v855
    %v1551 = vunpack.c.h.b16 %v855
    %v1552 = vunpack.c.l.b16 %v856
    %v1553 = vunpack.c.h.b16 %v856
    %v1554 = vunpack.c.l.b16 %v857
    %v1555 = vunpack.c.h.b16 %v857
    %v1556 = vunpack.c.l.b16 %v858
    %v1557 = vunpack.c.h.b16 %v858
    %v1558 = vunpack.c.l.b16 %v859
    %v1559 = vunpack.c.h.b16 %v859
    %v1560 = vunpack.c.l.b16 %v860
    %v1561 = vunpack.c.h.b16 %v860
    %v1562 = vunpack.c.l.b16 %v861
    %v1563 = vunpack.c.h.b16 %v861
    %v1564 = vunpack.c.l.b16 %v862
    %v1565 = vunpack.c.h.b16 %v862
    %v1566 = vunpack.c.l.b16 %v863
    %v1567 = vunpack.c.h.b16 %v863
    %v1568 = vunpack.c.l.b16 %v864
    %v1569 = vunpack.c.h.b16 %v864
    %v1570 = vunpack.c.l.b16 %v865
    %v1571 = vunpack.c.h.b16 %v865
    %v1572 = vunpack.c.l.b16 %v866
    %v1573 = vunpack.c.h.b16 %v866
    %v1574 = vunpack.c.l.b16 %v867
    %v1575 = vunpack.c.h.b16 %v867
    %v1576 = vunpack.c.l.b16 %v868
    %v1577 = vunpack.c.h.b16 %v868
    %v1578 = vunpack.c.l.b16 %v869
    %v1579 = vunpack.c.h.b16 %v869
    %v1580 = vunpack.c.l.b16 %v870
    %v1581 = vunpack.c.h.b16 %v870
    %v1582 = vunpack.c.l.b16 %v871
    %v1583 = vunpack.c.h.b16 %v871
    %v1584 = vunpack.c.l.b16 %v872
    %v1585 = vunpack.c.h.b16 %v872
    %v1586 = vunpack.c.l.b16 %v873
    %v1587 = vunpack.c.h.b16 %v873
    %v1588 = vunpack.c.l.b16 %v874
    %v1589 = vunpack.c.h.b16 %v874
    %v1590 = vunpack.c.l.b16 %v875
    %v1591 = vunpack.c.h.b16 %v875
    %v1592 = vunpack.c.l.b16 %v876
    %v1593 = vunpack.c.h.b16 %v876
    %v1594 = vunpack.c.l.b16 %v877
    %v1595 = vunpack.c.h.b16 %v877
    %v1596 = vunpack.c.l.b16 %v878
    %v1597 = vunpack.c.h.b16 %v878
    %v1598 = vunpack.c.l.b16 %v879
    %v1599 = vunpack.c.h.b16 %v879
    %v1600 = vunpack.c.l.b16 %v880
    %v1601 = vunpack.c.h.b16 %v880
    %v1602 = vunpack.c.l.b16 %v881
    %v1603 = vunpack.c.h.b16 %v881
    %v1604 = vunpack.c.l.b16 %v882
    %v1605 = vunpack.c.h.b16 %v882
    %v1606 = vunpack.c.l.b16 %v883
    %v1607 = vunpack.c.h.b16 %v883
    %v1608 = vunpack.c.l.b16 %v884
    %v1609 = vunpack.c.h.b16 %v884
    %v1610 = vunpack.c.l.b16 %v885
    %v1611 = vunpack.c.h.b16 %v885
    %v1612 = vunpack.c.l.b16 %v886
    %v1613 = vunpack.c.h.b16 %v886
    %v1614 = vunpack.c.l.b16 %v887
    %v1615 = vunpack.c.h.b16 %v887
    %v1616 = vunpack.c.l.b16 %v888
    %v1617 = vunpack.c.h.b16 %v888
    %v1618 = vunpack.c.l.b16 %v889
    %v1619 = vunpack.c.h.b16 %v889
    %v1620 = vunpack.c.l.b16 %v890
    %v1621 = vunpack.c.h.b16 %v890
    %v1622 = vunpack.c.l.b16 %v891
    %v1623 = vunpack.c.h.b16 %v891
    %v1624 = vunpack.c.l.b16 %v892
    %v1625 = vunpack.c.h.b16 %v892
    %v1626 = vunpack.c.l.b16 %v893
    %v1627 = vunpack.c.h.b16 %v893
    %v1628 = vunpack.c.l.b16 %v894
    %v1629 = vunpack.c.h.b16 %v894
    %v1630 = vunpack.c.l.b16 %v895
    %v1631 = vunpack.c.h.b16 %v895
    %v1632 = vunpack.c.l.b16 %v896
    %v1633 = vunpack.c.h.b16 %v896
    %v1634 = vunpack.c.l.b16 %v897
    %v1635 = vunpack.c.h.b16 %v897
    %v1636 = vunpack.c.l.b16 %v898
    %v1637 = vunpack.c.h.b16 %v898
    %v1638 = vunpack.c.l.b16 %v899
    %v1639 = vunpack.c.h.b16 %v899
    %v1640 = vunpack.c.l.b16 %v900
    %v1641 = vunpack.c.h.b16 %v900
    %v1642 = vunpack.c.l.b16 %v901
    %v1643 = vunpack.c.h.b16 %v901
    %v1644 = vunpack.c.l.b16 %v902
    %v1645 = vunpack.c.h.b16 %v902
    %v1646 = vunpack.c.l.b16 %v903
    %v1647 = vunpack.c.h.b16 %v903
    %v1648 = vunpack.c.l.b16 %v904
    %v1649 = vunpack.c.h.b16 %v904
    %v1650 = vunpack.c.l.b16 %v905
    %v1651 = vunpack.c.h.b16 %v905
    %v1652 = vunpack.c.l.b16 %v906
    %v1653 = vunpack.c.h.b16 %v906
    %v1654 = vunpack.c.l.b16 %v907
    %v1655 = vunpack.c.h.b16 %v907
    %v1656 = vunpack.c.l.b16 %v908
    %v1657 = vunpack.c.h.b16 %v908
    %v1658 = vunpack.c.l.b16 %v909
    %v1659 = vunpack.c.h.b16 %v909
    %v1660 = vunpack.c.l.b16 %v910
    %v1661 = vunpack.c.h.b16 %v910
    %v1662 = vunpack.c.l.b16 %v911
    %v1663 = vunpack.c.h.b16 %v911
    %v1664 = vunpack.c.l.b16 %v912
    %v1665 = vunpack.c.h.b16 %v912
    %v1666 = vunpack.c.l.b16 %v913
    %v1667 = vunpack.c.h.b16 %v913
    %v1668 = vunpack.c.l.b16 %v914
    %v1669 = vunpack.c.h.b16 %v914
    %v1670 = vunpack.c.l.b16 %v915
    %v1671 = vunpack.c.h.b16 %v915
    %v1672 = vunpack.c.l.b16 %v916
    %v1673 = vunpack.c.h.b16 %v916
    %v1674 = vunpack.c.l.b16 %v917
    %v1675 = vunpack.c.h.b16 %v917
    %v1676 = vunpack.c.l.b16 %v918
    %v1677 = vunpack.c.h.b16 %v918
    %v1678 = vunpack.c.l.b16 %v919
    %v1679 = vunpack.c.h.b16 %v919
    %v1680 = vunpack.c.l.b16 %v920
    %v1681 = vunpack.c.h.b16 %v920
    %v1682 = vunpack.c.l.b16 %v921
    %v1683 = vunpack.c.h.b16 %v921
    %v1684 = vunpack.c.l.b16 %v922
    %v1685 = vunpack.c.h.b16 %v922
    %v1686 = vunpack.c.l.b16 %v923
    %v1687 = vunpack.c.h.b16 %v923
    %v1688 = vunpack.c.l.b16 %v924
    %v1689 = vunpack.c.h.b16 %v924
    %v1690 = vunpack.c.l.b16 %v925
    %v1691 = vunpack.c.h.b16 %v925
    %v1692 = vunpack.c.l.b16 %v926
    %v1693 = vunpack.c.h.b16 %v926
    %v1694 = vunpack.c.l.b16 %v927
    %v1695 = vunpack.c.h.b16 %v927
    %v1696 = vunpack.c.l.b16 %v928
    %v1697 = vunpack.c.h.b16 %v928
    %v1698 = vunpack.c.l.b16 %v929
    %v1699 = vunpack.c.h.b16 %v929
    %v1700 = vunpack.c.l.b16 %v930
    %v1701 = vunpack.c.h.b16 %v930
    %v1702 = vunpack.c.l.b16 %v931
    %v1703 = vunpack.c.h.b16 %v931
    %v1704 = vunpack.c.l.b16 %v932
    %v1705 = vunpack.c.h.b16 %v932
    %v1706 = vunpack.c.l.b16 %v933
    %v1707 = vunpack.c.h.b16 %v933
    %v1708 = vunpack.c.l.b16 %v934
    %v1709 = vunpack.c.h.b16 %v934
    %v1710 = vunpack.c.l.b16 %v935
    %v1711 = vunpack.c.h.b16 %v935
    %v1712 = vunpack.c.l.b16 %v936
    %v1713 = vunpack.c.h.b16 %v936
    %v1714 = vunpack.c.l.b16 %v937
    %v1715 = vunpack.c.h.b16 %v937
    %v1716 = vunpack.c.l.b16 %v938
    %v1717 = vunpack.c.h.b16 %v938
    %v1718 = vunpack.c.l.b16 %v939
    %v1719 = vunpack.c.h.b16 %v939
    %v1720 = vunpack.c.l.b16 %v940
    %v1721 = vunpack.c.h.b16 %v940
    %v1722 = vunpack.c.l.b16 %v941
    %v1723 = vunpack.c.h.b16 %v941
    %v1724 = vunpack.c.l.b16 %v942
    %v1725 = vunpack.c.h.b16 %v942
    %v1726 = vunpack.c.l.b16 %v943
    %v1727 = vunpack.c.h.b16 %v943
    %v1728 = vunpack.c.l.b16 %v944
    %v1729 = vunpack.c.h.b16 %v944
    %v1730 = vpack.c.b16 %v1226, %v1218
    %v1731 = vpack.c.b16 %v1227, %v1219
    %v1732 = vpack.c.b16 %v1228, %v1220
    %v1733 = vpack.c.b16 %v1229, %v1221
    %v1734 = vpack.c.b16 %v1230, %v1222
    %v1735 = vpack.c.b16 %v1231, %v1223
    %v1736 = vpack.c.b16 %v1232, %v1224
    %v1737 = vpack.c.b16 %v1233, %v1225
    %v1738 = vpack.c.b16 %v1242, %v1234
    %v1739 = vpack.c.b16 %v1243, %v1235
    %v1740 = vpack.c.b16 %v1244, %v1236
    %v1741 = vpack.c.b16 %v1245, %v1237
    %v1742 = vpack.c.b16 %v1246, %v1238
    %v1743 = vpack.c.b16 %v1247, %v1239
    %v1744 = vpack.c.b16 %v1248, %v1240
    %v1745 = vpack.c.b16 %v1249, %v1241
    %v1746 = vpack.c.b16 %v1258, %v1250
    %v1747 = vpack.c.b16 %v1259, %v1251
    %v1748 = vpack.c.b16 %v1260, %v1252
    %v1749 = vpack.c.b16 %v1261, %v1253
    %v1750 = vpack.c.b16 %v1262, %v1254
    %v1751 = vpack.c.b16 %v1263, %v1255
    %v1752 = vpack.c.b16 %v1264, %v1256
    %v1753 = vpack.c.b16 %v1265, %v1257
    %v1754 = vpack.c.b16 %v1274, %v1266
    %v1755 = vpack.c.b16 %v1275, %v1267
    %v1756 = vpack.c.b16 %v1276, %v1268
    %v1757 = vpack.c.b16 %v1277, %v1269
    %v1758 = vpack.c.b16 %v1278, %v1270
    %v1759 = vpack.c.b16 %v1279, %v1271
    %v1760 = vpack.c.b16 %v1280, %v1272
    %v1761 = vpack.c.b16 %v1281, %v1273
    %v1762 = vpack.c.b16 %v1290, %v1282
    %v1763 = vpack.c.b16 %v1291, %v1283
    %v1764 = vpack.c.b16 %v1292, %v1284
    %v1765 = vpack.c.b16 %v1293, %v1285
    %v1766 = vpack.c.b16 %v1294, %v1286
    %v1767 = vpack.c.b16 %v1295, %v1287
    %v1768 = vpack.c.b16 %v1296, %v1288
    %v1769 = vpack.c.b16 %v1297, %v1289
    %v1770 = vpack.c.b16 %v1306, %v1298
    %v1771 = vpack.c.b16 %v1307, %v1299
    %v1772 = vpack.c.b16 %v1308, %v1300
    %v1773 = vpack.c.b16 %v1309, %v1301
    %v1774 = vpack.c.b16 %v1310, %v1302
    %v1775 = vpack.c.b16 %v1311, %v1303
    %v1776 = vpack.c.b16 %v1312, %v1304
    %v1777 = vpack.c.b16 %v1313, %v1305
    %v1778 = vpack.c.b16 %v1322, %v1314
    %v1779 = vpack.c.b16 %v1323, %v1315
    %v1780 = vpack.c.b16 %v1324, %v1316
    %v1781 = vpack.c.b16 %v1325, %v1317
    %v1782 = vpack.c.b16 %v1326, %v1318
    %v1783 = vpack.c.b16 %v1327, %v1319
    %v1784 = vpack.c.b16 %v1328, %v1320
    %v1785 = vpack.c.b16 %v1329, %v1321
    %v1786 = vpack.c.b16 %v1338, %v1330
    %v1787 = vpack.c.b16 %v1339, %v1331
    %v1788 = vpack.c.b16 %v1340, %v1332
    %v1789 = vpack.c.b16 %v1341, %v1333
    %v1790 = vpack.c.b16 %v1342, %v1334
    %v1791 = vpack.c.b16 %v1343, %v1335
    %v1792 = vpack.c.b16 %v1344, %v1336
    %v1793 = vpack.c.b16 %v1345, %v1337
    %v1794 = vpack.c.b16 %v1354, %v1346
    %v1795 = vpack.c.b16 %v1355, %v1347
    %v1796 = vpack.c.b16 %v1356, %v1348
    %v1797 = vpack.c.b16 %v1357, %v1349
    %v1798 = vpack.c.b16 %v1358, %v1350
    %v1799 = vpack.c.b16 %v1359, %v1351
    %v1800 = vpack.c.b16 %v1360, %v1352
    %v1801 = vpack.c.b16 %v1361, %v1353
    %v1802 = vpack.c.b16 %v1370, %v1362
    %v1803 = vpack.c.b16 %v1371, %v1363
    %v1804 = vpack.c.b16 %v1372, %v1364
    %v1805 = vpack.c.b16 %v1373, %v1365
    %v1806 = vpack.c.b16 %v1374, %v1366
    %v1807 = vpack.c.b16 %v1375, %v1367
    %v1808 = vpack.c.b16 %v1376, %v1368
    %v1809 = vpack.c.b16 %v1377, %v1369
    %v1810 = vpack.c.b16 %v1386, %v1378
    %v1811 = vpack.c.b16 %v1387, %v1379
    %v1812 = vpack.c.b16 %v1388, %v1380
    %v1813 = vpack.c.b16 %v1389, %v1381
    %v1814 = vpack.c.b16 %v1390, %v1382
    %v1815 = vpack.c.b16 %v1391, %v1383
    %v1816 = vpack.c.b16 %v1392, %v1384
    %v1817 = vpack.c.b16 %v1393, %v1385
    %v1818 = vpack.c.b16 %v1402, %v1394
    %v1819 = vpack.c.b16 %v1403, %v1395
    %v1820 = vpack.c.b16 %v1404, %v1396
    %v1821 = vpack.c.b16 %v1405, %v1397
    %v1822 = vpack.c.b16 %v1406, %v1398
    %v1823 = vpack.c.b16 %v1407, %v1399
    %v1824 = vpack.c.b16 %v1408, %v1400
    %v1825 = vpack.c.b16 %v1409, %v1401
    %v1826 = vpack.c.b16 %v1418, %v1410
    %v1827 = vpack.c.b16 %v1419, %v1411
    %v1828 = vpack.c.b16 %v1420, %v1412
    %v1829 = vpack.c.b16 %v1421, %v1413
    %v1830 = vpack.c.b16 %v1422, %v1414
    %v1831 = vpack.c.b16 %v1423, %v1415
    %v1832 = vpack.c.b16 %v1424, %v1416
    %v1833 = vpack.c.b16 %v1425, %v1417
    %v1834 = vpack.c.b16 %v1434, %v1426
    %v1835 = vpack.c.b16 %v1435, %v1427
    %v1836 = vpack.c.b16 %v1436, %v1428
    %v1837 = vpack.c.b16 %v1437, %v1429
    %v1838 = vpack.c.b16 %v1438, %v1430
    %v1839 = vpack.c.b16 %v1439, %v1431
    %v1840 = vpack.c.b16 %v1440, %v1432
    %v1841 = vpack.c.b16 %v1441, %v1433
    %v1842 = vpack.c.b16 %v1450, %v1442
    %v1843 = vpack.c.b16 %v1451, %v1443
    %v1844 = vpack.c.b16 %v1452, %v1444
    %v1845 = vpack.c.b16 %v1453, %v1445
    %v1846 = vpack.c.b16 %v1454, %v1446
    %v1847 = vpack.c.b16 %v1455, %v1447
    %v1848 = vpack.c.b16 %v1456, %v1448
    %v1849 = vpack.c.b16 %v1457, %v1449
    %v1850 = vpack.c.b16 %v1466, %v1458
    %v1851 = vpack.c.b16 %v1467, %v1459
    %v1852 = vpack.c.b16 %v1468, %v1460
    %v1853 = vpack.c.b16 %v1469, %v1461
    %v1854 = vpack.c.b16 %v1470, %v1462
    %v1855 = vpack.c.b16 %v1471, %v1463
    %v1856 = vpack.c.b16 %v1472, %v1464
    %v1857 = vpack.c.b16 %v1473, %v1465
    %v1858 = vpack.c.b16 %v1482, %v1474
    %v1859 = vpack.c.b16 %v1483, %v1475
    %v1860 = vpack.c.b16 %v1484, %v1476
    %v1861 = vpack.c.b16 %v1485, %v1477
    %v1862 = vpack.c.b16 %v1486, %v1478
    %v1863 = vpack.c.b16 %v1487, %v1479
    %v1864 = vpack.c.b16 %v1488, %v1480
    %v1865 = vpack.c.b16 %v1489, %v1481
    %v1866 = vpack.c.b16 %v1498, %v1490
    %v1867 = vpack.c.b16 %v1499, %v1491
    %v1868 = vpack.c.b16 %v1500, %v1492
    %v1869 = vpack.c.b16 %v1501, %v1493
    %v1870 = vpack.c.b16 %v1502, %v1494
    %v1871 = vpack.c.b16 %v1503, %v1495
    %v1872 = vpack.c.b16 %v1504, %v1496
    %v1873 = vpack.c.b16 %v1505, %v1497
    %v1874 = vpack.c.b16 %v1514, %v1506
    %v1875 = vpack.c.b16 %v1515, %v1507
    %v1876 = vpack.c.b16 %v1516, %v1508
    %v1877 = vpack.c.b16 %v1517, %v1509
    %v1878 = vpack.c.b16 %v1518, %v1510
    %v1879 = vpack.c.b16 %v1519, %v1511
    %v1880 = vpack.c.b16 %v1520, %v1512
    %v1881 = vpack.c.b16 %v1521, %v1513
    %v1882 = vpack.c.b16 %v1530, %v1522
    %v1883 = vpack.c.b16 %v1531, %v1523
    %v1884 = vpack.c.b16 %v1532, %v1524
    %v1885 = vpack.c.b16 %v1533, %v1525
    %v1886 = vpack.c.b16 %v1534, %v1526
    %v1887 = vpack.c.b16 %v1535, %v1527
    %v1888 = vpack.c.b16 %v1536, %v1528
    %v1889 = vpack.c.b16 %v1537, %v1529
    %v1890 = vpack.c.b16 %v1546, %v1538
    %v1891 = vpack.c.b16 %v1547, %v1539
    %v1892 = vpack.c.b16 %v1548, %v1540
    %v1893 = vpack.c.b16 %v1549, %v1541
    %v1894 = vpack.c.b16 %v1550, %v1542
    %v1895 = vpack.c.b16 %v1551, %v1543
    %v1896 = vpack.c.b16 %v1552, %v1544
    %v1897 = vpack.c.b16 %v1553, %v1545
    %v1898 = vpack.c.b16 %v1562, %v1554
    %v1899 = vpack.c.b16 %v1563, %v1555
    %v1900 = vpack.c.b16 %v1564, %v1556
    %v1901 = vpack.c.b16 %v1565, %v1557
    %v1902 = vpack.c.b16 %v1566, %v1558
    %v1903 = vpack.c.b16 %v1567, %v1559
    %v1904 = vpack.c.b16 %v1568, %v1560
    %v1905 = vpack.c.b16 %v1569, %v1561
    %v1906 = vpack.c.b16 %v1578, %v1570
    %v1907 = vpack.c.b16 %v1579, %v1571
    %v1908 = vpack.c.b16 %v1580, %v1572
    %v1909 = vpack.c.b16 %v1581, %v1573
    %v1910 = vpack.c.b16 %v1582, %v1574
    %v1911 = vpack.c.b16 %v1583, %v1575
    %v1912 = vpack.c.b16 %v1584, %v1576
    %v1913 = vpack.c.b16 %v1585, %v1577
    %v1914 = vpack.c.b16 %v1594, %v1586
    %v1915 = vpack.c.b16 %v1595, %v1587
    %v1916 = vpack.c.b16 %v1596, %v1588
    %v1917 = vpack.c.b16 %v1597, %v1589
    %v1918 = vpack.c.b16 %v1598, %v1590
    %v1919 = vpack.c.b16 %v1599, %v1591
    %v1920 = vpack.c.b16 %v1600, %v1592
    %v1921 = vpack.c.b16 %v1601, %v1593
    %v1922 = vpack.c.b16 %v1610, %v1602
    %v1923 = vpack.c.b16 %v1611, %v1603
    %v1924 = vpack.c.b16 %v1612, %v1604
    %v1925 = vpack.c.b16 %v1613, %v1605
    %v1926 = vpack.c.b16 %v1614, %v1606
    %v1927 = vpack.c.b16 %v1615, %v1607
    %v1928 = vpack.c.b16 %v1616, %v1608
    %v1929 = vpack.c.b16 %v1617, %v1609
    %v1930 = vpack.c.b16 %v1626, %v1618
    %v1931 = vpack.c.b16 %v1627, %v1619
    %v1932 = vpack.c.b16 %v1628, %v1620
    %v1933 = vpack.c.b16 %v1629, %v1621
    %v1934 = vpack.c.b16 %v1630, %v1622
    %v1935 = vpack.c.b16 %v1631, %v1623
    %v1936 = vpack.c.b16 %v1632, %v1624
    %v1937 = vpack.c.b16 %v1633, %v1625
    %v1938 = vpack.c.b16 %v1642, %v1634
    %v1939 = vpack.c.b16 %v1643, %v1635
    %v1940 = vpack.c.b16 %v1644, %v1636
    %v1941 = vpack.c.b16 %v1645, %v1637
    %v1942 = vpack.c.b16 %v1646, %v1638
    %v1943 = vpack.c.b16 %v1647, %v1639
    %v1944 = vpack.c.b16 %v1648, %v1640
    %v1945 = vpack.c.b16 %v1649, %v1641
    %v1946 = vpack.c.b16 %v1658, %v1650
    %v1947 = vpack.c.b16 %v1659, %v1651
    %v1948 = vpack.c.b16 %v1660, %v1652
    %v1949 = vpack.c.b16 %v1661, %v1653
    %v1950 = vpack.c.b16 %v1662, %v1654
    %v1951 = vpack.c.b16 %v1663, %v1655
    %v1952 = vpack.c.b16 %v1664, %v1656
    %v1953 = vpack.c.b16 %v1665, %v1657
    %v1954 = vpack.c.b16 %v1674, %v1666
    %v1955 = vpack.c.b16 %v1675, %v1667
    %v1956 = vpack.c.b16 %v1676, %v1668
    %v1957 = vpack.c.b16 %v1677, %v1669
    %v1958 = vpack.c.b16 %v1678, %v1670
    %v1959 = vpack.c.b16 %v1679, %v1671
    %v1960 = vpack.c.b16 %v1680, %v1672
    %v1961 = vpack.c.b16 %v1681, %v1673
    %v1962 = vpack.c.b16 %v1690, %v1682
    %v1963 = vpack.c.b16 %v1691, %v1683
    %v1964 = vpack.c.b16 %v1692, %v1684
    %v1965 = vpack.c.b16 %v1693, %v1685
    %v1966 = vpack.c.b16 %v1694, %v1686
    %v1967 = vpack.c.b16 %v1695, %v1687
    %v1968 = vpack.c.b16 %v1696, %v1688
    %v1969 = vpack.c.b16 %v1697, %v1689
    %v1970 = vpack.c.b16 %v1706, %v1698
    %v1971 = vpack.c.b16 %v1707, %v1699
    %v1972 = vpack.c.b16 %v1708, %v1700
    %v1973 = vpack.c.b16 %v1709, %v1701
    %v1974 = vpack.c.b16 %v1710, %v1702
    %v1975 = vpack.c.b16 %v1711, %v1703
    %v1976 = vpack.c.b16 %v1712, %v1704
    %v1977 = vpack.c.b16 %v1713, %v1705
    %v1978 = vpack.c.b16 %v1722, %v1714
    %v1979 = vpack.c.b16 %v1723, %v1715
    %v1980 = vpack.c.b16 %v1724, %v1716
    %v1981 = vpack.c.b16 %v1725, %v1717
    %v1982 = vpack.c.b16 %v1726, %v1718
    %v1983 = vpack.c.b16 %v1727, %v1719
    %v1984 = vpack.c.b16 %v1728, %v1720
    %v1985 = vpack.c.b16 %v1729, %v1721
    %2242 = vmatpush.bf16.msra.mxu0 %v1786
    %2243 = vmatpush.bf16.msra.mxu0 %v1778
    %2244 = vmatpush.bf16.msra.mxu0 %v1770
    %2245 = vmatpush.bf16.msra.mxu0 %v1762
    %2246 = vmatpush.bf16.msra.mxu0 %v1754
    %2247 = vmatpush.bf16.msra.mxu0 %v1746
    %2248 = vmatpush.bf16.msra.mxu0 %v1738
    %2249 = vmatpush.bf16.msra.mxu0 %v1730
    %2250 = vmatmul.bf16.gmra.mxu0 %v685
    %v2251 = vpop.f32.mrf.mxu0
    %v2252 = vadd.f32 %v946, %v2251
    %v2253 = vpop.f32.mrf.mxu0
    %2254 = vdwg.mxu0
    %2255 = vmatpush.bf16.msra.mxu0 %v1850
    %2256 = vmatpush.bf16.msra.mxu0 %v1842
    %2257 = vmatpush.bf16.msra.mxu0 %v1834
    %2258 = vmatpush.bf16.msra.mxu0 %v1826
    %2259 = vmatpush.bf16.msra.mxu0 %v1818
    %2260 = vmatpush.bf16.msra.mxu0 %v1810
    %2261 = vmatpush.bf16.msra.mxu0 %v1802
    %2262 = vmatpush.bf16.msra.mxu0 %v1794
    %2263 = vmatmul.bf16.gmra.mxu0 %v686
    %v2264 = vpop.f32.mrf.mxu0
    %v2265 = vadd.f32 %v2252, %v2264
    %v2266 = vpop.f32.mrf.mxu0
    %2267 = vdwg.mxu0
    %2268 = vmatpush.bf16.msra.mxu0 %v1914
    %2269 = vmatpush.bf16.msra.mxu0 %v1906
    %2270 = vmatpush.bf16.msra.mxu0 %v1898
    %2271 = vmatpush.bf16.msra.mxu0 %v1890
    %2272 = vmatpush.bf16.msra.mxu0 %v1882
    %2273 = vmatpush.bf16.msra.mxu0 %v1874
    %2274 = vmatpush.bf16.msra.mxu0 %v1866
    %2275 = vmatpush.bf16.msra.mxu0 %v1858
    %2276 = vmatmul.bf16.gmra.mxu0 %v687
    %v2277 = vpop.f32.mrf.mxu0
    %v2278 = vadd.f32 %v2265, %v2277
    %v2279 = vpop.f32.mrf.mxu0
    %2280 = vdwg.mxu0
    %2281 = vmatpush.bf16.msra.mxu0 %v1978
    %2282 = vmatpush.bf16.msra.mxu0 %v1970
    %2283 = vmatpush.bf16.msra.mxu0 %v1962
    %2284 = vmatpush.bf16.msra.mxu0 %v1954
    %2285 = vmatpush.bf16.msra.mxu0 %v1946
    %2286 = vmatpush.bf16.msra.mxu0 %v1938
    %2287 = vmatpush.bf16.msra.mxu0 %v1930
    %2288 = vmatpush.bf16.msra.mxu0 %v1922
    %2289 = vmatmul.bf16.gmra.mxu0 %v688
    %v2290 = vpop.f32.mrf.mxu0
    %v2291 = vadd.f32 %v2278, %v2290
    %v2292 = vpop.f32.mrf.mxu0
    %2293 = vdwg.mxu0
    %2294 = vmatpush.bf16.msra.mxu0 %v1787
    %2295 = vmatpush.bf16.msra.mxu0 %v1779
    %2296 = vmatpush.bf16.msra.mxu0 %v1771
    %2297 = vmatpush.bf16.msra.mxu0 %v1763
    %2298 = vmatpush.bf16.msra.mxu0 %v1755
    %2299 = vmatpush.bf16.msra.mxu0 %v1747
    %2300 = vmatpush.bf16.msra.mxu0 %v1739
    %2301 = vmatpush.bf16.msra.mxu0 %v1731
    %2302 = vmatmul.bf16.gmra.mxu0 %v685
    %v2303 = vpop.f32.mrf.mxu0
    %v2304 = vadd.f32 %v947, %v2303
    %v2305 = vpop.f32.mrf.mxu0
    %2306 = vdwg.mxu0
    %2307 = vmatpush.bf16.msra.mxu0 %v1851
    %2308 = vmatpush.bf16.msra.mxu0 %v1843
    %2309 = vmatpush.bf16.msra.mxu0 %v1835
    %2310 = vmatpush.bf16.msra.mxu0 %v1827
    %2311 = vmatpush.bf16.msra.mxu0 %v1819
    %2312 = vmatpush.bf16.msra.mxu0 %v1811
    %2313 = vmatpush.bf16.msra.mxu0 %v1803
    %2314 = vmatpush.bf16.msra.mxu0 %v1795
    %2315 = vmatmul.bf16.gmra.mxu0 %v686
    %v2316 = vpop.f32.mrf.mxu0
    %v2317 = vadd.f32 %v2304, %v2316
    %v2318 = vpop.f32.mrf.mxu0
    %2319 = vdwg.mxu0
    %2320 = vmatpush.bf16.msra.mxu0 %v1915
    %2321 = vmatpush.bf16.msra.mxu0 %v1907
    %2322 = vmatpush.bf16.msra.mxu0 %v1899
    %2323 = vmatpush.bf16.msra.mxu0 %v1891
    %2324 = vmatpush.bf16.msra.mxu0 %v1883
    %2325 = vmatpush.bf16.msra.mxu0 %v1875
    %2326 = vmatpush.bf16.msra.mxu0 %v1867
    %2327 = vmatpush.bf16.msra.mxu0 %v1859
    %2328 = vmatmul.bf16.gmra.mxu0 %v687
    %v2329 = vpop.f32.mrf.mxu0
    %v2330 = vadd.f32 %v2317, %v2329
    %v2331 = vpop.f32.mrf.mxu0
    %2332 = vdwg.mxu0
    %2333 = vmatpush.bf16.msra.mxu0 %v1979
    %2334 = vmatpush.bf16.msra.mxu0 %v1971
    %2335 = vmatpush.bf16.msra.mxu0 %v1963
    %2336 = vmatpush.bf16.msra.mxu0 %v1955
    %2337 = vmatpush.bf16.msra.mxu0 %v1947
    %2338 = vmatpush.bf16.msra.mxu0 %v1939
    %2339 = vmatpush.bf16.msra.mxu0 %v1931
    %2340 = vmatpush.bf16.msra.mxu0 %v1923
    %2341 = vmatmul.bf16.gmra.mxu0 %v688
    %v2342 = vpop.f32.mrf.mxu0
    %v2343 = vadd.f32 %v2330, %v2342
    %v2344 = vpop.f32.mrf.mxu0
    %2345 = vdwg.mxu0
    %2346 = vmatpush.bf16.msra.mxu0 %v1788
    %2347 = vmatpush.bf16.msra.mxu0 %v1780
    %2348 = vmatpush.bf16.msra.mxu0 %v1772
    %2349 = vmatpush.bf16.msra.mxu0 %v1764
    %2350 = vmatpush.bf16.msra.mxu0 %v1756
    %2351 = vmatpush.bf16.msra.mxu0 %v1748
    %2352 = vmatpush.bf16.msra.mxu0 %v1740
    %2353 = vmatpush.bf16.msra.mxu0 %v1732
    %2354 = vmatmul.bf16.gmra.mxu0 %v685
    %v2355 = vpop.f32.mrf.mxu0
    %v2356 = vadd.f32 %v948, %v2355
    %v2357 = vpop.f32.mrf.mxu0
    %2358 = vdwg.mxu0
    %2359 = vmatpush.bf16.msra.mxu0 %v1852
    %2360 = vmatpush.bf16.msra.mxu0 %v1844
    %2361 = vmatpush.bf16.msra.mxu0 %v1836
    %2362 = vmatpush.bf16.msra.mxu0 %v1828
    %2363 = vmatpush.bf16.msra.mxu0 %v1820
    %2364 = vmatpush.bf16.msra.mxu0 %v1812
    %2365 = vmatpush.bf16.msra.mxu0 %v1804
    %2366 = vmatpush.bf16.msra.mxu0 %v1796
    %2367 = vmatmul.bf16.gmra.mxu0 %v686
    %v2368 = vpop.f32.mrf.mxu0
    %v2369 = vadd.f32 %v2356, %v2368
    %v2370 = vpop.f32.mrf.mxu0
    %2371 = vdwg.mxu0
    %2372 = vmatpush.bf16.msra.mxu0 %v1916
    %2373 = vmatpush.bf16.msra.mxu0 %v1908
    %2374 = vmatpush.bf16.msra.mxu0 %v1900
    %2375 = vmatpush.bf16.msra.mxu0 %v1892
    %2376 = vmatpush.bf16.msra.mxu0 %v1884
    %2377 = vmatpush.bf16.msra.mxu0 %v1876
    %2378 = vmatpush.bf16.msra.mxu0 %v1868
    %2379 = vmatpush.bf16.msra.mxu0 %v1860
    %2380 = vmatmul.bf16.gmra.mxu0 %v687
    %v2381 = vpop.f32.mrf.mxu0
    %v2382 = vadd.f32 %v2369, %v2381
    %v2383 = vpop.f32.mrf.mxu0
    %2384 = vdwg.mxu0
    %2385 = vmatpush.bf16.msra.mxu0 %v1980
    %2386 = vmatpush.bf16.msra.mxu0 %v1972
    %2387 = vmatpush.bf16.msra.mxu0 %v1964
    %2388 = vmatpush.bf16.msra.mxu0 %v1956
    %2389 = vmatpush.bf16.msra.mxu0 %v1948
    %2390 = vmatpush.bf16.msra.mxu0 %v1940
    %2391 = vmatpush.bf16.msra.mxu0 %v1932
    %2392 = vmatpush.bf16.msra.mxu0 %v1924
    %2393 = vmatmul.bf16.gmra.mxu0 %v688
    %v2394 = vpop.f32.mrf.mxu0
    %v2395 = vadd.f32 %v2382, %v2394
    %v2396 = vpop.f32.mrf.mxu0
    %2397 = vdwg.mxu0
    %2398 = vmatpush.bf16.msra.mxu0 %v1789
    %2399 = vmatpush.bf16.msra.mxu0 %v1781
    %2400 = vmatpush.bf16.msra.mxu0 %v1773
    %2401 = vmatpush.bf16.msra.mxu0 %v1765
    %2402 = vmatpush.bf16.msra.mxu0 %v1757
    %2403 = vmatpush.bf16.msra.mxu0 %v1749
    %2404 = vmatpush.bf16.msra.mxu0 %v1741
    %2405 = vmatpush.bf16.msra.mxu0 %v1733
    %2406 = vmatmul.bf16.gmra.mxu0 %v685
    %v2407 = vpop.f32.mrf.mxu0
    %v2408 = vadd.f32 %v949, %v2407
    %v2409 = vpop.f32.mrf.mxu0
    %2410 = vdwg.mxu0
    %2411 = vmatpush.bf16.msra.mxu0 %v1853
    %2412 = vmatpush.bf16.msra.mxu0 %v1845
    %2413 = vmatpush.bf16.msra.mxu0 %v1837
    %2414 = vmatpush.bf16.msra.mxu0 %v1829
    %2415 = vmatpush.bf16.msra.mxu0 %v1821
    %2416 = vmatpush.bf16.msra.mxu0 %v1813
    %2417 = vmatpush.bf16.msra.mxu0 %v1805
    %2418 = vmatpush.bf16.msra.mxu0 %v1797
    %2419 = vmatmul.bf16.gmra.mxu0 %v686
    %v2420 = vpop.f32.mrf.mxu0
    %v2421 = vadd.f32 %v2408, %v2420
    %v2422 = vpop.f32.mrf.mxu0
    %2423 = vdwg.mxu0
    %2424 = vmatpush.bf16.msra.mxu0 %v1917
    %2425 = vmatpush.bf16.msra.mxu0 %v1909
    %2426 = vmatpush.bf16.msra.mxu0 %v1901
    %2427 = vmatpush.bf16.msra.mxu0 %v1893
    %2428 = vmatpush.bf16.msra.mxu0 %v1885
    %2429 = vmatpush.bf16.msra.mxu0 %v1877
    %2430 = vmatpush.bf16.msra.mxu0 %v1869
    %2431 = vmatpush.bf16.msra.mxu0 %v1861
    %2432 = vmatmul.bf16.gmra.mxu0 %v687
    %v2433 = vpop.f32.mrf.mxu0
    %v2434 = vadd.f32 %v2421, %v2433
    %v2435 = vpop.f32.mrf.mxu0
    %2436 = vdwg.mxu0
    %2437 = vmatpush.bf16.msra.mxu0 %v1981
    %2438 = vmatpush.bf16.msra.mxu0 %v1973
    %2439 = vmatpush.bf16.msra.mxu0 %v1965
    %2440 = vmatpush.bf16.msra.mxu0 %v1957
    %2441 = vmatpush.bf16.msra.mxu0 %v1949
    %2442 = vmatpush.bf16.msra.mxu0 %v1941
    %2443 = vmatpush.bf16.msra.mxu0 %v1933
    %2444 = vmatpush.bf16.msra.mxu0 %v1925
    %2445 = vmatmul.bf16.gmra.mxu0 %v688
    %v2446 = vpop.f32.mrf.mxu0
    %v2447 = vadd.f32 %v2434, %v2446
    %v2448 = vpop.f32.mrf.mxu0
    %2449 = vdwg.mxu0
    %2450 = vmatpush.bf16.msra.mxu0 %v1790
    %2451 = vmatpush.bf16.msra.mxu0 %v1782
    %2452 = vmatpush.bf16.msra.mxu0 %v1774
    %2453 = vmatpush.bf16.msra.mxu0 %v1766
    %2454 = vmatpush.bf16.msra.mxu0 %v1758
    %2455 = vmatpush.bf16.msra.mxu0 %v1750
    %2456 = vmatpush.bf16.msra.mxu0 %v1742
    %2457 = vmatpush.bf16.msra.mxu0 %v1734
    %2458 = vmatmul.bf16.gmra.mxu0 %v685
    %v2459 = vpop.f32.mrf.mxu0
    %v2460 = vadd.f32 %v950, %v2459
    %v2461 = vpop.f32.mrf.mxu0
    %2462 = vdwg.mxu0
    %2463 = vmatpush.bf16.msra.mxu0 %v1854
    %2464 = vmatpush.bf16.msra.mxu0 %v1846
    %2465 = vmatpush.bf16.msra.mxu0 %v1838
    %2466 = vmatpush.bf16.msra.mxu0 %v1830
    %2467 = vmatpush.bf16.msra.mxu0 %v1822
    %2468 = vmatpush.bf16.msra.mxu0 %v1814
    %2469 = vmatpush.bf16.msra.mxu0 %v1806
    %2470 = vmatpush.bf16.msra.mxu0 %v1798
    %2471 = vmatmul.bf16.gmra.mxu0 %v686
    %v2472 = vpop.f32.mrf.mxu0
    %v2473 = vadd.f32 %v2460, %v2472
    %v2474 = vpop.f32.mrf.mxu0
    %2475 = vdwg.mxu0
    %2476 = vmatpush.bf16.msra.mxu0 %v1918
    %2477 = vmatpush.bf16.msra.mxu0 %v1910
    %2478 = vmatpush.bf16.msra.mxu0 %v1902
    %2479 = vmatpush.bf16.msra.mxu0 %v1894
    %2480 = vmatpush.bf16.msra.mxu0 %v1886
    %2481 = vmatpush.bf16.msra.mxu0 %v1878
    %2482 = vmatpush.bf16.msra.mxu0 %v1870
    %2483 = vmatpush.bf16.msra.mxu0 %v1862
    %2484 = vmatmul.bf16.gmra.mxu0 %v687
    %v2485 = vpop.f32.mrf.mxu0
    %v2486 = vadd.f32 %v2473, %v2485
    %v2487 = vpop.f32.mrf.mxu0
    %2488 = vdwg.mxu0
    %2489 = vmatpush.bf16.msra.mxu0 %v1982
    %2490 = vmatpush.bf16.msra.mxu0 %v1974
    %2491 = vmatpush.bf16.msra.mxu0 %v1966
    %2492 = vmatpush.bf16.msra.mxu0 %v1958
    %2493 = vmatpush.bf16.msra.mxu0 %v1950
    %2494 = vmatpush.bf16.msra.mxu0 %v1942
    %2495 = vmatpush.bf16.msra.mxu0 %v1934
    %2496 = vmatpush.bf16.msra.mxu0 %v1926
    %2497 = vmatmul.bf16.gmra.mxu0 %v688
    %v2498 = vpop.f32.mrf.mxu0
    %v2499 = vadd.f32 %v2486, %v2498
    %v2500 = vpop.f32.mrf.mxu0
    %2501 = vdwg.mxu0
    %2502 = vmatpush.bf16.msra.mxu0 %v1791
    %2503 = vmatpush.bf16.msra.mxu0 %v1783
    %2504 = vmatpush.bf16.msra.mxu0 %v1775
    %2505 = vmatpush.bf16.msra.mxu0 %v1767
    %2506 = vmatpush.bf16.msra.mxu0 %v1759
    %2507 = vmatpush.bf16.msra.mxu0 %v1751
    %2508 = vmatpush.bf16.msra.mxu0 %v1743
    %2509 = vmatpush.bf16.msra.mxu0 %v1735
    %2510 = vmatmul.bf16.gmra.mxu0 %v685
    %v2511 = vpop.f32.mrf.mxu0
    %v2512 = vadd.f32 %v951, %v2511
    %v2513 = vpop.f32.mrf.mxu0
    %2514 = vdwg.mxu0
    %2515 = vmatpush.bf16.msra.mxu0 %v1855
    %2516 = vmatpush.bf16.msra.mxu0 %v1847
    %2517 = vmatpush.bf16.msra.mxu0 %v1839
    %2518 = vmatpush.bf16.msra.mxu0 %v1831
    %2519 = vmatpush.bf16.msra.mxu0 %v1823
    %2520 = vmatpush.bf16.msra.mxu0 %v1815
    %2521 = vmatpush.bf16.msra.mxu0 %v1807
    %2522 = vmatpush.bf16.msra.mxu0 %v1799
    %2523 = vmatmul.bf16.gmra.mxu0 %v686
    %v2524 = vpop.f32.mrf.mxu0
    %v2525 = vadd.f32 %v2512, %v2524
    %v2526 = vpop.f32.mrf.mxu0
    %2527 = vdwg.mxu0
    %2528 = vmatpush.bf16.msra.mxu0 %v1919
    %2529 = vmatpush.bf16.msra.mxu0 %v1911
    %2530 = vmatpush.bf16.msra.mxu0 %v1903
    %2531 = vmatpush.bf16.msra.mxu0 %v1895
    %2532 = vmatpush.bf16.msra.mxu0 %v1887
    %2533 = vmatpush.bf16.msra.mxu0 %v1879
    %2534 = vmatpush.bf16.msra.mxu0 %v1871
    %2535 = vmatpush.bf16.msra.mxu0 %v1863
    %2536 = vmatmul.bf16.gmra.mxu0 %v687
    %v2537 = vpop.f32.mrf.mxu0
    %v2538 = vadd.f32 %v2525, %v2537
    %v2539 = vpop.f32.mrf.mxu0
    %2540 = vdwg.mxu0
    %2541 = vmatpush.bf16.msra.mxu0 %v1983
    %2542 = vmatpush.bf16.msra.mxu0 %v1975
    %2543 = vmatpush.bf16.msra.mxu0 %v1967
    %2544 = vmatpush.bf16.msra.mxu0 %v1959
    %2545 = vmatpush.bf16.msra.mxu0 %v1951
    %2546 = vmatpush.bf16.msra.mxu0 %v1943
    %2547 = vmatpush.bf16.msra.mxu0 %v1935
    %2548 = vmatpush.bf16.msra.mxu0 %v1927
    %2549 = vmatmul.bf16.gmra.mxu0 %v688
    %v2550 = vpop.f32.mrf.mxu0
    %v2551 = vadd.f32 %v2538, %v2550
    %v2552 = vpop.f32.mrf.mxu0
    %2553 = vdwg.mxu0
    %2554 = vmatpush.bf16.msra.mxu0 %v1792
    %2555 = vmatpush.bf16.msra.mxu0 %v1784
    %2556 = vmatpush.bf16.msra.mxu0 %v1776
    %2557 = vmatpush.bf16.msra.mxu0 %v1768
    %2558 = vmatpush.bf16.msra.mxu0 %v1760
    %2559 = vmatpush.bf16.msra.mxu0 %v1752
    %2560 = vmatpush.bf16.msra.mxu0 %v1744
    %2561 = vmatpush.bf16.msra.mxu0 %v1736
    %2562 = vmatmul.bf16.gmra.mxu0 %v685
    %v2563 = vpop.f32.mrf.mxu0
    %v2564 = vadd.f32 %v952, %v2563
    %v2565 = vpop.f32.mrf.mxu0
    %2566 = vdwg.mxu0
    %2567 = vmatpush.bf16.msra.mxu0 %v1856
    %2568 = vmatpush.bf16.msra.mxu0 %v1848
    %2569 = vmatpush.bf16.msra.mxu0 %v1840
    %2570 = vmatpush.bf16.msra.mxu0 %v1832
    %2571 = vmatpush.bf16.msra.mxu0 %v1824
    %2572 = vmatpush.bf16.msra.mxu0 %v1816
    %2573 = vmatpush.bf16.msra.mxu0 %v1808
    %2574 = vmatpush.bf16.msra.mxu0 %v1800
    %2575 = vmatmul.bf16.gmra.mxu0 %v686
    %v2576 = vpop.f32.mrf.mxu0
    %v2577 = vadd.f32 %v2564, %v2576
    %v2578 = vpop.f32.mrf.mxu0
    %2579 = vdwg.mxu0
    %2580 = vmatpush.bf16.msra.mxu0 %v1920
    %2581 = vmatpush.bf16.msra.mxu0 %v1912
    %2582 = vmatpush.bf16.msra.mxu0 %v1904
    %2583 = vmatpush.bf16.msra.mxu0 %v1896
    %2584 = vmatpush.bf16.msra.mxu0 %v1888
    %2585 = vmatpush.bf16.msra.mxu0 %v1880
    %2586 = vmatpush.bf16.msra.mxu0 %v1872
    %2587 = vmatpush.bf16.msra.mxu0 %v1864
    %2588 = vmatmul.bf16.gmra.mxu0 %v687
    %v2589 = vpop.f32.mrf.mxu0
    %v2590 = vadd.f32 %v2577, %v2589
    %v2591 = vpop.f32.mrf.mxu0
    %2592 = vdwg.mxu0
    %2593 = vmatpush.bf16.msra.mxu0 %v1984
    %2594 = vmatpush.bf16.msra.mxu0 %v1976
    %2595 = vmatpush.bf16.msra.mxu0 %v1968
    %2596 = vmatpush.bf16.msra.mxu0 %v1960
    %2597 = vmatpush.bf16.msra.mxu0 %v1952
    %2598 = vmatpush.bf16.msra.mxu0 %v1944
    %2599 = vmatpush.bf16.msra.mxu0 %v1936
    %2600 = vmatpush.bf16.msra.mxu0 %v1928
    %2601 = vmatmul.bf16.gmra.mxu0 %v688
    %v2602 = vpop.f32.mrf.mxu0
    %v2603 = vadd.f32 %v2590, %v2602
    %v2604 = vpop.f32.mrf.mxu0
    %2605 = vdwg.mxu0
    %2606 = vmatpush.bf16.msra.mxu0 %v1793
    %2607 = vmatpush.bf16.msra.mxu0 %v1785
    %2608 = vmatpush.bf16.msra.mxu0 %v1777
    %2609 = vmatpush.bf16.msra.mxu0 %v1769
    %2610 = vmatpush.bf16.msra.mxu0 %v1761
    %2611 = vmatpush.bf16.msra.mxu0 %v1753
    %2612 = vmatpush.bf16.msra.mxu0 %v1745
    %2613 = vmatpush.bf16.msra.mxu0 %v1737
    %2614 = vmatmul.bf16.gmra.mxu0 %v685
    %v2615 = vpop.f32.mrf.mxu0
    %v2616 = vadd.f32 %v953, %v2615
    %v2617 = vpop.f32.mrf.mxu0
    %2618 = vdwg.mxu0
    %2619 = vmatpush.bf16.msra.mxu0 %v1857
    %2620 = vmatpush.bf16.msra.mxu0 %v1849
    %2621 = vmatpush.bf16.msra.mxu0 %v1841
    %2622 = vmatpush.bf16.msra.mxu0 %v1833
    %2623 = vmatpush.bf16.msra.mxu0 %v1825
    %2624 = vmatpush.bf16.msra.mxu0 %v1817
    %2625 = vmatpush.bf16.msra.mxu0 %v1809
    %2626 = vmatpush.bf16.msra.mxu0 %v1801
    %2627 = vmatmul.bf16.gmra.mxu0 %v686
    %v2628 = vpop.f32.mrf.mxu0
    %v2629 = vadd.f32 %v2616, %v2628
    %v2630 = vpop.f32.mrf.mxu0
    %2631 = vdwg.mxu0
    %2632 = vmatpush.bf16.msra.mxu0 %v1921
    %2633 = vmatpush.bf16.msra.mxu0 %v1913
    %2634 = vmatpush.bf16.msra.mxu0 %v1905
    %2635 = vmatpush.bf16.msra.mxu0 %v1897
    %2636 = vmatpush.bf16.msra.mxu0 %v1889
    %2637 = vmatpush.bf16.msra.mxu0 %v1881
    %2638 = vmatpush.bf16.msra.mxu0 %v1873
    %2639 = vmatpush.bf16.msra.mxu0 %v1865
    %2640 = vmatmul.bf16.gmra.mxu0 %v687
    %v2641 = vpop.f32.mrf.mxu0
    %v2642 = vadd.f32 %v2629, %v2641
    %v2643 = vpop.f32.mrf.mxu0
    %2644 = vdwg.mxu0
    %2645 = vmatpush.bf16.msra.mxu0 %v1985
    %2646 = vmatpush.bf16.msra.mxu0 %v1977
    %2647 = vmatpush.bf16.msra.mxu0 %v1969
    %2648 = vmatpush.bf16.msra.mxu0 %v1961
    %2649 = vmatpush.bf16.msra.mxu0 %v1953
    %2650 = vmatpush.bf16.msra.mxu0 %v1945
    %2651 = vmatpush.bf16.msra.mxu0 %v1937
    %2652 = vmatpush.bf16.msra.mxu0 %v1929
    %2653 = vmatmul.bf16.gmra.mxu0 %v688
    %v2654 = vpop.f32.mrf.mxu0
    %v2655 = vadd.f32 %v2642, %v2654
    %v2656 = vpop.f32.mrf.mxu0
    %2657 = vdwg.mxu0
    %v2658 = vmax.f32 %v2291, 0.0
    %v2659 = vmax.f32 %v2343, 0.0
    %v2660 = vmax.f32 %v2395, 0.0
    %v2661 = vmax.f32 %v2447, 0.0
    %v2662 = vmax.f32 %v2499, 0.0
    %v2663 = vmax.f32 %v2551, 0.0
    %v2664 = vmax.f32 %v2603, 0.0
    %v2665 = vmax.f32 %v2655, 0.0
    %v2666 = vpack.c.bf16 %v2658, %v2658
    %v2667 = vpack.c.bf16 %v2659, %v2659
    %v2668 = vpack.c.bf16 %v2660, %v2660
    %v2669 = vpack.c.bf16 %v2661, %v2661
    %v2670 = vpack.c.bf16 %v2662, %v2662
    %v2671 = vpack.c.bf16 %v2663, %v2663
    %v2672 = vpack.c.bf16 %v2664, %v2664
    %v2673 = vpack.c.bf16 %v2665, %v2665
    %v2674 = vld [vmem:[#allocation10] sm:$0xf]
    %v2675 = vld [vmem:[#allocation10 + $0x4] sm:$0xf]
    %v2676 = vld [vmem:[#allocation10 + $0x8] sm:$0xf]
    %v2677 = vld [vmem:[#allocation10 + $0xc] sm:$0xf]
    %v2678 = vld [vmem:[#allocation10 + $0x10] sm:$0xf]
    %v2679 = vld [vmem:[#allocation10 + $0x14] sm:$0xf]
    %v2680 = vld [vmem:[#allocation10 + $0x18] sm:$0xf]
    %v2681 = vld [vmem:[#allocation10 + $0x1c] sm:$0xf]
    %v2682 = vld [vmem:[#allocation10 + $0x20] sm:$0xf]
    %v2683 = vld [vmem:[#allocation10 + $0x24] sm:$0xf]
    %v2684 = vld [vmem:[#allocation10 + $0x28] sm:$0xf]
    %v2685 = vld [vmem:[#allocation10 + $0x2c] sm:$0xf]
    %v2686 = vld [vmem:[#allocation10 + $0x30] sm:$0xf]
    %v2687 = vld [vmem:[#allocation10 + $0x34] sm:$0xf]
    %v2688 = vld [vmem:[#allocation10 + $0x38] sm:$0xf]
    %v2689 = vld [vmem:[#allocation10 + $0x3c] sm:$0xf]
    %v2690 = vld [vmem:[#allocation10 + $0x40] sm:$0xf]
    %v2691 = vld [vmem:[#allocation10 + $0x44] sm:$0xf]
    %v2692 = vld [vmem:[#allocation10 + $0x48] sm:$0xf]
    %v2693 = vld [vmem:[#allocation10 + $0x4c] sm:$0xf]
    %v2694 = vld [vmem:[#allocation10 + $0x50] sm:$0xf]
    %v2695 = vld [vmem:[#allocation10 + $0x54] sm:$0xf]
    %v2696 = vld [vmem:[#allocation10 + $0x58] sm:$0xf]
    %v2697 = vld [vmem:[#allocation10 + $0x5c] sm:$0xf]
    %v2698 = vld [vmem:[#allocation10 + $0x60] sm:$0xf]
    %v2699 = vld [vmem:[#allocation10 + $0x64] sm:$0xf]
    %v2700 = vld [vmem:[#allocation10 + $0x68] sm:$0xf]
    %v2701 = vld [vmem:[#allocation10 + $0x6c] sm:$0xf]
    %v2702 = vld [vmem:[#allocation10 + $0x70] sm:$0xf]
    %v2703 = vld [vmem:[#allocation10 + $0x74] sm:$0xf]
    %v2704 = vld [vmem:[#allocation10 + $0x78] sm:$0xf]
    %v2705 = vld [vmem:[#allocation10 + $0x7c] sm:$0xf]
    %v2706 = vld [vmem:[#allocation10 + $0x80] sm:$0xf]
    %v2707 = vld [vmem:[#allocation10 + $0x84] sm:$0xf]
    %v2708 = vld [vmem:[#allocation10 + $0x88] sm:$0xf]
    %v2709 = vld [vmem:[#allocation10 + $0x8c] sm:$0xf]
    %v2710 = vld [vmem:[#allocation10 + $0x90] sm:$0xf]
    %v2711 = vld [vmem:[#allocation10 + $0x94] sm:$0xf]
    %v2712 = vld [vmem:[#allocation10 + $0x98] sm:$0xf]
    %v2713 = vld [vmem:[#allocation10 + $0x9c] sm:$0xf]
    %v2714 = vld [vmem:[#allocation10 + $0xa0] sm:$0xf]
    %v2715 = vld [vmem:[#allocation10 + $0xa4] sm:$0xf]
    %v2716 = vld [vmem:[#allocation10 + $0xa8] sm:$0xf]
    %v2717 = vld [vmem:[#allocation10 + $0xac] sm:$0xf]
    %v2718 = vld [vmem:[#allocation10 + $0xb0] sm:$0xf]
    %v2719 = vld [vmem:[#allocation10 + $0xb4] sm:$0xf]
    %v2720 = vld [vmem:[#allocation10 + $0xb8] sm:$0xf]
    %v2721 = vld [vmem:[#allocation10 + $0xbc] sm:$0xf]
    %v2722 = vld [vmem:[#allocation10 + $0xc0] sm:$0xf]
    %v2723 = vld [vmem:[#allocation10 + $0xc4] sm:$0xf]
    %v2724 = vld [vmem:[#allocation10 + $0xc8] sm:$0xf]
    %v2725 = vld [vmem:[#allocation10 + $0xcc] sm:$0xf]
    %v2726 = vld [vmem:[#allocation10 + $0xd0] sm:$0xf]
    %v2727 = vld [vmem:[#allocation10 + $0xd4] sm:$0xf]
    %v2728 = vld [vmem:[#allocation10 + $0xd8] sm:$0xf]
    %v2729 = vld [vmem:[#allocation10 + $0xdc] sm:$0xf]
    %v2730 = vld [vmem:[#allocation10 + $0xe0] sm:$0xf]
    %v2731 = vld [vmem:[#allocation10 + $0xe4] sm:$0xf]
    %v2732 = vld [vmem:[#allocation10 + $0xe8] sm:$0xf]
    %v2733 = vld [vmem:[#allocation10 + $0xec] sm:$0xf]
    %v2734 = vld [vmem:[#allocation10 + $0xf0] sm:$0xf]
    %v2735 = vld [vmem:[#allocation10 + $0xf4] sm:$0xf]
    %v2736 = vld [vmem:[#allocation10 + $0xf8] sm:$0xf]
    %v2737 = vld [vmem:[#allocation10 + $0xfc] sm:$0xf]
    %v2738 = vld [vmem:[#allocation10 + $0x100] sm:$0xf]
    %v2739 = vld [vmem:[#allocation10 + $0x104] sm:$0xf]
    %v2740 = vld [vmem:[#allocation10 + $0x108] sm:$0xf]
    %v2741 = vld [vmem:[#allocation10 + $0x10c] sm:$0xf]
    %v2742 = vld [vmem:[#allocation10 + $0x110] sm:$0xf]
    %v2743 = vld [vmem:[#allocation10 + $0x114] sm:$0xf]
    %v2744 = vld [vmem:[#allocation10 + $0x118] sm:$0xf]
    %v2745 = vld [vmem:[#allocation10 + $0x11c] sm:$0xf]
    %v2746 = vld [vmem:[#allocation10 + $0x120] sm:$0xf]
    %v2747 = vld [vmem:[#allocation10 + $0x124] sm:$0xf]
    %v2748 = vld [vmem:[#allocation10 + $0x128] sm:$0xf]
    %v2749 = vld [vmem:[#allocation10 + $0x12c] sm:$0xf]
    %v2750 = vld [vmem:[#allocation10 + $0x130] sm:$0xf]
    %v2751 = vld [vmem:[#allocation10 + $0x134] sm:$0xf]
    %v2752 = vld [vmem:[#allocation10 + $0x138] sm:$0xf]
    %v2753 = vld [vmem:[#allocation10 + $0x13c] sm:$0xf]
    %v2754 = vld [vmem:[#allocation10 + $0x140] sm:$0xf]
    %v2755 = vld [vmem:[#allocation10 + $0x144] sm:$0xf]
    %v2756 = vld [vmem:[#allocation10 + $0x148] sm:$0xf]
    %v2757 = vld [vmem:[#allocation10 + $0x14c] sm:$0xf]
    %v2758 = vld [vmem:[#allocation10 + $0x150] sm:$0xf]
    %v2759 = vld [vmem:[#allocation10 + $0x154] sm:$0xf]
    %v2760 = vld [vmem:[#allocation10 + $0x158] sm:$0xf]
    %v2761 = vld [vmem:[#allocation10 + $0x15c] sm:$0xf]
    %v2762 = vld [vmem:[#allocation10 + $0x160] sm:$0xf]
    %v2763 = vld [vmem:[#allocation10 + $0x164] sm:$0xf]
    %v2764 = vld [vmem:[#allocation10 + $0x168] sm:$0xf]
    %v2765 = vld [vmem:[#allocation10 + $0x16c] sm:$0xf]
    %v2766 = vld [vmem:[#allocation10 + $0x170] sm:$0xf]
    %v2767 = vld [vmem:[#allocation10 + $0x174] sm:$0xf]
    %v2768 = vld [vmem:[#allocation10 + $0x178] sm:$0xf]
    %v2769 = vld [vmem:[#allocation10 + $0x17c] sm:$0xf]
    %v2770 = vld [vmem:[#allocation10 + $0x180] sm:$0xf]
    %v2771 = vld [vmem:[#allocation10 + $0x184] sm:$0xf]
    %v2772 = vld [vmem:[#allocation10 + $0x188] sm:$0xf]
    %v2773 = vld [vmem:[#allocation10 + $0x18c] sm:$0xf]
    %v2774 = vld [vmem:[#allocation10 + $0x190] sm:$0xf]
    %v2775 = vld [vmem:[#allocation10 + $0x194] sm:$0xf]
    %v2776 = vld [vmem:[#allocation10 + $0x198] sm:$0xf]
    %v2777 = vld [vmem:[#allocation10 + $0x19c] sm:$0xf]
    %v2778 = vld [vmem:[#allocation10 + $0x1a0] sm:$0xf]
    %v2779 = vld [vmem:[#allocation10 + $0x1a4] sm:$0xf]
    %v2780 = vld [vmem:[#allocation10 + $0x1a8] sm:$0xf]
    %v2781 = vld [vmem:[#allocation10 + $0x1ac] sm:$0xf]
    %v2782 = vld [vmem:[#allocation10 + $0x1b0] sm:$0xf]
    %v2783 = vld [vmem:[#allocation10 + $0x1b4] sm:$0xf]
    %v2784 = vld [vmem:[#allocation10 + $0x1b8] sm:$0xf]
    %v2785 = vld [vmem:[#allocation10 + $0x1bc] sm:$0xf]
    %v2786 = vld [vmem:[#allocation10 + $0x1c0] sm:$0xf]
    %v2787 = vld [vmem:[#allocation10 + $0x1c4] sm:$0xf]
    %v2788 = vld [vmem:[#allocation10 + $0x1c8] sm:$0xf]
    %v2789 = vld [vmem:[#allocation10 + $0x1cc] sm:$0xf]
    %v2790 = vld [vmem:[#allocation10 + $0x1d0] sm:$0xf]
    %v2791 = vld [vmem:[#allocation10 + $0x1d4] sm:$0xf]
    %v2792 = vld [vmem:[#allocation10 + $0x1d8] sm:$0xf]
    %v2793 = vld [vmem:[#allocation10 + $0x1dc] sm:$0xf]
    %v2794 = vld [vmem:[#allocation10 + $0x1e0] sm:$0xf]
    %v2795 = vld [vmem:[#allocation10 + $0x1e4] sm:$0xf]
    %v2796 = vld [vmem:[#allocation10 + $0x1e8] sm:$0xf]
    %v2797 = vld [vmem:[#allocation10 + $0x1ec] sm:$0xf]
    %v2798 = vld [vmem:[#allocation10 + $0x1f0] sm:$0xf]
    %v2799 = vld [vmem:[#allocation10 + $0x1f4] sm:$0xf]
    %v2800 = vld [vmem:[#allocation10 + $0x1f8] sm:$0xf]
    %v2801 = vld [vmem:[#allocation10 + $0x1fc] sm:$0xf]
    %v2803 = vperm.slane %v118, 0
    %v2933 = vunpack.c.l.b16 %v2674
    %v2934 = vunpack.c.l.b16 %v2675
    %v2935 = vunpack.c.l.b16 %v2676
    %v2936 = vunpack.c.l.b16 %v2677
    %v2937 = vunpack.c.l.b16 %v2678
    %v2938 = vunpack.c.l.b16 %v2679
    %v2939 = vunpack.c.l.b16 %v2680
    %v2940 = vunpack.c.l.b16 %v2681
    %v2941 = vunpack.c.l.b16 %v2682
    %v2942 = vunpack.c.l.b16 %v2683
    %v2943 = vunpack.c.l.b16 %v2684
    %v2944 = vunpack.c.l.b16 %v2685
    %v2945 = vunpack.c.l.b16 %v2686
    %v2946 = vunpack.c.l.b16 %v2687
    %v2947 = vunpack.c.l.b16 %v2688
    %v2948 = vunpack.c.l.b16 %v2689
    %v2949 = vunpack.c.l.b16 %v2690
    %v2950 = vunpack.c.l.b16 %v2691
    %v2951 = vunpack.c.l.b16 %v2692
    %v2952 = vunpack.c.l.b16 %v2693
    %v2953 = vunpack.c.l.b16 %v2694
    %v2954 = vunpack.c.l.b16 %v2695
    %v2955 = vunpack.c.l.b16 %v2696
    %v2956 = vunpack.c.l.b16 %v2697
    %v2957 = vunpack.c.l.b16 %v2698
    %v2958 = vunpack.c.l.b16 %v2699
    %v2959 = vunpack.c.l.b16 %v2700
    %v2960 = vunpack.c.l.b16 %v2701
    %v2961 = vunpack.c.l.b16 %v2702
    %v2962 = vunpack.c.l.b16 %v2703
    %v2963 = vunpack.c.l.b16 %v2704
    %v2964 = vunpack.c.l.b16 %v2705
    %v2965 = vunpack.c.l.b16 %v2706
    %v2966 = vunpack.c.l.b16 %v2707
    %v2967 = vunpack.c.l.b16 %v2708
    %v2968 = vunpack.c.l.b16 %v2709
    %v2969 = vunpack.c.l.b16 %v2710
    %v2970 = vunpack.c.l.b16 %v2711
    %v2971 = vunpack.c.l.b16 %v2712
    %v2972 = vunpack.c.l.b16 %v2713
    %v2973 = vunpack.c.l.b16 %v2714
    %v2974 = vunpack.c.l.b16 %v2715
    %v2975 = vunpack.c.l.b16 %v2716
    %v2976 = vunpack.c.l.b16 %v2717
    %v2977 = vunpack.c.l.b16 %v2718
    %v2978 = vunpack.c.l.b16 %v2719
    %v2979 = vunpack.c.l.b16 %v2720
    %v2980 = vunpack.c.l.b16 %v2721
    %v2981 = vunpack.c.l.b16 %v2722
    %v2982 = vunpack.c.l.b16 %v2723
    %v2983 = vunpack.c.l.b16 %v2724
    %v2984 = vunpack.c.l.b16 %v2725
    %v2985 = vunpack.c.l.b16 %v2726
    %v2986 = vunpack.c.l.b16 %v2727
    %v2987 = vunpack.c.l.b16 %v2728
    %v2988 = vunpack.c.l.b16 %v2729
    %v2989 = vunpack.c.l.b16 %v2730
    %v2990 = vunpack.c.l.b16 %v2731
    %v2991 = vunpack.c.l.b16 %v2732
    %v2992 = vunpack.c.l.b16 %v2733
    %v2993 = vunpack.c.l.b16 %v2734
    %v2994 = vunpack.c.l.b16 %v2735
    %v2995 = vunpack.c.l.b16 %v2736
    %v2996 = vunpack.c.l.b16 %v2737
    %v2997 = vunpack.c.l.b16 %v2738
    %v2998 = vunpack.c.l.b16 %v2739
    %v2999 = vunpack.c.l.b16 %v2740
    %v3000 = vunpack.c.l.b16 %v2741
    %v3001 = vunpack.c.l.b16 %v2742
    %v3002 = vunpack.c.l.b16 %v2743
    %v3003 = vunpack.c.l.b16 %v2744
    %v3004 = vunpack.c.l.b16 %v2745
    %v3005 = vunpack.c.l.b16 %v2746
    %v3006 = vunpack.c.l.b16 %v2747
    %v3007 = vunpack.c.l.b16 %v2748
    %v3008 = vunpack.c.l.b16 %v2749
    %v3009 = vunpack.c.l.b16 %v2750
    %v3010 = vunpack.c.l.b16 %v2751
    %v3011 = vunpack.c.l.b16 %v2752
    %v3012 = vunpack.c.l.b16 %v2753
    %v3013 = vunpack.c.l.b16 %v2754
    %v3014 = vunpack.c.l.b16 %v2755
    %v3015 = vunpack.c.l.b16 %v2756
    %v3016 = vunpack.c.l.b16 %v2757
    %v3017 = vunpack.c.l.b16 %v2758
    %v3018 = vunpack.c.l.b16 %v2759
    %v3019 = vunpack.c.l.b16 %v2760
    %v3020 = vunpack.c.l.b16 %v2761
    %v3021 = vunpack.c.l.b16 %v2762
    %v3022 = vunpack.c.l.b16 %v2763
    %v3023 = vunpack.c.l.b16 %v2764
    %v3024 = vunpack.c.l.b16 %v2765
    %v3025 = vunpack.c.l.b16 %v2766
    %v3026 = vunpack.c.l.b16 %v2767
    %v3027 = vunpack.c.l.b16 %v2768
    %v3028 = vunpack.c.l.b16 %v2769
    %v3029 = vunpack.c.l.b16 %v2770
    %v3030 = vunpack.c.l.b16 %v2771
    %v3031 = vunpack.c.l.b16 %v2772
    %v3032 = vunpack.c.l.b16 %v2773
    %v3033 = vunpack.c.l.b16 %v2774
    %v3034 = vunpack.c.l.b16 %v2775
    %v3035 = vunpack.c.l.b16 %v2776
    %v3036 = vunpack.c.l.b16 %v2777
    %v3037 = vunpack.c.l.b16 %v2778
    %v3038 = vunpack.c.l.b16 %v2779
    %v3039 = vunpack.c.l.b16 %v2780
    %v3040 = vunpack.c.l.b16 %v2781
    %v3041 = vunpack.c.l.b16 %v2782
    %v3042 = vunpack.c.l.b16 %v2783
    %v3043 = vunpack.c.l.b16 %v2784
    %v3044 = vunpack.c.l.b16 %v2785
    %v3045 = vunpack.c.l.b16 %v2786
    %v3046 = vunpack.c.l.b16 %v2787
    %v3047 = vunpack.c.l.b16 %v2788
    %v3048 = vunpack.c.l.b16 %v2789
    %v3049 = vunpack.c.l.b16 %v2790
    %v3050 = vunpack.c.l.b16 %v2791
    %v3051 = vunpack.c.l.b16 %v2792
    %v3052 = vunpack.c.l.b16 %v2793
    %v3053 = vunpack.c.l.b16 %v2794
    %v3054 = vunpack.c.l.b16 %v2795
    %v3055 = vunpack.c.l.b16 %v2796
    %v3056 = vunpack.c.l.b16 %v2797
    %v3057 = vunpack.c.l.b16 %v2798
    %v3058 = vunpack.c.l.b16 %v2799
    %v3059 = vunpack.c.l.b16 %v2800
    %v3060 = vunpack.c.l.b16 %v2801
    %v3061 = vpack.c.b16 %v2934, %v2933
    %v3062 = vpack.c.b16 %v2936, %v2935
    %v3063 = vpack.c.b16 %v2938, %v2937
    %v3064 = vpack.c.b16 %v2940, %v2939
    %v3065 = vpack.c.b16 %v2942, %v2941
    %v3066 = vpack.c.b16 %v2944, %v2943
    %v3067 = vpack.c.b16 %v2946, %v2945
    %v3068 = vpack.c.b16 %v2948, %v2947
    %v3069 = vpack.c.b16 %v2950, %v2949
    %v3070 = vpack.c.b16 %v2952, %v2951
    %v3071 = vpack.c.b16 %v2954, %v2953
    %v3072 = vpack.c.b16 %v2956, %v2955
    %v3073 = vpack.c.b16 %v2958, %v2957
    %v3074 = vpack.c.b16 %v2960, %v2959
    %v3075 = vpack.c.b16 %v2962, %v2961
    %v3076 = vpack.c.b16 %v2964, %v2963
    %v3077 = vpack.c.b16 %v2966, %v2965
    %v3078 = vpack.c.b16 %v2968, %v2967
    %v3079 = vpack.c.b16 %v2970, %v2969
    %v3080 = vpack.c.b16 %v2972, %v2971
    %v3081 = vpack.c.b16 %v2974, %v2973
    %v3082 = vpack.c.b16 %v2976, %v2975
    %v3083 = vpack.c.b16 %v2978, %v2977
    %v3084 = vpack.c.b16 %v2980, %v2979
    %v3085 = vpack.c.b16 %v2982, %v2981
    %v3086 = vpack.c.b16 %v2984, %v2983
    %v3087 = vpack.c.b16 %v2986, %v2985
    %v3088 = vpack.c.b16 %v2988, %v2987
    %v3089 = vpack.c.b16 %v2990, %v2989
    %v3090 = vpack.c.b16 %v2992, %v2991
    %v3091 = vpack.c.b16 %v2994, %v2993
    %v3092 = vpack.c.b16 %v2996, %v2995
    %v3093 = vpack.c.b16 %v2998, %v2997
    %v3094 = vpack.c.b16 %v3000, %v2999
    %v3095 = vpack.c.b16 %v3002, %v3001
    %v3096 = vpack.c.b16 %v3004, %v3003
    %v3097 = vpack.c.b16 %v3006, %v3005
    %v3098 = vpack.c.b16 %v3008, %v3007
    %v3099 = vpack.c.b16 %v3010, %v3009
    %v3100 = vpack.c.b16 %v3012, %v3011
    %v3101 = vpack.c.b16 %v3014, %v3013
    %v3102 = vpack.c.b16 %v3016, %v3015
    %v3103 = vpack.c.b16 %v3018, %v3017
    %v3104 = vpack.c.b16 %v3020, %v3019
    %v3105 = vpack.c.b16 %v3022, %v3021
    %v3106 = vpack.c.b16 %v3024, %v3023
    %v3107 = vpack.c.b16 %v3026, %v3025
    %v3108 = vpack.c.b16 %v3028, %v3027
    %v3109 = vpack.c.b16 %v3030, %v3029
    %v3110 = vpack.c.b16 %v3032, %v3031
    %v3111 = vpack.c.b16 %v3034, %v3033
    %v3112 = vpack.c.b16 %v3036, %v3035
    %v3113 = vpack.c.b16 %v3038, %v3037
    %v3114 = vpack.c.b16 %v3040, %v3039
    %v3115 = vpack.c.b16 %v3042, %v3041
    %v3116 = vpack.c.b16 %v3044, %v3043
    %v3117 = vpack.c.b16 %v3046, %v3045
    %v3118 = vpack.c.b16 %v3048, %v3047
    %v3119 = vpack.c.b16 %v3050, %v3049
    %v3120 = vpack.c.b16 %v3052, %v3051
    %v3121 = vpack.c.b16 %v3054, %v3053
    %v3122 = vpack.c.b16 %v3056, %v3055
    %v3123 = vpack.c.b16 %v3058, %v3057
    %v3124 = vpack.c.b16 %v3060, %v3059
    %3189 = vmatpush.bf16.msra.mxu0 %v3068
    %3190 = vmatpush.bf16.msra.mxu0 %v3067
    %3191 = vmatpush.bf16.msra.mxu0 %v3066
    %3192 = vmatpush.bf16.msra.mxu0 %v3065
    %3193 = vmatpush.bf16.msra.mxu0 %v3064
    %3194 = vmatpush.bf16.msra.mxu0 %v3063
    %3195 = vmatpush.bf16.msra.mxu0 %v3062
    %3196 = vmatpush.bf16.msra.mxu0 %v3061
    %3197 = vmatmul.bf16.gmra.mxu0 %v2666
    %v3198 = vpop.f32.mrf.mxu0
    %v3199 = vadd.f32 %v2803, %v3198
    %v3200 = vpop.f32.mrf.mxu0
    %3201 = vdwg.mxu0
    %3202 = vmatpush.bf16.msra.mxu0 %v3076
    %3203 = vmatpush.bf16.msra.mxu0 %v3075
    %3204 = vmatpush.bf16.msra.mxu0 %v3074
    %3205 = vmatpush.bf16.msra.mxu0 %v3073
    %3206 = vmatpush.bf16.msra.mxu0 %v3072
    %3207 = vmatpush.bf16.msra.mxu0 %v3071
    %3208 = vmatpush.bf16.msra.mxu0 %v3070
    %3209 = vmatpush.bf16.msra.mxu0 %v3069
    %3210 = vmatmul.bf16.gmra.mxu0 %v2667
    %v3211 = vpop.f32.mrf.mxu0
    %v3212 = vadd.f32 %v3199, %v3211
    %v3213 = vpop.f32.mrf.mxu0
    %3214 = vdwg.mxu0
    %3215 = vmatpush.bf16.msra.mxu0 %v3084
    %3216 = vmatpush.bf16.msra.mxu0 %v3083
    %3217 = vmatpush.bf16.msra.mxu0 %v3082
    %3218 = vmatpush.bf16.msra.mxu0 %v3081
    %3219 = vmatpush.bf16.msra.mxu0 %v3080
    %3220 = vmatpush.bf16.msra.mxu0 %v3079
    %3221 = vmatpush.bf16.msra.mxu0 %v3078
    %3222 = vmatpush.bf16.msra.mxu0 %v3077
    %3223 = vmatmul.bf16.gmra.mxu0 %v2668
    %v3224 = vpop.f32.mrf.mxu0
    %v3225 = vadd.f32 %v3212, %v3224
    %v3226 = vpop.f32.mrf.mxu0
    %3227 = vdwg.mxu0
    %3228 = vmatpush.bf16.msra.mxu0 %v3092
    %3229 = vmatpush.bf16.msra.mxu0 %v3091
    %3230 = vmatpush.bf16.msra.mxu0 %v3090
    %3231 = vmatpush.bf16.msra.mxu0 %v3089
    %3232 = vmatpush.bf16.msra.mxu0 %v3088
    %3233 = vmatpush.bf16.msra.mxu0 %v3087
    %3234 = vmatpush.bf16.msra.mxu0 %v3086
    %3235 = vmatpush.bf16.msra.mxu0 %v3085
    %3236 = vmatmul.bf16.gmra.mxu0 %v2669
    %v3237 = vpop.f32.mrf.mxu0
    %v3238 = vadd.f32 %v3225, %v3237
    %v3239 = vpop.f32.mrf.mxu0
    %3240 = vdwg.mxu0
    %3241 = vmatpush.bf16.msra.mxu0 %v3100
    %3242 = vmatpush.bf16.msra.mxu0 %v3099
    %3243 = vmatpush.bf16.msra.mxu0 %v3098
    %3244 = vmatpush.bf16.msra.mxu0 %v3097
    %3245 = vmatpush.bf16.msra.mxu0 %v3096
    %3246 = vmatpush.bf16.msra.mxu0 %v3095
    %3247 = vmatpush.bf16.msra.mxu0 %v3094
    %3248 = vmatpush.bf16.msra.mxu0 %v3093
    %3249 = vmatmul.bf16.gmra.mxu0 %v2670
    %v3250 = vpop.f32.mrf.mxu0
    %v3251 = vadd.f32 %v3238, %v3250
    %v3252 = vpop.f32.mrf.mxu0
    %3253 = vdwg.mxu0
    %3254 = vmatpush.bf16.msra.mxu0 %v3108
    %3255 = vmatpush.bf16.msra.mxu0 %v3107
    %3256 = vmatpush.bf16.msra.mxu0 %v3106
    %3257 = vmatpush.bf16.msra.mxu0 %v3105
    %3258 = vmatpush.bf16.msra.mxu0 %v3104
    %3259 = vmatpush.bf16.msra.mxu0 %v3103
    %3260 = vmatpush.bf16.msra.mxu0 %v3102
    %3261 = vmatpush.bf16.msra.mxu0 %v3101
    %3262 = vmatmul.bf16.gmra.mxu0 %v2671
    %v3263 = vpop.f32.mrf.mxu0
    %v3264 = vadd.f32 %v3251, %v3263
    %v3265 = vpop.f32.mrf.mxu0
    %3266 = vdwg.mxu0
    %3267 = vmatpush.bf16.msra.mxu0 %v3116
    %3268 = vmatpush.bf16.msra.mxu0 %v3115
    %3269 = vmatpush.bf16.msra.mxu0 %v3114
    %3270 = vmatpush.bf16.msra.mxu0 %v3113
    %3271 = vmatpush.bf16.msra.mxu0 %v3112
    %3272 = vmatpush.bf16.msra.mxu0 %v3111
    %3273 = vmatpush.bf16.msra.mxu0 %v3110
    %3274 = vmatpush.bf16.msra.mxu0 %v3109
    %3275 = vmatmul.bf16.gmra.mxu0 %v2672
    %v3276 = vpop.f32.mrf.mxu0
    %v3277 = vadd.f32 %v3264, %v3276
    %v3278 = vpop.f32.mrf.mxu0
    %3279 = vdwg.mxu0
    %3280 = vmatpush.bf16.msra.mxu0 %v3124
    %3281 = vmatpush.bf16.msra.mxu0 %v3123
    %3282 = vmatpush.bf16.msra.mxu0 %v3122
    %3283 = vmatpush.bf16.msra.mxu0 %v3121
    %3284 = vmatpush.bf16.msra.mxu0 %v3120
    %3285 = vmatpush.bf16.msra.mxu0 %v3119
    %3286 = vmatpush.bf16.msra.mxu0 %v3118
    %3287 = vmatpush.bf16.msra.mxu0 %v3117
    %3288 = vmatmul.bf16.gmra.mxu0 %v2673
    %v3289 = vpop.f32.mrf.mxu0
    %v3290 = vadd.f32 %v3277, %v3289
    %v3291 = vpop.f32.mrf.mxu0
    %3292 = vdwg.mxu0
    %3293 = vst [vmem:[#allocation13] sm:$0xff] %v3290
    // Predicated region
    $region50: #{_run.1} parent=1 // pred_check
      _
    $region51: #{_run.1} parent=1 // pred_check_branch
      %3295 = sbr.rel (0) target = $region53
    $region52: #{_run.1} parent=1 // pred_region
      %3297 = vsyncadd [#allocation4], 0
      %s3299 = sshll.u32 [#allocation13], 4
      %s3300 = int_to_ptr.vmem [resolvable:$true] %s3299
      %s3301 = sshll.u32 %s6, 4
      %s3302 = int_to_ptr.hbm [resolvable:$true] %s3301
      %3304 = dma.vmem_to_hbm [thread:$0]  %s3300, 128, %s3302, [#allocation4]
    $region53: #{_run.1} parent=1 // pred_fallthru
      _
    // Predicated region
    $region54: #{_run.1} parent=1 // pred_check
      _
    $region55: #{_run.1} parent=1 // pred_check_branch
      %3306 = sbr.rel (0) target = $region57
    $region56: #{_run.1} parent=1 // pred_region
      %3308 = dma.done [#allocation4], 128
    $region57: #{_run.1} parent=1 // pred_fallthru
      _
    %3309 = vsyncpa [#allocation3], 1
    %3310 = vsyncpa [#allocation6], 1
    %3311 = vsyncpa [#allocation9], 1
    %3312 = vsyncpa [#allocation12], 1
    %3313 = vsyncpa [#allocation4], 1

</llo_original>
